<compile_context>
chip_gen: v6e
topology: v6e:2x2x1
jax: 0.10.0
libtpu: 0.0.40
codegen_flags: <defaults>
</compile_context>

<pallas_src>
import functools

import numpy as np
import jax
import jax.numpy as jnp
from jax.experimental import pallas as pl
from jax.experimental.pallas import tpu as pltpu


# ----------------------------------------------------------------- kernel ----

def _convnet_kernel(x0_ref, x1_ref, x2_ref, x3_ref,
                    w1_ref, b1_ref, w2_ref, b2_ref,
                    wf1_ref, bf1_ref, wf2_ref, bf2_ref,
                    out_ref, *, num_classes):
    f32 = jnp.float32
    bf16 = jnp.bfloat16
    bt = out_ref.shape[0]          # batch rows in this block (multiple of 8)

    # Input arrives split by (h mod 4) so that pooling-by-2 twice in h never
    # needs strided slicing: x{m}[t, b, w] == image[4*t + m, b, w].
    xg = (x0_ref[...], x1_ref[...], x2_ref[...], x3_ref[...])     # [7, bt, 28] f32
    # Two shifted flat views per group (rows t..t+5), flattened to (t, b) rows.
    xflat = []
    for x in xg:
        xflat.append((x[0:6].reshape(6 * bt, 28).astype(bf16),
                      x[1:7].reshape(6 * bt, 28).astype(bf16)))

    w1 = [w1_ref[i] for i in range(5)]      # each [28, 256] bf16
    w2 = [w2_ref[i] for i in range(5)]      # each [128, 256] bf16
    wf1 = [wf1_ref[i] for i in range(4)]    # each [128, 64] bf16

    # conv1 (5x5, 1->10): output rows h1 = 4k + r for r in 0..3, as 5 matmuls.
    def conv1_rows(r):
        acc = None
        for i in range(5):
            m, q = (r + i) % 4, (r + i) // 4
            d = jnp.dot(xflat[m][q], w1[i], preferred_element_type=f32)
            acc = d if acc is None else acc + d
        return acc                          # [6*bt, 256] f32

    def pool_bias_relu(u, v, bias):
        # 2x2 maxpool: h-pair max (u vs v), w-pair max (lane halves), then
        # conv bias + ReLU (bias/ReLU commute with the per-channel max).
        m = jnp.maximum(u, v)
        m = jnp.maximum(m[:, :128], m[:, 128:])
        return jnp.maximum(m + bias, 0.0)

    b1 = b1_ref[...]
    p1 = (pool_bias_relu(conv1_rows(0), conv1_rows(1), b1),   # pooled rows oh1 even
          pool_bias_relu(conv1_rows(2), conv1_rows(3), b1))   # pooled rows oh1 odd
    # p1[.] : [6*bt, 128] f32, lanes = ow1*10 + c1 (120 valid, rest exactly 0)

    # conv2 (5x5, 10->20); dropout_2 is identity in eval mode.
    def conv2_rows(r):
        acc = None
        for i in range(5):
            m, q = (r + i) % 2, (r + i) // 2
            xi = p1[m][q * bt:(q + 4) * bt, :].astype(bf16)
            d = jnp.dot(xi, w2[i], preferred_element_type=f32)
            acc = d if acc is None else acc + d
        return acc                          # [4*bt, 256] f32

    p2 = pool_bias_relu(conv2_rows(0), conv2_rows(1), b2_ref[...])
    # p2: [4*bt, 128] f32, rows = (oh2, b), lanes = ow2*20 + c2 (80 valid, rest 0)

    # fc1 (320 -> 50) + ReLU; NCHW-flatten permutation is folded into wf1.
    acc = None
    for oh in range(4):
        xi = p2[oh * bt:(oh + 1) * bt, :].astype(bf16)
        d = jnp.dot(xi, wf1[oh], preferred_element_type=f32)
        acc = d if acc is None else acc + d
    h = jnp.maximum(acc + bf1_ref[...], 0.0).astype(bf16)     # [bt, 64]

    # fc2 + relu_4 + softmax over the first num_classes lanes.
    logits = jnp.dot(h, wf2_ref[...], preferred_element_type=f32) + bf2_ref[...]
    logits = jnp.maximum(logits, 0.0)
    lane = jax.lax.broadcasted_iota(jnp.int32, logits.shape, 1)
    logits = jnp.where(lane < num_classes, logits, -1e30)
    z = logits - jnp.max(logits, axis=-1, keepdims=True)
    e = jnp.exp(z)
    inv = pl.reciprocal(jnp.sum(e, axis=-1, keepdims=True), approx=True)
    out_ref[...] = e * inv


# -------------------------------------------------------- weight packing -----

def prepare_params(params, num_classes, compute_dtype=jnp.bfloat16):
    """One-time (outside jit) packing of PyTorch-layout params into the
    structured matrices consumed by the fused kernel."""
    w1 = np.asarray(params["conv1_w"], np.float32)    # [10, 1, 5, 5]
    b1 = np.asarray(params["conv1_b"], np.float32)    # [10]
    w2 = np.asarray(params["conv2_w"], np.float32)    # [20, 10, 5, 5]
    b2 = np.asarray(params["conv2_b"], np.float32)    # [20]
    f1w = np.asarray(params["fc1_w"], np.float32)     # [50, 320]
    f1b = np.asarray(params["fc1_b"], np.float32)     # [50]
    f2w = np.asarray(params["fc2_w"], np.float32)     # [nc, 50]
    f2b = np.asarray(params["fc2_b"], np.float32)     # [nc]

    # conv1: W1[i][win, lane] ; output lane = (wo%2)*128 + (wo//2)*10 + c
    W1 = np.zeros((5, 28, 256), np.float32)
    for i in range(5):
        for j in range(5):
            for wo in range(24):
                base = (wo % 2) * 128 + (wo // 2) * 10
                W1[i, wo + j, base:base + 10] += w1[:, 0, i, j]
    B1 = np.zeros((1, 128), np.float32)
    for ow in range(12):
        B1[0, ow * 10:ow * 10 + 10] = b1

    # conv2: input lane = ow1*10 + c1 ; output lane = (wo2%2)*128 + (wo2//2)*20 + c2
    W2 = np.zeros((5, 128, 256), np.float32)
    for i in range(5):
        for j in range(5):
            for wo in range(8):
                base = (wo % 2) * 128 + (wo // 2) * 20
                rin = (wo + j) * 10
                W2[i, rin:rin + 10, base:base + 20] += w2[:, :, i, j].T
    B2 = np.zeros((1, 128), np.float32)
    for ow in range(4):
        B2[0, ow * 20:ow * 20 + 20] = b2

    # fc1: torch flatten index f = c2*16 + oh2*4 + ow2 folded into the columns.
    WF1 = np.zeros((4, 128, 64), np.float32)
    for oh in range(4):
        for ow in range(4):
            for c in range(20):
                WF1[oh, ow * 20 + c, :50] = f1w[:, c * 16 + oh * 4 + ow]
    BF1 = np.zeros((1, 64), np.float32)
    BF1[0, :50] = f1b

    WF2 = np.zeros((64, 128), np.float32)
    WF2[:50, :num_classes] = f2w.T
    BF2 = np.zeros((1, 128), np.float32)
    BF2[0, :num_classes] = f2b

    return {
        "w1": jnp.asarray(W1, compute_dtype), "b1": jnp.asarray(B1),
        "w2": jnp.asarray(W2, compute_dtype), "b2": jnp.asarray(B2),
        "wf1": jnp.asarray(WF1, compute_dtype), "bf1": jnp.asarray(BF1),
        "wf2": jnp.asarray(WF2, compute_dtype), "bf2": jnp.asarray(BF2),
    }


# ---------------------------------------------------------------- wrapper ----

def _round_up(n, m):
    return ((n + m - 1) // m) * m


def _pick_block_batch(batch):
    if batch >= 128:
        return 128
    return max(8, _round_up(batch, 8))


def convnet_forward(prep, x_nchw, *, num_classes):
    """Fused ConvNet forward. x_nchw: [B, 1, 28, 28] float32."""
    B, C, H, W = x_nchw.shape
    assert (C, H, W) == (1, 28, 28), "ConvNet expects 1x28x28 inputs"
    assert num_classes <= 128

    bt = _pick_block_batch(B)
    Bp = _round_up(B, bt)

    # (h, b, w) layout; split rows by h mod 4 (pooling twice by 2 in h).
    x = jnp.transpose(x_nchw[:, 0, :, :], (1, 0, 2)).astype(jnp.float32)
    if Bp != B:
        x = jnp.pad(x, ((0, 0), (0, Bp - B), (0, 0)))
    xg = [x[m::4] for m in range(4)]                      # 4 x [7, Bp, 28]

    kernel = functools.partial(_convnet_kernel, num_classes=num_classes)
    xmap = lambda g: (0, g, 0)
    full3 = lambda g: (0, 0, 0)
    full2 = lambda g: (0, 0)

    out = pl.pallas_call(
        kernel,
        out_shape=jax.ShapeDtypeStruct((Bp, 128), jnp.float32),
        grid=(Bp // bt,),
        in_specs=[
            pl.BlockSpec((7, bt, 28), xmap),
            pl.BlockSpec((7, bt, 28), xmap),
            pl.BlockSpec((7, bt, 28), xmap),
            pl.BlockSpec((7, bt, 28), xmap),
            pl.BlockSpec((5, 28, 256), full3),
            pl.BlockSpec((1, 128), full2),
            pl.BlockSpec((5, 128, 256), full3),
            pl.BlockSpec((1, 128), full2),
            pl.BlockSpec((4, 128, 64), full3),
            pl.BlockSpec((1, 64), full2),
            pl.BlockSpec((64, 128), full2),
            pl.BlockSpec((1, 128), full2),
        ],
        out_specs=pl.BlockSpec((bt, 128), lambda g: (g, 0)),
        compiler_params=pltpu.CompilerParams(
            dimension_semantics=("parallel",)),
    )(xg[0], xg[1], xg[2], xg[3],
      prep["w1"], prep["b1"], prep["w2"], prep["b2"],
      prep["wf1"], prep["bf1"], prep["wf2"], prep["bf2"])

    return out[:B, :num_classes]


# ------------------------------------------------------- reference / init ----

def _maxpool2x2_nchw(y):
    B, C, H, W = y.shape
    return y.reshape(B, C, H // 2, 2, W // 2, 2).max(axis=(3, 5))


def convnet_reference(params, x_nchw):
    """Pure-JAX (f32) reference matching the PyTorch module in eval mode."""
    x = x_nchw.astype(jnp.float32)
    y = jax.lax.conv_general_dilated(
        x, params["conv1_w"], window_strides=(1, 1), padding="VALID",
        dimension_numbers=("NCHW", "OIHW", "NCHW"))
    y = y + params["conv1_b"][None, :, None, None]
    y = jnp.maximum(_maxpool2x2_nchw(y), 0.0)
    y = jax.lax.conv_general_dilated(
        y, params["conv2_w"], window_strides=(1, 1), padding="VALID",
        dimension_numbers=("NCHW", "OIHW", "NCHW"))
    y = y + params["conv2_b"][None, :, None, None]
    y = jnp.maximum(_maxpool2x2_nchw(y), 0.0)
    flat = y.reshape(y.shape[0], -1)          # torch x.view(-1, 320) order
    h = jnp.maximum(flat @ params["fc1_w"].T + params["fc1_b"], 0.0)
    z = jnp.maximum(h @ params["fc2_w"].T + params["fc2_b"], 0.0)
    return jax.nn.softmax(z, axis=-1)


def init_params(key, output_dim):
    ks = jax.random.split(key, 8)
    scale = 0.1
    return {
        # PyTorch conv weight layout [Cout, Cin, KH, KW]
        "conv1_w": scale * jax.random.normal(ks[0], (10, 1, 5, 5), jnp.float32),
        "conv1_b": scale * jax.random.normal(ks[1], (10,), jnp.float32),
        "conv2_w": scale * jax.random.normal(ks[2], (20, 10, 5, 5), jnp.float32),
        "conv2_b": scale * jax.random.normal(ks[3], (20,), jnp.float32),
        # PyTorch linear weight layout [out, in]
        "fc1_w": scale * jax.random.normal(ks[4], (50, 320), jnp.float32),
        "fc1_b": scale * jax.random.normal(ks[5], (50,), jnp.float32),
        "fc2_w": scale * jax.random.normal(ks[6], (output_dim, 50), jnp.float32),
        "fc2_b": scale * jax.random.normal(ks[7], (output_dim,), jnp.float32),
    }


# ------------------------------------------------------------------- main ----

if __name__ == "__main__":
    key = jax.random.PRNGKey(0)
    k_params, k_x = jax.random.split(key)
    num_classes = 10

    params = init_params(k_params, num_classes)
    x = jax.random.normal(k_x, (2, 1, 28, 28), dtype=jnp.float32)

    prep = prepare_params(params, num_classes)        # one-time, outside jit
    fwd = jax.jit(functools.partial(convnet_forward, num_classes=num_classes))

    out = jax.block_until_ready(fwd(prep, x))
    ref = jax.block_until_ready(convnet_reference(params, x))

    assert out.shape == (2, num_classes)
    assert bool(jnp.all(jnp.isfinite(out)))
    # softmax rows sum to ~1 (approx reciprocal used for the denominator)
    assert bool(jnp.allclose(jnp.sum(out, axis=-1), 1.0, atol=1e-2))
    # bf16-in/f32-acc fused kernel vs full-f32 XLA reference
    max_err = float(jnp.max(jnp.abs(out - ref)))
    assert max_err < 5e-2, f"mismatch vs reference: {max_err}"
    print("KERNEL_OK")
</pallas_src>

<mosaic_0001>
module attributes {stable_mosaic.version = 11 : i64} {
  func.func @_convnet_kernel(%arg0: i32, %arg1: memref<7x8x28xf32, #tpu.memory_space<vmem>>, %arg2: memref<7x8x28xf32, #tpu.memory_space<vmem>>, %arg3: memref<7x8x28xf32, #tpu.memory_space<vmem>>, %arg4: memref<7x8x28xf32, #tpu.memory_space<vmem>>, %arg5: memref<5x28x256xbf16, #tpu.memory_space<vmem>>, %arg6: memref<1x128xf32, #tpu.memory_space<vmem>>, %arg7: memref<5x128x256xbf16, #tpu.memory_space<vmem>>, %arg8: memref<1x128xf32, #tpu.memory_space<vmem>>, %arg9: memref<4x128x64xbf16, #tpu.memory_space<vmem>>, %arg10: memref<1x64xf32, #tpu.memory_space<vmem>>, %arg11: memref<64x128xbf16, #tpu.memory_space<vmem>>, %arg12: memref<1x128xf32, #tpu.memory_space<vmem>>, %arg13: memref<8x128xf32, #tpu.memory_space<vmem>>) attributes {dimension_semantics = [#tpu.dimension_semantics<parallel>], iteration_bounds = array<i64: 1>, scalar_prefetch = 0 : i64, scratch_operands = 0 : i64, tpu.core_type = #tpu.core_type<tc>, window_params = [{transform_indices = @transform_0, window_bounds = array<i64: 7, 8, 28>}, {transform_indices = @transform_1, window_bounds = array<i64: 7, 8, 28>}, {transform_indices = @transform_2, window_bounds = array<i64: 7, 8, 28>}, {transform_indices = @transform_3, window_bounds = array<i64: 7, 8, 28>}, {pipeline_mode = #tpu.pipeline_mode<synchronous>, transform_indices = @transform_4, window_bounds = array<i64: 5, 28, 256>}, {pipeline_mode = #tpu.pipeline_mode<synchronous>, transform_indices = @transform_5, window_bounds = array<i64: 1, 128>}, {pipeline_mode = #tpu.pipeline_mode<synchronous>, transform_indices = @transform_6, window_bounds = array<i64: 5, 128, 256>}, {pipeline_mode = #tpu.pipeline_mode<synchronous>, transform_indices = @transform_7, window_bounds = array<i64: 1, 128>}, {pipeline_mode = #tpu.pipeline_mode<synchronous>, transform_indices = @transform_8, window_bounds = array<i64: 4, 128, 64>}, {pipeline_mode = #tpu.pipeline_mode<synchronous>, transform_indices = @transform_9, window_bounds = array<i64: 1, 64>}, {pipeline_mode = #tpu.pipeline_mode<synchronous>, transform_indices = @transform_10, window_bounds = array<i64: 64, 128>}, {pipeline_mode = #tpu.pipeline_mode<synchronous>, transform_indices = @transform_11, window_bounds = array<i64: 1, 128>}, {transform_indices = @transform_12, window_bounds = array<i64: 8, 128>}]} {
    %c0 = arith.constant 0 : index
    %c0_0 = arith.constant 0 : index
    %c0_1 = arith.constant 0 : index
    %0 = vector.load %arg1[%c0, %c0_0, %c0_1] : memref<7x8x28xf32, #tpu.memory_space<vmem>>, vector<7x8x28xf32>
    %c0_2 = arith.constant 0 : index
    %c0_3 = arith.constant 0 : index
    %c0_4 = arith.constant 0 : index
    %1 = vector.load %arg2[%c0_2, %c0_3, %c0_4] : memref<7x8x28xf32, #tpu.memory_space<vmem>>, vector<7x8x28xf32>
    %c0_5 = arith.constant 0 : index
    %c0_6 = arith.constant 0 : index
    %c0_7 = arith.constant 0 : index
    %2 = vector.load %arg3[%c0_5, %c0_6, %c0_7] : memref<7x8x28xf32, #tpu.memory_space<vmem>>, vector<7x8x28xf32>
    %c0_8 = arith.constant 0 : index
    %c0_9 = arith.constant 0 : index
    %c0_10 = arith.constant 0 : index
    %3 = vector.load %arg4[%c0_8, %c0_9, %c0_10] : memref<7x8x28xf32, #tpu.memory_space<vmem>>, vector<7x8x28xf32>
    %4 = vector.extract_strided_slice %0 {offsets = [0, 0, 0], sizes = [6, 8, 28], strides = [1, 1, 1]} : vector<7x8x28xf32> to vector<6x8x28xf32>
    %5 = vector.shape_cast %4 : vector<6x8x28xf32> to vector<48x28xf32>
    %6 = arith.truncf %5 : vector<48x28xf32> to vector<48x28xbf16>
    %7 = vector.extract_strided_slice %0 {offsets = [1, 0, 0], sizes = [6, 8, 28], strides = [1, 1, 1]} : vector<7x8x28xf32> to vector<6x8x28xf32>
    %8 = vector.shape_cast %7 : vector<6x8x28xf32> to vector<48x28xf32>
    %9 = arith.truncf %8 : vector<48x28xf32> to vector<48x28xbf16>
    %10 = vector.extract_strided_slice %1 {offsets = [0, 0, 0], sizes = [6, 8, 28], strides = [1, 1, 1]} : vector<7x8x28xf32> to vector<6x8x28xf32>
    %11 = vector.shape_cast %10 : vector<6x8x28xf32> to vector<48x28xf32>
    %12 = arith.truncf %11 : vector<48x28xf32> to vector<48x28xbf16>
    %13 = vector.extract_strided_slice %1 {offsets = [1, 0, 0], sizes = [6, 8, 28], strides = [1, 1, 1]} : vector<7x8x28xf32> to vector<6x8x28xf32>
    %14 = vector.shape_cast %13 : vector<6x8x28xf32> to vector<48x28xf32>
    %15 = arith.truncf %14 : vector<48x28xf32> to vector<48x28xbf16>
    %16 = vector.extract_strided_slice %2 {offsets = [0, 0, 0], sizes = [6, 8, 28], strides = [1, 1, 1]} : vector<7x8x28xf32> to vector<6x8x28xf32>
    %17 = vector.shape_cast %16 : vector<6x8x28xf32> to vector<48x28xf32>
    %18 = arith.truncf %17 : vector<48x28xf32> to vector<48x28xbf16>
    %19 = vector.extract_strided_slice %2 {offsets = [1, 0, 0], sizes = [6, 8, 28], strides = [1, 1, 1]} : vector<7x8x28xf32> to vector<6x8x28xf32>
    %20 = vector.shape_cast %19 : vector<6x8x28xf32> to vector<48x28xf32>
    %21 = arith.truncf %20 : vector<48x28xf32> to vector<48x28xbf16>
    %22 = vector.extract_strided_slice %3 {offsets = [0, 0, 0], sizes = [6, 8, 28], strides = [1, 1, 1]} : vector<7x8x28xf32> to vector<6x8x28xf32>
    %23 = vector.shape_cast %22 : vector<6x8x28xf32> to vector<48x28xf32>
    %24 = arith.truncf %23 : vector<48x28xf32> to vector<48x28xbf16>
    %25 = vector.extract_strided_slice %3 {offsets = [1, 0, 0], sizes = [6, 8, 28], strides = [1, 1, 1]} : vector<7x8x28xf32> to vector<6x8x28xf32>
    %26 = vector.shape_cast %25 : vector<6x8x28xf32> to vector<48x28xf32>
    %27 = arith.truncf %26 : vector<48x28xf32> to vector<48x28xbf16>
    %c0_11 = arith.constant 0 : index
    %c0_12 = arith.constant 0 : index
    %c0_13 = arith.constant 0 : index
    %28 = vector.load %arg5[%c0_11, %c0_12, %c0_13] : memref<5x28x256xbf16, #tpu.memory_space<vmem>>, vector<1x28x256xbf16>
    %29 = vector.shape_cast %28 : vector<1x28x256xbf16> to vector<28x256xbf16>
    %c1 = arith.constant 1 : index
    %c0_14 = arith.constant 0 : index
    %c0_15 = arith.constant 0 : index
    %30 = vector.load %arg5[%c1, %c0_14, %c0_15] : memref<5x28x256xbf16, #tpu.memory_space<vmem>>, vector<1x28x256xbf16>
    %31 = vector.shape_cast %30 : vector<1x28x256xbf16> to vector<28x256xbf16>
    %c2 = arith.constant 2 : index
    %c0_16 = arith.constant 0 : index
    %c0_17 = arith.constant 0 : index
    %32 = vector.load %arg5[%c2, %c0_16, %c0_17] : memref<5x28x256xbf16, #tpu.memory_space<vmem>>, vector<1x28x256xbf16>
    %33 = vector.shape_cast %32 : vector<1x28x256xbf16> to vector<28x256xbf16>
    %c3 = arith.constant 3 : index
    %c0_18 = arith.constant 0 : index
    %c0_19 = arith.constant 0 : index
    %34 = vector.load %arg5[%c3, %c0_18, %c0_19] : memref<5x28x256xbf16, #tpu.memory_space<vmem>>, vector<1x28x256xbf16>
    %35 = vector.shape_cast %34 : vector<1x28x256xbf16> to vector<28x256xbf16>
    %c4 = arith.constant 4 : index
    %c0_20 = arith.constant 0 : index
    %c0_21 = arith.constant 0 : index
    %36 = vector.load %arg5[%c4, %c0_20, %c0_21] : memref<5x28x256xbf16, #tpu.memory_space<vmem>>, vector<1x28x256xbf16>
    %37 = vector.shape_cast %36 : vector<1x28x256xbf16> to vector<28x256xbf16>
    %c0_22 = arith.constant 0 : index
    %c0_23 = arith.constant 0 : index
    %c0_24 = arith.constant 0 : index
    %38 = vector.load %arg7[%c0_22, %c0_23, %c0_24] : memref<5x128x256xbf16, #tpu.memory_space<vmem>>, vector<1x128x256xbf16>
    %39 = vector.shape_cast %38 : vector<1x128x256xbf16> to vector<128x256xbf16>
    %c1_25 = arith.constant 1 : index
    %c0_26 = arith.constant 0 : index
    %c0_27 = arith.constant 0 : index
    %40 = vector.load %arg7[%c1_25, %c0_26, %c0_27] : memref<5x128x256xbf16, #tpu.memory_space<vmem>>, vector<1x128x256xbf16>
    %41 = vector.shape_cast %40 : vector<1x128x256xbf16> to vector<128x256xbf16>
    %c2_28 = arith.constant 2 : index
    %c0_29 = arith.constant 0 : index
    %c0_30 = arith.constant 0 : index
    %42 = vector.load %arg7[%c2_28, %c0_29, %c0_30] : memref<5x128x256xbf16, #tpu.memory_space<vmem>>, vector<1x128x256xbf16>
    %43 = vector.shape_cast %42 : vector<1x128x256xbf16> to vector<128x256xbf16>
    %c3_31 = arith.constant 3 : index
    %c0_32 = arith.constant 0 : index
    %c0_33 = arith.constant 0 : index
    %44 = vector.load %arg7[%c3_31, %c0_32, %c0_33] : memref<5x128x256xbf16, #tpu.memory_space<vmem>>, vector<1x128x256xbf16>
    %45 = vector.shape_cast %44 : vector<1x128x256xbf16> to vector<128x256xbf16>
    %c4_34 = arith.constant 4 : index
    %c0_35 = arith.constant 0 : index
    %c0_36 = arith.constant 0 : index
    %46 = vector.load %arg7[%c4_34, %c0_35, %c0_36] : memref<5x128x256xbf16, #tpu.memory_space<vmem>>, vector<1x128x256xbf16>
    %47 = vector.shape_cast %46 : vector<1x128x256xbf16> to vector<128x256xbf16>
    %c0_37 = arith.constant 0 : index
    %c0_38 = arith.constant 0 : index
    %c0_39 = arith.constant 0 : index
    %48 = vector.load %arg9[%c0_37, %c0_38, %c0_39] : memref<4x128x64xbf16, #tpu.memory_space<vmem>>, vector<1x128x64xbf16>
    %49 = vector.shape_cast %48 : vector<1x128x64xbf16> to vector<128x64xbf16>
    %c1_40 = arith.constant 1 : index
    %c0_41 = arith.constant 0 : index
    %c0_42 = arith.constant 0 : index
    %50 = vector.load %arg9[%c1_40, %c0_41, %c0_42] : memref<4x128x64xbf16, #tpu.memory_space<vmem>>, vector<1x128x64xbf16>
    %51 = vector.shape_cast %50 : vector<1x128x64xbf16> to vector<128x64xbf16>
    %c2_43 = arith.constant 2 : index
    %c0_44 = arith.constant 0 : index
    %c0_45 = arith.constant 0 : index
    %52 = vector.load %arg9[%c2_43, %c0_44, %c0_45] : memref<4x128x64xbf16, #tpu.memory_space<vmem>>, vector<1x128x64xbf16>
    %53 = vector.shape_cast %52 : vector<1x128x64xbf16> to vector<128x64xbf16>
    %c3_46 = arith.constant 3 : index
    %c0_47 = arith.constant 0 : index
    %c0_48 = arith.constant 0 : index
    %54 = vector.load %arg9[%c3_46, %c0_47, %c0_48] : memref<4x128x64xbf16, #tpu.memory_space<vmem>>, vector<1x128x64xbf16>
    %55 = vector.shape_cast %54 : vector<1x128x64xbf16> to vector<128x64xbf16>
    %c0_49 = arith.constant 0 : index
    %c0_50 = arith.constant 0 : index
    %56 = vector.load %arg6[%c0_49, %c0_50] : memref<1x128xf32, #tpu.memory_space<vmem>>, vector<1x128xf32>
    %cst = arith.constant dense<0.000000e+00> : vector<48x256xf32>
    %57 = tpu.matmul %6, %29, %cst {dimension_numbers = #tpu.dot_dimension_numbers<[1], [0], [0], [1], [0, 0, 1, 1], [], []>} : vector<48x28xbf16>, vector<28x256xbf16>, vector<48x256xf32> -> vector<48x256xf32>
    %cst_51 = arith.constant dense<0.000000e+00> : vector<48x256xf32>
    %58 = tpu.matmul %12, %31, %cst_51 {dimension_numbers = #tpu.dot_dimension_numbers<[1], [0], [0], [1], [0, 0, 1, 1], [], []>} : vector<48x28xbf16>, vector<28x256xbf16>, vector<48x256xf32> -> vector<48x256xf32>
    %59 = arith.addf %57, %58 : vector<48x256xf32>
    %cst_52 = arith.constant dense<0.000000e+00> : vector<48x256xf32>
    %60 = tpu.matmul %18, %33, %cst_52 {dimension_numbers = #tpu.dot_dimension_numbers<[1], [0], [0], [1], [0, 0, 1, 1], [], []>} : vector<48x28xbf16>, vector<28x256xbf16>, vector<48x256xf32> -> vector<48x256xf32>
    %61 = arith.addf %59, %60 : vector<48x256xf32>
    %cst_53 = arith.constant dense<0.000000e+00> : vector<48x256xf32>
    %62 = tpu.matmul %24, %35, %cst_53 {dimension_numbers = #tpu.dot_dimension_numbers<[1], [0], [0], [1], [0, 0, 1, 1], [], []>} : vector<48x28xbf16>, vector<28x256xbf16>, vector<48x256xf32> -> vector<48x256xf32>
    %63 = arith.addf %61, %62 : vector<48x256xf32>
    %cst_54 = arith.constant dense<0.000000e+00> : vector<48x256xf32>
    %64 = tpu.matmul %9, %37, %cst_54 {dimension_numbers = #tpu.dot_dimension_numbers<[1], [0], [0], [1], [0, 0, 1, 1], [], []>} : vector<48x28xbf16>, vector<28x256xbf16>, vector<48x256xf32> -> vector<48x256xf32>
    %65 = arith.addf %63, %64 : vector<48x256xf32>
    %cst_55 = arith.constant dense<0.000000e+00> : vector<48x256xf32>
    %66 = tpu.matmul %12, %29, %cst_55 {dimension_numbers = #tpu.dot_dimension_numbers<[1], [0], [0], [1], [0, 0, 1, 1], [], []>} : vector<48x28xbf16>, vector<28x256xbf16>, vector<48x256xf32> -> vector<48x256xf32>
    %cst_56 = arith.constant dense<0.000000e+00> : vector<48x256xf32>
    %67 = tpu.matmul %18, %31, %cst_56 {dimension_numbers = #tpu.dot_dimension_numbers<[1], [0], [0], [1], [0, 0, 1, 1], [], []>} : vector<48x28xbf16>, vector<28x256xbf16>, vector<48x256xf32> -> vector<48x256xf32>
    %68 = arith.addf %66, %67 : vector<48x256xf32>
    %cst_57 = arith.constant dense<0.000000e+00> : vector<48x256xf32>
    %69 = tpu.matmul %24, %33, %cst_57 {dimension_numbers = #tpu.dot_dimension_numbers<[1], [0], [0], [1], [0, 0, 1, 1], [], []>} : vector<48x28xbf16>, vector<28x256xbf16>, vector<48x256xf32> -> vector<48x256xf32>
    %70 = arith.addf %68, %69 : vector<48x256xf32>
    %cst_58 = arith.constant dense<0.000000e+00> : vector<48x256xf32>
    %71 = tpu.matmul %9, %35, %cst_58 {dimension_numbers = #tpu.dot_dimension_numbers<[1], [0], [0], [1], [0, 0, 1, 1], [], []>} : vector<48x28xbf16>, vector<28x256xbf16>, vector<48x256xf32> -> vector<48x256xf32>
    %72 = arith.addf %70, %71 : vector<48x256xf32>
    %cst_59 = arith.constant dense<0.000000e+00> : vector<48x256xf32>
    %73 = tpu.matmul %15, %37, %cst_59 {dimension_numbers = #tpu.dot_dimension_numbers<[1], [0], [0], [1], [0, 0, 1, 1], [], []>} : vector<48x28xbf16>, vector<28x256xbf16>, vector<48x256xf32> -> vector<48x256xf32>
    %74 = arith.addf %72, %73 : vector<48x256xf32>
    %75 = arith.maximumf %65, %74 : vector<48x256xf32>
    %76 = vector.extract_strided_slice %75 {offsets = [0, 0], sizes = [48, 128], strides = [1, 1]} : vector<48x256xf32> to vector<48x128xf32>
    %77 = vector.extract_strided_slice %75 {offsets = [0, 128], sizes = [48, 128], strides = [1, 1]} : vector<48x256xf32> to vector<48x128xf32>
    %78 = arith.maximumf %76, %77 : vector<48x128xf32>
    %79 = vector.broadcast %56 : vector<1x128xf32> to vector<48x128xf32>
    %80 = arith.addf %78, %79 : vector<48x128xf32>
    %cst_60 = arith.constant 0.000000e+00 : f32
    %81 = vector.broadcast %cst_60 : f32 to vector<48x128xf32>
    %82 = arith.maximumf %80, %81 : vector<48x128xf32>
    %cst_61 = arith.constant dense<0.000000e+00> : vector<48x256xf32>
    %83 = tpu.matmul %18, %29, %cst_61 {dimension_numbers = #tpu.dot_dimension_numbers<[1], [0], [0], [1], [0, 0, 1, 1], [], []>} : vector<48x28xbf16>, vector<28x256xbf16>, vector<48x256xf32> -> vector<48x256xf32>
    %cst_62 = arith.constant dense<0.000000e+00> : vector<48x256xf32>
    %84 = tpu.matmul %24, %31, %cst_62 {dimension_numbers = #tpu.dot_dimension_numbers<[1], [0], [0], [1], [0, 0, 1, 1], [], []>} : vector<48x28xbf16>, vector<28x256xbf16>, vector<48x256xf32> -> vector<48x256xf32>
    %85 = arith.addf %83, %84 : vector<48x256xf32>
    %cst_63 = arith.constant dense<0.000000e+00> : vector<48x256xf32>
    %86 = tpu.matmul %9, %33, %cst_63 {dimension_numbers = #tpu.dot_dimension_numbers<[1], [0], [0], [1], [0, 0, 1, 1], [], []>} : vector<48x28xbf16>, vector<28x256xbf16>, vector<48x256xf32> -> vector<48x256xf32>
    %87 = arith.addf %85, %86 : vector<48x256xf32>
    %cst_64 = arith.constant dense<0.000000e+00> : vector<48x256xf32>
    %88 = tpu.matmul %15, %35, %cst_64 {dimension_numbers = #tpu.dot_dimension_numbers<[1], [0], [0], [1], [0, 0, 1, 1], [], []>} : vector<48x28xbf16>, vector<28x256xbf16>, vector<48x256xf32> -> vector<48x256xf32>
    %89 = arith.addf %87, %88 : vector<48x256xf32>
    %cst_65 = arith.constant dense<0.000000e+00> : vector<48x256xf32>
    %90 = tpu.matmul %21, %37, %cst_65 {dimension_numbers = #tpu.dot_dimension_numbers<[1], [0], [0], [1], [0, 0, 1, 1], [], []>} : vector<48x28xbf16>, vector<28x256xbf16>, vector<48x256xf32> -> vector<48x256xf32>
    %91 = arith.addf %89, %90 : vector<48x256xf32>
    %cst_66 = arith.constant dense<0.000000e+00> : vector<48x256xf32>
    %92 = tpu.matmul %24, %29, %cst_66 {dimension_numbers = #tpu.dot_dimension_numbers<[1], [0], [0], [1], [0, 0, 1, 1], [], []>} : vector<48x28xbf16>, vector<28x256xbf16>, vector<48x256xf32> -> vector<48x256xf32>
    %cst_67 = arith.constant dense<0.000000e+00> : vector<48x256xf32>
    %93 = tpu.matmul %9, %31, %cst_67 {dimension_numbers = #tpu.dot_dimension_numbers<[1], [0], [0], [1], [0, 0, 1, 1], [], []>} : vector<48x28xbf16>, vector<28x256xbf16>, vector<48x256xf32> -> vector<48x256xf32>
    %94 = arith.addf %92, %93 : vector<48x256xf32>
    %cst_68 = arith.constant dense<0.000000e+00> : vector<48x256xf32>
    %95 = tpu.matmul %15, %33, %cst_68 {dimension_numbers = #tpu.dot_dimension_numbers<[1], [0], [0], [1], [0, 0, 1, 1], [], []>} : vector<48x28xbf16>, vector<28x256xbf16>, vector<48x256xf32> -> vector<48x256xf32>
    %96 = arith.addf %94, %95 : vector<48x256xf32>
    %cst_69 = arith.constant dense<0.000000e+00> : vector<48x256xf32>
    %97 = tpu.matmul %21, %35, %cst_69 {dimension_numbers = #tpu.dot_dimension_numbers<[1], [0], [0], [1], [0, 0, 1, 1], [], []>} : vector<48x28xbf16>, vector<28x256xbf16>, vector<48x256xf32> -> vector<48x256xf32>
    %98 = arith.addf %96, %97 : vector<48x256xf32>
    %cst_70 = arith.constant dense<0.000000e+00> : vector<48x256xf32>
    %99 = tpu.matmul %27, %37, %cst_70 {dimension_numbers = #tpu.dot_dimension_numbers<[1], [0], [0], [1], [0, 0, 1, 1], [], []>} : vector<48x28xbf16>, vector<28x256xbf16>, vector<48x256xf32> -> vector<48x256xf32>
    %100 = arith.addf %98, %99 : vector<48x256xf32>
    %101 = arith.maximumf %91, %100 : vector<48x256xf32>
    %102 = vector.extract_strided_slice %101 {offsets = [0, 0], sizes = [48, 128], strides = [1, 1]} : vector<48x256xf32> to vector<48x128xf32>
    %103 = vector.extract_strided_slice %101 {offsets = [0, 128], sizes = [48, 128], strides = [1, 1]} : vector<48x256xf32> to vector<48x128xf32>
    %104 = arith.maximumf %102, %103 : vector<48x128xf32>
    %105 = vector.broadcast %56 : vector<1x128xf32> to vector<48x128xf32>
    %106 = arith.addf %104, %105 : vector<48x128xf32>
    %cst_71 = arith.constant 0.000000e+00 : f32
    %107 = vector.broadcast %cst_71 : f32 to vector<48x128xf32>
    %108 = arith.maximumf %106, %107 : vector<48x128xf32>
    %109 = vector.extract_strided_slice %82 {offsets = [0, 0], sizes = [32, 128], strides = [1, 1]} : vector<48x128xf32> to vector<32x128xf32>
    %110 = arith.truncf %109 : vector<32x128xf32> to vector<32x128xbf16>
    %cst_72 = arith.constant dense<0.000000e+00> : vector<32x256xf32>
    %111 = tpu.matmul %110, %39, %cst_72 {dimension_numbers = #tpu.dot_dimension_numbers<[1], [0], [0], [1], [0, 0, 1, 1], [], []>} : vector<32x128xbf16>, vector<128x256xbf16>, vector<32x256xf32> -> vector<32x256xf32>
    %112 = vector.extract_strided_slice %108 {offsets = [0, 0], sizes = [32, 128], strides = [1, 1]} : vector<48x128xf32> to vector<32x128xf32>
    %113 = arith.truncf %112 : vector<32x128xf32> to vector<32x128xbf16>
    %cst_73 = arith.constant dense<0.000000e+00> : vector<32x256xf32>
    %114 = tpu.matmul %113, %41, %cst_73 {dimension_numbers = #tpu.dot_dimension_numbers<[1], [0], [0], [1], [0, 0, 1, 1], [], []>} : vector<32x128xbf16>, vector<128x256xbf16>, vector<32x256xf32> -> vector<32x256xf32>
    %115 = arith.addf %111, %114 : vector<32x256xf32>
    %116 = vector.extract_strided_slice %82 {offsets = [8, 0], sizes = [32, 128], strides = [1, 1]} : vector<48x128xf32> to vector<32x128xf32>
    %117 = arith.truncf %116 : vector<32x128xf32> to vector<32x128xbf16>
    %cst_74 = arith.constant dense<0.000000e+00> : vector<32x256xf32>
    %118 = tpu.matmul %117, %43, %cst_74 {dimension_numbers = #tpu.dot_dimension_numbers<[1], [0], [0], [1], [0, 0, 1, 1], [], []>} : vector<32x128xbf16>, vector<128x256xbf16>, vector<32x256xf32> -> vector<32x256xf32>
    %119 = arith.addf %115, %118 : vector<32x256xf32>
    %120 = vector.extract_strided_slice %108 {offsets = [8, 0], sizes = [32, 128], strides = [1, 1]} : vector<48x128xf32> to vector<32x128xf32>
    %121 = arith.truncf %120 : vector<32x128xf32> to vector<32x128xbf16>
    %cst_75 = arith.constant dense<0.000000e+00> : vector<32x256xf32>
    %122 = tpu.matmul %121, %45, %cst_75 {dimension_numbers = #tpu.dot_dimension_numbers<[1], [0], [0], [1], [0, 0, 1, 1], [], []>} : vector<32x128xbf16>, vector<128x256xbf16>, vector<32x256xf32> -> vector<32x256xf32>
    %123 = arith.addf %119, %122 : vector<32x256xf32>
    %124 = vector.extract_strided_slice %82 {offsets = [16, 0], sizes = [32, 128], strides = [1, 1]} : vector<48x128xf32> to vector<32x128xf32>
    %125 = arith.truncf %124 : vector<32x128xf32> to vector<32x128xbf16>
    %cst_76 = arith.constant dense<0.000000e+00> : vector<32x256xf32>
    %126 = tpu.matmul %125, %47, %cst_76 {dimension_numbers = #tpu.dot_dimension_numbers<[1], [0], [0], [1], [0, 0, 1, 1], [], []>} : vector<32x128xbf16>, vector<128x256xbf16>, vector<32x256xf32> -> vector<32x256xf32>
    %127 = arith.addf %123, %126 : vector<32x256xf32>
    %128 = vector.extract_strided_slice %108 {offsets = [0, 0], sizes = [32, 128], strides = [1, 1]} : vector<48x128xf32> to vector<32x128xf32>
    %129 = arith.truncf %128 : vector<32x128xf32> to vector<32x128xbf16>
    %cst_77 = arith.constant dense<0.000000e+00> : vector<32x256xf32>
    %130 = tpu.matmul %129, %39, %cst_77 {dimension_numbers = #tpu.dot_dimension_numbers<[1], [0], [0], [1], [0, 0, 1, 1], [], []>} : vector<32x128xbf16>, vector<128x256xbf16>, vector<32x256xf32> -> vector<32x256xf32>
    %131 = vector.extract_strided_slice %82 {offsets = [8, 0], sizes = [32, 128], strides = [1, 1]} : vector<48x128xf32> to vector<32x128xf32>
    %132 = arith.truncf %131 : vector<32x128xf32> to vector<32x128xbf16>
    %cst_78 = arith.constant dense<0.000000e+00> : vector<32x256xf32>
    %133 = tpu.matmul %132, %41, %cst_78 {dimension_numbers = #tpu.dot_dimension_numbers<[1], [0], [0], [1], [0, 0, 1, 1], [], []>} : vector<32x128xbf16>, vector<128x256xbf16>, vector<32x256xf32> -> vector<32x256xf32>
    %134 = arith.addf %130, %133 : vector<32x256xf32>
    %135 = vector.extract_strided_slice %108 {offsets = [8, 0], sizes = [32, 128], strides = [1, 1]} : vector<48x128xf32> to vector<32x128xf32>
    %136 = arith.truncf %135 : vector<32x128xf32> to vector<32x128xbf16>
    %cst_79 = arith.constant dense<0.000000e+00> : vector<32x256xf32>
    %137 = tpu.matmul %136, %43, %cst_79 {dimension_numbers = #tpu.dot_dimension_numbers<[1], [0], [0], [1], [0, 0, 1, 1], [], []>} : vector<32x128xbf16>, vector<128x256xbf16>, vector<32x256xf32> -> vector<32x256xf32>
    %138 = arith.addf %134, %137 : vector<32x256xf32>
    %139 = vector.extract_strided_slice %82 {offsets = [16, 0], sizes = [32, 128], strides = [1, 1]} : vector<48x128xf32> to vector<32x128xf32>
    %140 = arith.truncf %139 : vector<32x128xf32> to vector<32x128xbf16>
    %cst_80 = arith.constant dense<0.000000e+00> : vector<32x256xf32>
    %141 = tpu.matmul %140, %45, %cst_80 {dimension_numbers = #tpu.dot_dimension_numbers<[1], [0], [0], [1], [0, 0, 1, 1], [], []>} : vector<32x128xbf16>, vector<128x256xbf16>, vector<32x256xf32> -> vector<32x256xf32>
    %142 = arith.addf %138, %141 : vector<32x256xf32>
    %143 = vector.extract_strided_slice %108 {offsets = [16, 0], sizes = [32, 128], strides = [1, 1]} : vector<48x128xf32> to vector<32x128xf32>
    %144 = arith.truncf %143 : vector<32x128xf32> to vector<32x128xbf16>
    %cst_81 = arith.constant dense<0.000000e+00> : vector<32x256xf32>
    %145 = tpu.matmul %144, %47, %cst_81 {dimension_numbers = #tpu.dot_dimension_numbers<[1], [0], [0], [1], [0, 0, 1, 1], [], []>} : vector<32x128xbf16>, vector<128x256xbf16>, vector<32x256xf32> -> vector<32x256xf32>
    %146 = arith.addf %142, %145 : vector<32x256xf32>
    %c0_82 = arith.constant 0 : index
    %c0_83 = arith.constant 0 : index
    %147 = vector.load %arg8[%c0_82, %c0_83] : memref<1x128xf32, #tpu.memory_space<vmem>>, vector<1x128xf32>
    %148 = arith.maximumf %127, %146 : vector<32x256xf32>
    %149 = vector.extract_strided_slice %148 {offsets = [0, 0], sizes = [32, 128], strides = [1, 1]} : vector<32x256xf32> to vector<32x128xf32>
    %150 = vector.extract_strided_slice %148 {offsets = [0, 128], sizes = [32, 128], strides = [1, 1]} : vector<32x256xf32> to vector<32x128xf32>
    %151 = arith.maximumf %149, %150 : vector<32x128xf32>
    %152 = vector.broadcast %147 : vector<1x128xf32> to vector<32x128xf32>
    %153 = arith.addf %151, %152 : vector<32x128xf32>
    %cst_84 = arith.constant 0.000000e+00 : f32
    %154 = vector.broadcast %cst_84 : f32 to vector<32x128xf32>
    %155 = arith.maximumf %153, %154 : vector<32x128xf32>
    %156 = vector.extract_strided_slice %155 {offsets = [0, 0], sizes = [8, 128], strides = [1, 1]} : vector<32x128xf32> to vector<8x128xf32>
    %157 = arith.truncf %156 : vector<8x128xf32> to vector<8x128xbf16>
    %cst_85 = arith.constant dense<0.000000e+00> : vector<8x64xf32>
    %158 = tpu.matmul %157, %49, %cst_85 {dimension_numbers = #tpu.dot_dimension_numbers<[1], [0], [0], [1], [0, 0, 1, 1], [], []>} : vector<8x128xbf16>, vector<128x64xbf16>, vector<8x64xf32> -> vector<8x64xf32>
    %159 = vector.extract_strided_slice %155 {offsets = [8, 0], sizes = [8, 128], strides = [1, 1]} : vector<32x128xf32> to vector<8x128xf32>
    %160 = arith.truncf %159 : vector<8x128xf32> to vector<8x128xbf16>
    %cst_86 = arith.constant dense<0.000000e+00> : vector<8x64xf32>
    %161 = tpu.matmul %160, %51, %cst_86 {dimension_numbers = #tpu.dot_dimension_numbers<[1], [0], [0], [1], [0, 0, 1, 1], [], []>} : vector<8x128xbf16>, vector<128x64xbf16>, vector<8x64xf32> -> vector<8x64xf32>
    %162 = arith.addf %158, %161 : vector<8x64xf32>
    %163 = vector.extract_strided_slice %155 {offsets = [16, 0], sizes = [8, 128], strides = [1, 1]} : vector<32x128xf32> to vector<8x128xf32>
    %164 = arith.truncf %163 : vector<8x128xf32> to vector<8x128xbf16>
    %cst_87 = arith.constant dense<0.000000e+00> : vector<8x64xf32>
    %165 = tpu.matmul %164, %53, %cst_87 {dimension_numbers = #tpu.dot_dimension_numbers<[1], [0], [0], [1], [0, 0, 1, 1], [], []>} : vector<8x128xbf16>, vector<128x64xbf16>, vector<8x64xf32> -> vector<8x64xf32>
    %166 = arith.addf %162, %165 : vector<8x64xf32>
    %167 = vector.extract_strided_slice %155 {offsets = [24, 0], sizes = [8, 128], strides = [1, 1]} : vector<32x128xf32> to vector<8x128xf32>
    %168 = arith.truncf %167 : vector<8x128xf32> to vector<8x128xbf16>
    %cst_88 = arith.constant dense<0.000000e+00> : vector<8x64xf32>
    %169 = tpu.matmul %168, %55, %cst_88 {dimension_numbers = #tpu.dot_dimension_numbers<[1], [0], [0], [1], [0, 0, 1, 1], [], []>} : vector<8x128xbf16>, vector<128x64xbf16>, vector<8x64xf32> -> vector<8x64xf32>
    %170 = arith.addf %166, %169 : vector<8x64xf32>
    %c0_89 = arith.constant 0 : index
    %c0_90 = arith.constant 0 : index
    %171 = vector.load %arg10[%c0_89, %c0_90] : memref<1x64xf32, #tpu.memory_space<vmem>>, vector<1x64xf32>
    %172 = vector.broadcast %171 : vector<1x64xf32> to vector<8x64xf32>
    %173 = arith.addf %170, %172 : vector<8x64xf32>
    %cst_91 = arith.constant 0.000000e+00 : f32
    %174 = vector.broadcast %cst_91 : f32 to vector<8x64xf32>
    %175 = arith.maximumf %173, %174 : vector<8x64xf32>
    %176 = arith.truncf %175 : vector<8x64xf32> to vector<8x64xbf16>
    %c0_92 = arith.constant 0 : index
    %c0_93 = arith.constant 0 : index
    %177 = vector.load %arg11[%c0_92, %c0_93] : memref<64x128xbf16, #tpu.memory_space<vmem>>, vector<64x128xbf16>
    %cst_94 = arith.constant dense<0.000000e+00> : vector<8x128xf32>
    %178 = tpu.matmul %176, %177, %cst_94 {dimension_numbers = #tpu.dot_dimension_numbers<[1], [0], [0], [1], [0, 0, 1, 1], [], []>} : vector<8x64xbf16>, vector<64x128xbf16>, vector<8x128xf32> -> vector<8x128xf32>
    %c0_95 = arith.constant 0 : index
    %c0_96 = arith.constant 0 : index
    %179 = vector.load %arg12[%c0_95, %c0_96] : memref<1x128xf32, #tpu.memory_space<vmem>>, vector<1x128xf32>
    %180 = vector.broadcast %179 : vector<1x128xf32> to vector<8x128xf32>
    %181 = arith.addf %178, %180 : vector<8x128xf32>
    %cst_97 = arith.constant 0.000000e+00 : f32
    %182 = vector.broadcast %cst_97 : f32 to vector<8x128xf32>
    %183 = arith.maximumf %181, %182 : vector<8x128xf32>
    %184 = tpu.iota {dimensions = array<i32: 1>} : vector<8x128xi32>
    %c10_i32 = arith.constant 10 : i32
    %185 = vector.broadcast %c10_i32 : i32 to vector<8x128xi32>
    %186 = arith.cmpi slt, %184, %185 : vector<8x128xi32>
    %cst_98 = arith.constant -1.000000e+30 : f32
    %187 = vector.broadcast %cst_98 : f32 to vector<8x128xf32>
    %188 = arith.select %186, %183, %187 : vector<8x128xi1>, vector<8x128xf32>
    %cst_99 = arith.constant dense<0xFF800000> : vector<8xf32>
    %189 = vector.multi_reduction <maximumf>, %188, %cst_99 [1] : vector<8x128xf32> to vector<8xf32>
    %190 = vector.shape_cast %189 : vector<8xf32> to vector<8x1xf32>
    %191 = vector.broadcast %190 : vector<8x1xf32> to vector<8x128xf32>
    %192 = arith.subf %188, %191 : vector<8x128xf32>
    %193 = math.exp %192 : vector<8x128xf32>
    %cst_100 = arith.constant dense<0.000000e+00> : vector<8xf32>
    %194 = vector.multi_reduction <add>, %193, %cst_100 [1] : vector<8x128xf32> to vector<8xf32>
    %195 = vector.shape_cast %194 : vector<8xf32> to vector<8x1xf32>
    %196 = tpu.reciprocal %195 {approx = true} : vector<8x1xf32> -> vector<8x1xf32>
    %197 = vector.broadcast %196 : vector<8x1xf32> to vector<8x128xf32>
    %198 = arith.mulf %193, %197 : vector<8x128xf32>
    %c0_101 = arith.constant 0 : index
    %c0_102 = arith.constant 0 : index
    %199 = vector.load %arg13[%c0_101, %c0_102] : memref<8x128xf32, #tpu.memory_space<vmem>>, vector<8x128xf32>
    tpu.vector_store %arg13[%c0_101, %c0_102], %198 {strides = array<i32>} : memref<8x128xf32, #tpu.memory_space<vmem>>, vector<8x128xf32>,
    return
  }
  func.func @transform_0(%arg0: i32) -> (i32, i32, i32) {
    %c0_i32 = arith.constant 0 : i32
    %c0_i32_0 = arith.constant 0 : i32
    %c0_i32_1 = arith.constant 0 : i32
    return %c0_i32, %arg0, %c0_i32_0 : i32, i32, i32
  }
  func.func @transform_1(%arg0: i32) -> (i32, i32, i32) {
    %c0_i32 = arith.constant 0 : i32
    %c0_i32_0 = arith.constant 0 : i32
    %c0_i32_1 = arith.constant 0 : i32
    return %c0_i32, %arg0, %c0_i32_0 : i32, i32, i32
  }
  func.func @transform_2(%arg0: i32) -> (i32, i32, i32) {
    %c0_i32 = arith.constant 0 : i32
    %c0_i32_0 = arith.constant 0 : i32
    %c0_i32_1 = arith.constant 0 : i32
    return %c0_i32, %arg0, %c0_i32_0 : i32, i32, i32
  }
  func.func @transform_3(%arg0: i32) -> (i32, i32, i32) {
    %c0_i32 = arith.constant 0 : i32
    %c0_i32_0 = arith.constant 0 : i32
    %c0_i32_1 = arith.constant 0 : i32
    return %c0_i32, %arg0, %c0_i32_0 : i32, i32, i32
  }
  func.func @transform_4(%arg0: i32) -> (i32, i32, i32) {
    %c0_i32 = arith.constant 0 : i32
    %c0_i32_0 = arith.constant 0 : i32
    %c0_i32_1 = arith.constant 0 : i32
    %c0_i32_2 = arith.constant 0 : i32
    return %c0_i32, %c0_i32_0, %c0_i32_1 : i32, i32, i32
  }
  func.func @transform_5(%arg0: i32) -> (i32, i32) {
    %c0_i32 = arith.constant 0 : i32
    %c0_i32_0 = arith.constant 0 : i32
    %c0_i32_1 = arith.constant 0 : i32
    return %c0_i32, %c0_i32_0 : i32, i32
  }
  func.func @transform_6(%arg0: i32) -> (i32, i32, i32) {
    %c0_i32 = arith.constant 0 : i32
    %c0_i32_0 = arith.constant 0 : i32
    %c0_i32_1 = arith.constant 0 : i32
    %c0_i32_2 = arith.constant 0 : i32
    return %c0_i32, %c0_i32_0, %c0_i32_1 : i32, i32, i32
  }
  func.func @transform_7(%arg0: i32) -> (i32, i32) {
    %c0_i32 = arith.constant 0 : i32
    %c0_i32_0 = arith.constant 0 : i32
    %c0_i32_1 = arith.constant 0 : i32
    return %c0_i32, %c0_i32_0 : i32, i32
  }
  func.func @transform_8(%arg0: i32) -> (i32, i32, i32) {
    %c0_i32 = arith.constant 0 : i32
    %c0_i32_0 = arith.constant 0 : i32
    %c0_i32_1 = arith.constant 0 : i32
    %c0_i32_2 = arith.constant 0 : i32
    return %c0_i32, %c0_i32_0, %c0_i32_1 : i32, i32, i32
  }
  func.func @transform_9(%arg0: i32) -> (i32, i32) {
    %c0_i32 = arith.constant 0 : i32
    %c0_i32_0 = arith.constant 0 : i32
    %c0_i32_1 = arith.constant 0 : i32
    return %c0_i32, %c0_i32_0 : i32, i32
  }
  func.func @transform_10(%arg0: i32) -> (i32, i32) {
    %c0_i32 = arith.constant 0 : i32
    %c0_i32_0 = arith.constant 0 : i32
    %c0_i32_1 = arith.constant 0 : i32
    return %c0_i32, %c0_i32_0 : i32, i32
  }
  func.func @transform_11(%arg0: i32) -> (i32, i32) {
    %c0_i32 = arith.constant 0 : i32
    %c0_i32_0 = arith.constant 0 : i32
    %c0_i32_1 = arith.constant 0 : i32
    return %c0_i32, %c0_i32_0 : i32, i32
  }
  func.func @transform_12(%arg0: i32) -> (i32, i32) {
    %c0_i32 = arith.constant 0 : i32
    %c0_i32_0 = arith.constant 0 : i32
    return %arg0, %c0_i32 : i32, i32
  }
}

</mosaic_0001>

<llo_original>
// kernel: convnet_forward.1
$region0: #{convnet_forward.1}
  #allocation0 [shape = 'u32[]', space=smem, size = 0x4, offset = 0x4, fixed_abs, tag = 'smem constant byte address 0x4 - core index']
  #allocation1 [shape = 'u32[144,128]{1,0:T(1,128)}', space=vmem, size = 0x12000, scoped, tag = 'internal scratch']
  %s0 = inlined_call_operand.vmem [shape: f32[7,8,28], index: 0, kind: input, shape index: {}]
  %s1 = inlined_call_operand.vmem [shape: f32[7,8,28], index: 1, kind: input, shape index: {}]
  %s2 = inlined_call_operand.vmem [shape: f32[7,8,28], index: 2, kind: input, shape index: {}]
  %s3 = inlined_call_operand.vmem [shape: f32[7,8,28], index: 3, kind: input, shape index: {}]
  %s4 = inlined_call_operand.hbm [shape: bf16[5,28,256], index: 4, kind: input, shape index: {}]
  %s5 = inlined_call_operand.vmem [shape: f32[1,128], index: 5, kind: input, shape index: {}]
  %s6 = inlined_call_operand.vmem [shape: bf16[5,128,256], index: 6, kind: input, shape index: {}]
  %s7 = inlined_call_operand.vmem [shape: f32[1,128], index: 7, kind: input, shape index: {}]
  %s8 = inlined_call_operand.vmem [shape: bf16[4,128,64], index: 8, kind: input, shape index: {}]
  %s9 = inlined_call_operand.vmem [shape: f32[1,64], index: 9, kind: input, shape index: {}]
  %s10 = inlined_call_operand.hbm [shape: bf16[64,128], index: 10, kind: input, shape index: {}]
  %s11 = inlined_call_operand.vmem [shape: f32[1,128], index: 11, kind: input, shape index: {}]
  %s12 = inlined_call_operand.vmem [shape: f32[8,128], index: 12, kind: output, shape index: {}]
  %s13 = sld [smem:[#allocation0]]
  $region66: #{convnet_forward.1} parent=0
    _
  %s15 = ssub.s32 1, %s13
  %s16 = scalar_select 0, %s15, %s13
  $region1: #{convnet_forward.1} parent=0
    #allocation2 [shape = 'u8[81920]{0}', space=vmem, size = 0x14000, scoped, tag = 'input window, operand 4, single buffered']
    #allocation3 [shape = 's32[1]{0}', space=sflag, size = 0x4, scoped, tag = 'scoped memory for convnet_forward.1']
    #allocation4 [shape = 'u8[16384]{0}', space=vmem, size = 0x4000, scoped, tag = 'input window, operand 10, single buffered']
    #allocation5 [shape = 's32[1]{0}', space=sflag, size = 0x4, scoped, tag = 'scoped memory for convnet_forward.1']
    %17 = vsyncpa [#allocation3], 0
    %18 = vsyncpa [#allocation5], 0
    // Predicated region
    $region2: #{convnet_forward.1} parent=1 // pred_check
      _
    $region3: #{convnet_forward.1} parent=1 // pred_check_branch
      %20 = sbr.rel (0) target = $region5
    $region4: #{convnet_forward.1} parent=1 // pred_region
      _
    $region5: #{convnet_forward.1} parent=1 // pred_fallthru
      _
    // Predicated region
    $region6: #{convnet_forward.1} parent=1 // pred_check
      _
    $region7: #{convnet_forward.1} parent=1 // pred_check_branch
      %22 = sbr.rel (0) target = $region9
    $region8: #{convnet_forward.1} parent=1 // pred_region
      _
    $region9: #{convnet_forward.1} parent=1 // pred_fallthru
      _
    // Predicated region
    $region10: #{convnet_forward.1} parent=1 // pred_check
      _
    $region11: #{convnet_forward.1} parent=1 // pred_check_branch
      %24 = sbr.rel (0) target = $region13
    $region12: #{convnet_forward.1} parent=1 // pred_region
      _
    $region13: #{convnet_forward.1} parent=1 // pred_fallthru
      _
    // Predicated region
    $region14: #{convnet_forward.1} parent=1 // pred_check
      _
    $region15: #{convnet_forward.1} parent=1 // pred_check_branch
      %26 = sbr.rel (0) target = $region17
    $region16: #{convnet_forward.1} parent=1 // pred_region
      _
    $region17: #{convnet_forward.1} parent=1 // pred_fallthru
      _
    // Predicated region
    $region18: #{convnet_forward.1} parent=1 // pred_check
      _
    $region19: #{convnet_forward.1} parent=1 // pred_check_branch
      %28 = sbr.rel (0) target = $region21
    $region20: #{convnet_forward.1} parent=1 // pred_region
      %s30 = ssub.s32 2560, 2560
      %31 = vsyncadd [#allocation3], %s30
      %s32 = sshll.u32 [#allocation2], 4
      %s33 = int_to_ptr.vmem [resolvable:$true] %s32
      %38 = dma.hbm_to_vmem [thread:$0]  %s4, 2560, %s33, [#allocation3], 128, 128, 8
    $region21: #{convnet_forward.1} parent=1 // pred_fallthru
      _
    // Predicated region
    $region22: #{convnet_forward.1} parent=1 // pred_check
      _
    $region23: #{convnet_forward.1} parent=1 // pred_check_branch
      %40 = sbr.rel (0) target = $region25
    $region24: #{convnet_forward.1} parent=1 // pred_region
      _
    $region25: #{convnet_forward.1} parent=1 // pred_fallthru
      _
    // Predicated region
    $region26: #{convnet_forward.1} parent=1 // pred_check
      _
    $region27: #{convnet_forward.1} parent=1 // pred_check_branch
      %42 = sbr.rel (0) target = $region29
    $region28: #{convnet_forward.1} parent=1 // pred_region
      _
    $region29: #{convnet_forward.1} parent=1 // pred_fallthru
      _
    // Predicated region
    $region30: #{convnet_forward.1} parent=1 // pred_check
      _
    $region31: #{convnet_forward.1} parent=1 // pred_check_branch
      %44 = sbr.rel (0) target = $region33
    $region32: #{convnet_forward.1} parent=1 // pred_region
      _
    $region33: #{convnet_forward.1} parent=1 // pred_fallthru
      _
    // Predicated region
    $region34: #{convnet_forward.1} parent=1 // pred_check
      _
    $region35: #{convnet_forward.1} parent=1 // pred_check_branch
      %46 = sbr.rel (0) target = $region37
    $region36: #{convnet_forward.1} parent=1 // pred_region
      _
    $region37: #{convnet_forward.1} parent=1 // pred_fallthru
      _
    // Predicated region
    $region38: #{convnet_forward.1} parent=1 // pred_check
      _
    $region39: #{convnet_forward.1} parent=1 // pred_check_branch
      %48 = sbr.rel (0) target = $region41
    $region40: #{convnet_forward.1} parent=1 // pred_region
      _
    $region41: #{convnet_forward.1} parent=1 // pred_fallthru
      _
    // Predicated region
    $region42: #{convnet_forward.1} parent=1 // pred_check
      _
    $region43: #{convnet_forward.1} parent=1 // pred_check_branch
      %50 = sbr.rel (0) target = $region45
    $region44: #{convnet_forward.1} parent=1 // pred_region
      %s52 = ssub.s32 512, 512
      %53 = vsyncadd [#allocation5], %s52
      %s54 = sshll.u32 [#allocation4], 4
      %s55 = int_to_ptr.vmem [resolvable:$true] %s54
      %60 = dma.hbm_to_vmem [thread:$0]  %s10, 512, %s55, [#allocation5], 64, 64, 4
    $region45: #{convnet_forward.1} parent=1 // pred_fallthru
      _
    // Predicated region
    $region46: #{convnet_forward.1} parent=1 // pred_check
      _
    $region47: #{convnet_forward.1} parent=1 // pred_check_branch
      %62 = sbr.rel (0) target = $region49
    $region48: #{convnet_forward.1} parent=1 // pred_region
      _
    $region49: #{convnet_forward.1} parent=1 // pred_fallthru
      _
    // Predicated region
    $region50: #{convnet_forward.1} parent=1 // pred_check
      _
    $region51: #{convnet_forward.1} parent=1 // pred_check_branch
      %64 = sbr.rel (0) target = $region53
    $region52: #{convnet_forward.1} parent=1 // pred_region
      %65 = dma.done [#allocation3], 2560
    $region53: #{convnet_forward.1} parent=1 // pred_fallthru
      _
    // Predicated region
    $region54: #{convnet_forward.1} parent=1 // pred_check
      _
    $region55: #{convnet_forward.1} parent=1 // pred_check_branch
      %67 = sbr.rel (0) target = $region57
    $region56: #{convnet_forward.1} parent=1 // pred_region
      %68 = dma.done [#allocation5], 512
    $region57: #{convnet_forward.1} parent=1 // pred_fallthru
      _
    %v70 = vld [vmem:[%s0] sm:$0xff]
    %v71 = vld [vmem:[%s0 + $0x8] sm:$0xff]
    %v72 = vld [vmem:[%s0 + $0x10] sm:$0xff]
    %v73 = vld [vmem:[%s0 + $0x18] sm:$0xff]
    %v74 = vld [vmem:[%s0 + $0x20] sm:$0xff]
    %v75 = vld [vmem:[%s0 + $0x28] sm:$0xff]
    %v76 = vld [vmem:[%s0 + $0x30] sm:$0xff]
    %v77 = vld [vmem:[%s1] sm:$0xff]
    %v78 = vld [vmem:[%s1 + $0x8] sm:$0xff]
    %v79 = vld [vmem:[%s1 + $0x10] sm:$0xff]
    %v80 = vld [vmem:[%s1 + $0x18] sm:$0xff]
    %v81 = vld [vmem:[%s1 + $0x20] sm:$0xff]
    %v82 = vld [vmem:[%s1 + $0x28] sm:$0xff]
    %v83 = vld [vmem:[%s1 + $0x30] sm:$0xff]
    %v84 = vld [vmem:[%s2] sm:$0xff]
    %v85 = vld [vmem:[%s2 + $0x8] sm:$0xff]
    %v86 = vld [vmem:[%s2 + $0x10] sm:$0xff]
    %v87 = vld [vmem:[%s2 + $0x18] sm:$0xff]
    %v88 = vld [vmem:[%s2 + $0x20] sm:$0xff]
    %v89 = vld [vmem:[%s2 + $0x28] sm:$0xff]
    %v90 = vld [vmem:[%s2 + $0x30] sm:$0xff]
    %v91 = vld [vmem:[%s3] sm:$0xff]
    %v92 = vld [vmem:[%s3 + $0x8] sm:$0xff]
    %v93 = vld [vmem:[%s3 + $0x10] sm:$0xff]
    %v94 = vld [vmem:[%s3 + $0x18] sm:$0xff]
    %v95 = vld [vmem:[%s3 + $0x20] sm:$0xff]
    %v96 = vld [vmem:[%s3 + $0x28] sm:$0xff]
    %v97 = vld [vmem:[%s3 + $0x30] sm:$0xff]
    %v98 = vpack.c.bf16 %v71, %v70
    %v99 = vpack.c.bf16 %v73, %v72
    %v100 = vpack.c.bf16 %v75, %v74
    %v101 = vpack.c.bf16 %v72, %v71
    %v102 = vpack.c.bf16 %v74, %v73
    %v103 = vpack.c.bf16 %v76, %v75
    %v104 = vpack.c.bf16 %v78, %v77
    %v105 = vpack.c.bf16 %v80, %v79
    %v106 = vpack.c.bf16 %v82, %v81
    %v107 = vpack.c.bf16 %v79, %v78
    %v108 = vpack.c.bf16 %v81, %v80
    %v109 = vpack.c.bf16 %v83, %v82
    %v110 = vpack.c.bf16 %v85, %v84
    %v111 = vpack.c.bf16 %v87, %v86
    %v112 = vpack.c.bf16 %v89, %v88
    %v113 = vpack.c.bf16 %v86, %v85
    %v114 = vpack.c.bf16 %v88, %v87
    %v115 = vpack.c.bf16 %v90, %v89
    %v116 = vpack.c.bf16 %v92, %v91
    %v117 = vpack.c.bf16 %v94, %v93
    %v118 = vpack.c.bf16 %v96, %v95
    %v119 = vpack.c.bf16 %v93, %v92
    %v120 = vpack.c.bf16 %v95, %v94
    %v121 = vpack.c.bf16 %v97, %v96
    %v122 = vld [vmem:[#allocation2] sm:$0xff]
    %v123 = vld [vmem:[#allocation2 + $0x8] sm:$0xff]
    %v124 = vld [vmem:[#allocation2 + $0x10] sm:$0xff]
    %v125 = vld [vmem:[#allocation2 + $0x18] sm:$0x33]
    %s126 = scalar_lea.vmem [#allocation2], 32
    %v127 = vld [vmem:[%s126] sm:$0xff]
    %v128 = vld [vmem:[%s126 + $0x8] sm:$0xff]
    %v129 = vld [vmem:[%s126 + $0x10] sm:$0xff]
    %v130 = vld [vmem:[%s126 + $0x18] sm:$0x33]
    %s131 = scalar_lea.vmem [#allocation2], 64
    %v132 = vld [vmem:[%s131] sm:$0xff]
    %v133 = vld [vmem:[%s131 + $0x8] sm:$0xff]
    %v134 = vld [vmem:[%s131 + $0x10] sm:$0xff]
    %v135 = vld [vmem:[%s131 + $0x18] sm:$0x33]
    %s136 = scalar_lea.vmem [#allocation2], 96
    %v137 = vld [vmem:[%s136] sm:$0xff]
    %v138 = vld [vmem:[%s136 + $0x8] sm:$0xff]
    %v139 = vld [vmem:[%s136 + $0x10] sm:$0xff]
    %v140 = vld [vmem:[%s136 + $0x18] sm:$0x33]
    %s141 = scalar_lea.vmem [#allocation2], 128
    %v142 = vld [vmem:[%s141] sm:$0xff]
    %v143 = vld [vmem:[%s141 + $0x8] sm:$0xff]
    %v144 = vld [vmem:[%s141 + $0x10] sm:$0xff]
    %v145 = vld [vmem:[%s141 + $0x18] sm:$0x33]
    %v146 = vld [vmem:[%s6] sm:$0xff]
    %v147 = vld [vmem:[%s6 + $0x8] sm:$0xff]
    %v148 = vld [vmem:[%s6 + $0x10] sm:$0xff]
    %v149 = vld [vmem:[%s6 + $0x18] sm:$0xff]
    %v150 = vld [vmem:[%s6 + $0x20] sm:$0xff]
    %v151 = vld [vmem:[%s6 + $0x28] sm:$0xff]
    %v152 = vld [vmem:[%s6 + $0x30] sm:$0xff]
    %v153 = vld [vmem:[%s6 + $0x38] sm:$0xff]
    %v154 = vld [vmem:[%s6 + $0x40] sm:$0xff]
    %v155 = vld [vmem:[%s6 + $0x48] sm:$0xff]
    %v156 = vld [vmem:[%s6 + $0x50] sm:$0xff]
    %v157 = vld [vmem:[%s6 + $0x58] sm:$0xff]
    %v158 = vld [vmem:[%s6 + $0x60] sm:$0xff]
    %v159 = vld [vmem:[%s6 + $0x68] sm:$0xff]
    %v160 = vld [vmem:[%s6 + $0x70] sm:$0xff]
    %v161 = vld [vmem:[%s6 + $0x78] sm:$0xff]
    %s162 = scalar_lea.vmem %s6, 128
    %v163 = vld [vmem:[%s162] sm:$0xff]
    %v164 = vld [vmem:[%s162 + $0x8] sm:$0xff]
    %v165 = vld [vmem:[%s162 + $0x10] sm:$0xff]
    %v166 = vld [vmem:[%s162 + $0x18] sm:$0xff]
    %v167 = vld [vmem:[%s162 + $0x20] sm:$0xff]
    %v168 = vld [vmem:[%s162 + $0x28] sm:$0xff]
    %v169 = vld [vmem:[%s162 + $0x30] sm:$0xff]
    %v170 = vld [vmem:[%s162 + $0x38] sm:$0xff]
    %v171 = vld [vmem:[%s162 + $0x40] sm:$0xff]
    %v172 = vld [vmem:[%s162 + $0x48] sm:$0xff]
    %v173 = vld [vmem:[%s162 + $0x50] sm:$0xff]
    %v174 = vld [vmem:[%s162 + $0x58] sm:$0xff]
    %v175 = vld [vmem:[%s162 + $0x60] sm:$0xff]
    %v176 = vld [vmem:[%s162 + $0x68] sm:$0xff]
    %v177 = vld [vmem:[%s162 + $0x70] sm:$0xff]
    %v178 = vld [vmem:[%s162 + $0x78] sm:$0xff]
    %s179 = scalar_lea.vmem %s6, 256
    %v180 = vld [vmem:[%s179] sm:$0xff]
    %v181 = vld [vmem:[%s179 + $0x8] sm:$0xff]
    %v182 = vld [vmem:[%s179 + $0x10] sm:$0xff]
    %v183 = vld [vmem:[%s179 + $0x18] sm:$0xff]
    %v184 = vld [vmem:[%s179 + $0x20] sm:$0xff]
    %v185 = vld [vmem:[%s179 + $0x28] sm:$0xff]
    %v186 = vld [vmem:[%s179 + $0x30] sm:$0xff]
    %v187 = vld [vmem:[%s179 + $0x38] sm:$0xff]
    %v188 = vld [vmem:[%s179 + $0x40] sm:$0xff]
    %v189 = vld [vmem:[%s179 + $0x48] sm:$0xff]
    %v190 = vld [vmem:[%s179 + $0x50] sm:$0xff]
    %v191 = vld [vmem:[%s179 + $0x58] sm:$0xff]
    %v192 = vld [vmem:[%s179 + $0x60] sm:$0xff]
    %v193 = vld [vmem:[%s179 + $0x68] sm:$0xff]
    %v194 = vld [vmem:[%s179 + $0x70] sm:$0xff]
    %v195 = vld [vmem:[%s179 + $0x78] sm:$0xff]
    %s196 = scalar_lea.vmem %s6, 384
    %v197 = vld [vmem:[%s196] sm:$0xff]
    %v198 = vld [vmem:[%s196 + $0x8] sm:$0xff]
    %v199 = vld [vmem:[%s196 + $0x10] sm:$0xff]
    %v200 = vld [vmem:[%s196 + $0x18] sm:$0xff]
    %v201 = vld [vmem:[%s196 + $0x20] sm:$0xff]
    %v202 = vld [vmem:[%s196 + $0x28] sm:$0xff]
    %v203 = vld [vmem:[%s196 + $0x30] sm:$0xff]
    %v204 = vld [vmem:[%s196 + $0x38] sm:$0xff]
    %v205 = vld [vmem:[%s196 + $0x40] sm:$0xff]
    %v206 = vld [vmem:[%s196 + $0x48] sm:$0xff]
    %v207 = vld [vmem:[%s196 + $0x50] sm:$0xff]
    %v208 = vld [vmem:[%s196 + $0x58] sm:$0xff]
    %v209 = vld [vmem:[%s196 + $0x60] sm:$0xff]
    %v210 = vld [vmem:[%s196 + $0x68] sm:$0xff]
    %v211 = vld [vmem:[%s196 + $0x70] sm:$0xff]
    %v212 = vld [vmem:[%s196 + $0x78] sm:$0xff]
    %s213 = scalar_lea.vmem %s6, 512
    %v214 = vld [vmem:[%s213] sm:$0xff]
    %v215 = vld [vmem:[%s213 + $0x8] sm:$0xff]
    %v216 = vld [vmem:[%s213 + $0x10] sm:$0xff]
    %v217 = vld [vmem:[%s213 + $0x18] sm:$0xff]
    %v218 = vld [vmem:[%s213 + $0x20] sm:$0xff]
    %v219 = vld [vmem:[%s213 + $0x28] sm:$0xff]
    %v220 = vld [vmem:[%s213 + $0x30] sm:$0xff]
    %v221 = vld [vmem:[%s213 + $0x38] sm:$0xff]
    %v222 = vld [vmem:[%s213 + $0x40] sm:$0xff]
    %v223 = vld [vmem:[%s213 + $0x48] sm:$0xff]
    %v224 = vld [vmem:[%s213 + $0x50] sm:$0xff]
    %v225 = vld [vmem:[%s213 + $0x58] sm:$0xff]
    %v226 = vld [vmem:[%s213 + $0x60] sm:$0xff]
    %v227 = vld [vmem:[%s213 + $0x68] sm:$0xff]
    %v228 = vld [vmem:[%s213 + $0x70] sm:$0xff]
    %v229 = vld [vmem:[%s213 + $0x78] sm:$0xff]
    %v230 = vld [vmem:[%s8] sm:$0xf]
    %v231 = vld [vmem:[%s8 + $0x4] sm:$0xf]
    %v232 = vld [vmem:[%s8 + $0x8] sm:$0xf]
    %v233 = vld [vmem:[%s8 + $0xc] sm:$0xf]
    %v234 = vld [vmem:[%s8 + $0x10] sm:$0xf]
    %v235 = vld [vmem:[%s8 + $0x14] sm:$0xf]
    %v236 = vld [vmem:[%s8 + $0x18] sm:$0xf]
    %v237 = vld [vmem:[%s8 + $0x1c] sm:$0xf]
    %v238 = vld [vmem:[%s8 + $0x20] sm:$0xf]
    %v239 = vld [vmem:[%s8 + $0x24] sm:$0xf]
    %v240 = vld [vmem:[%s8 + $0x28] sm:$0xf]
    %v241 = vld [vmem:[%s8 + $0x2c] sm:$0xf]
    %v242 = vld [vmem:[%s8 + $0x30] sm:$0xf]
    %v243 = vld [vmem:[%s8 + $0x34] sm:$0xf]
    %v244 = vld [vmem:[%s8 + $0x38] sm:$0xf]
    %v245 = vld [vmem:[%s8 + $0x3c] sm:$0xf]
    %s246 = scalar_lea.vmem %s8, 64
    %v247 = vld [vmem:[%s246] sm:$0xf]
    %v248 = vld [vmem:[%s246 + $0x4] sm:$0xf]
    %v249 = vld [vmem:[%s246 + $0x8] sm:$0xf]
    %v250 = vld [vmem:[%s246 + $0xc] sm:$0xf]
    %v251 = vld [vmem:[%s246 + $0x10] sm:$0xf]
    %v252 = vld [vmem:[%s246 + $0x14] sm:$0xf]
    %v253 = vld [vmem:[%s246 + $0x18] sm:$0xf]
    %v254 = vld [vmem:[%s246 + $0x1c] sm:$0xf]
    %v255 = vld [vmem:[%s246 + $0x20] sm:$0xf]
    %v256 = vld [vmem:[%s246 + $0x24] sm:$0xf]
    %v257 = vld [vmem:[%s246 + $0x28] sm:$0xf]
    %v258 = vld [vmem:[%s246 + $0x2c] sm:$0xf]
    %v259 = vld [vmem:[%s246 + $0x30] sm:$0xf]
    %v260 = vld [vmem:[%s246 + $0x34] sm:$0xf]
    %v261 = vld [vmem:[%s246 + $0x38] sm:$0xf]
    %v262 = vld [vmem:[%s246 + $0x3c] sm:$0xf]
    %s263 = scalar_lea.vmem %s8, 128
    %v264 = vld [vmem:[%s263] sm:$0xf]
    %v265 = vld [vmem:[%s263 + $0x4] sm:$0xf]
    %v266 = vld [vmem:[%s263 + $0x8] sm:$0xf]
    %v267 = vld [vmem:[%s263 + $0xc] sm:$0xf]
    %v268 = vld [vmem:[%s263 + $0x10] sm:$0xf]
    %v269 = vld [vmem:[%s263 + $0x14] sm:$0xf]
    %v270 = vld [vmem:[%s263 + $0x18] sm:$0xf]
    %v271 = vld [vmem:[%s263 + $0x1c] sm:$0xf]
    %v272 = vld [vmem:[%s263 + $0x20] sm:$0xf]
    %v273 = vld [vmem:[%s263 + $0x24] sm:$0xf]
    %v274 = vld [vmem:[%s263 + $0x28] sm:$0xf]
    %v275 = vld [vmem:[%s263 + $0x2c] sm:$0xf]
    %v276 = vld [vmem:[%s263 + $0x30] sm:$0xf]
    %v277 = vld [vmem:[%s263 + $0x34] sm:$0xf]
    %v278 = vld [vmem:[%s263 + $0x38] sm:$0xf]
    %v279 = vld [vmem:[%s263 + $0x3c] sm:$0xf]
    %s280 = scalar_lea.vmem %s8, 192
    %v281 = vld [vmem:[%s280] sm:$0xf]
    %v282 = vld [vmem:[%s280 + $0x4] sm:$0xf]
    %v283 = vld [vmem:[%s280 + $0x8] sm:$0xf]
    %v284 = vld [vmem:[%s280 + $0xc] sm:$0xf]
    %v285 = vld [vmem:[%s280 + $0x10] sm:$0xf]
    %v286 = vld [vmem:[%s280 + $0x14] sm:$0xf]
    %v287 = vld [vmem:[%s280 + $0x18] sm:$0xf]
    %v288 = vld [vmem:[%s280 + $0x1c] sm:$0xf]
    %v289 = vld [vmem:[%s280 + $0x20] sm:$0xf]
    %v290 = vld [vmem:[%s280 + $0x24] sm:$0xf]
    %v291 = vld [vmem:[%s280 + $0x28] sm:$0xf]
    %v292 = vld [vmem:[%s280 + $0x2c] sm:$0xf]
    %v293 = vld [vmem:[%s280 + $0x30] sm:$0xf]
    %v294 = vld [vmem:[%s280 + $0x34] sm:$0xf]
    %v295 = vld [vmem:[%s280 + $0x38] sm:$0xf]
    %v296 = vld [vmem:[%s280 + $0x3c] sm:$0xf]
    %v297 = vld [vmem:[%s5] sm:$0x1]
    %v302 = vunpack.c.l.b16 %v127
    %v303 = vunpack.c.h.b16 %v127
    %v304 = vunpack.c.l.b16 %v128
    %v305 = vunpack.c.h.b16 %v128
    %v306 = vunpack.c.l.b16 %v129
    %v307 = vunpack.c.h.b16 %v129
    %v308 = vunpack.c.l.b16 %v130
    %v309 = vunpack.c.h.b16 %v130
    %v310 = vpack.c.b16 %v304, %v302
    %v311 = vpack.c.b16 %v305, %v303
    %v312 = vpack.c.b16 %v308, %v306
    %v313 = vpack.c.b16 %v309, %v307
    %vm316 = vcmask 228352
    %v318 = vsel %vm316, %v104, 0
    %v321 = vsel %vm316, %v105, 0
    %v324 = vsel %vm316, %v106, 0
    %vm326 = vcmask 1045504
    %v328 = vsel %vm326, %v312, 0
    %v331 = vsel %vm326, %v313, 0
    %333 = vmatprep.subr.bf16.mxu0 0
    %334 = vmatpush1.bf16.msra.mxu0 0
    %335 = vmatprep.subr.bf16.mxu0 0
    %336 = vmatpush1.bf16.msra.mxu0 0
    %337 = vmatprep.subr.bf16.mxu0 0
    %338 = vmatpush1.bf16.msra.mxu0 0
    %339 = vmatprep.subr.bf16.mxu0 0
    %340 = vmatpush1.bf16.msra.mxu0 0
    %341 = vmatprep.subr.bf16.mxu0 0
    %342 = vmatpush1.bf16.msra.mxu0 0
    %343 = vmatprep.subr.bf16.mxu0 0
    %344 = vmatpush1.bf16.msra.mxu0 0
    %345 = vmatprep.subr.bf16.mxu0 %v331
    %346 = vmatpush1.bf16.msra.mxu0 %v328
    %347 = vmatprep.subr.bf16.mxu0 %v311
    %348 = vmatpush1.bf16.msra.mxu0 %v310
    %349 = vmatprep.subr.bf16.mxu0 0
    %350 = vmatpush2.bf16.msra.mxu0 0
    %351 = vmatprep.subr.bf16.mxu0 0
    %352 = vmatpush2.bf16.msra.mxu0 0
    %353 = vmatprep.subr.bf16.mxu0 0
    %354 = vmatpush2.bf16.msra.mxu0 0
    %355 = vmatprep.subr.bf16.mxu0 0
    %356 = vmatpush2.bf16.msra.mxu0 0
    %357 = vmatprep.subr.bf16.mxu0 0
    %358 = vmatpush2.bf16.msra.mxu0 0
    %359 = vmatprep.subr.bf16.mxu0 0
    %360 = vmatpush2.bf16.msra.mxu0 0
    %361 = vmatprep.subr.bf16.mxu0 0
    %362 = vmatpush2.bf16.msra.mxu0 0
    %363 = vmatprep.subr.bf16.mxu0 0
    %364 = vmatpush2.bf16.msra.mxu0 0
    %365 = vmatprep.mubr.bf16.mxu0 0
    %366 = vmatmul.mubr.bf16.gmra.mxu0 %v318
    %v367 = vpop.f32.mrf.mxu0
    %v368 = vadd.f32 0.0, %v367
    %v369 = vpop.f32.mrf.mxu0
    %v370 = vadd.f32 0.0, %v369
    %v371 = vpop.f32.mrf.mxu0
    %v372 = vadd.f32 0.0, %v371
    %v373 = vpop.f32.mrf.mxu0
    %v374 = vadd.f32 0.0, %v373
    %375 = vmatprep.mubr.bf16.mxu0 0
    %376 = vmatmul.mubr.bf16.gmra.mxu0 %v321
    %v377 = vpop.f32.mrf.mxu0
    %v378 = vadd.f32 0.0, %v377
    %v379 = vpop.f32.mrf.mxu0
    %v380 = vadd.f32 0.0, %v379
    %v381 = vpop.f32.mrf.mxu0
    %v382 = vadd.f32 0.0, %v381
    %v383 = vpop.f32.mrf.mxu0
    %v384 = vadd.f32 0.0, %v383
    %385 = vmatprep.mubr.bf16.mxu0 0
    %386 = vmatmul.mubr.bf16.gmra.mxu0 %v324
    %v387 = vpop.f32.mrf.mxu0
    %v388 = vadd.f32 0.0, %v387
    %v389 = vpop.f32.mrf.mxu0
    %v390 = vadd.f32 0.0, %v389
    %v391 = vpop.f32.mrf.mxu0
    %v392 = vadd.f32 0.0, %v391
    %v393 = vpop.f32.mrf.mxu0
    %v394 = vadd.f32 0.0, %v393
    %395 = vdwg.mxu0
    %v400 = vunpack.c.l.b16 %v122
    %v401 = vunpack.c.h.b16 %v122
    %v402 = vunpack.c.l.b16 %v123
    %v403 = vunpack.c.h.b16 %v123
    %v404 = vunpack.c.l.b16 %v124
    %v405 = vunpack.c.h.b16 %v124
    %v406 = vunpack.c.l.b16 %v125
    %v407 = vunpack.c.h.b16 %v125
    %v408 = vpack.c.b16 %v402, %v400
    %v409 = vpack.c.b16 %v403, %v401
    %v410 = vpack.c.b16 %v406, %v404
    %v411 = vpack.c.b16 %v407, %v405
    %v415 = vsel %vm316, %v98, 0
    %v418 = vsel %vm316, %v99, 0
    %v421 = vsel %vm316, %v100, 0
    %v424 = vsel %vm326, %v410, 0
    %v427 = vsel %vm326, %v411, 0
    %429 = vmatprep.subr.bf16.mxu0 0
    %430 = vmatpush1.bf16.msra.mxu0 0
    %431 = vmatprep.subr.bf16.mxu0 0
    %432 = vmatpush1.bf16.msra.mxu0 0
    %433 = vmatprep.subr.bf16.mxu0 0
    %434 = vmatpush1.bf16.msra.mxu0 0
    %435 = vmatprep.subr.bf16.mxu0 0
    %436 = vmatpush1.bf16.msra.mxu0 0
    %437 = vmatprep.subr.bf16.mxu0 0
    %438 = vmatpush1.bf16.msra.mxu0 0
    %439 = vmatprep.subr.bf16.mxu0 0
    %440 = vmatpush1.bf16.msra.mxu0 0
    %441 = vmatprep.subr.bf16.mxu0 %v427
    %442 = vmatpush1.bf16.msra.mxu0 %v424
    %443 = vmatprep.subr.bf16.mxu0 %v409
    %444 = vmatpush1.bf16.msra.mxu0 %v408
    %445 = vmatprep.subr.bf16.mxu0 0
    %446 = vmatpush2.bf16.msra.mxu0 0
    %447 = vmatprep.subr.bf16.mxu0 0
    %448 = vmatpush2.bf16.msra.mxu0 0
    %449 = vmatprep.subr.bf16.mxu0 0
    %450 = vmatpush2.bf16.msra.mxu0 0
    %451 = vmatprep.subr.bf16.mxu0 0
    %452 = vmatpush2.bf16.msra.mxu0 0
    %453 = vmatprep.subr.bf16.mxu0 0
    %454 = vmatpush2.bf16.msra.mxu0 0
    %455 = vmatprep.subr.bf16.mxu0 0
    %456 = vmatpush2.bf16.msra.mxu0 0
    %457 = vmatprep.subr.bf16.mxu0 0
    %458 = vmatpush2.bf16.msra.mxu0 0
    %459 = vmatprep.subr.bf16.mxu0 0
    %460 = vmatpush2.bf16.msra.mxu0 0
    %461 = vmatprep.mubr.bf16.mxu0 0
    %462 = vmatmul.mubr.bf16.gmra.mxu0 %v415
    %v463 = vpop.f32.mrf.mxu0
    %v464 = vadd.f32 %v368, %v463
    %v465 = vpop.f32.mrf.mxu0
    %v466 = vadd.f32 %v370, %v465
    %v467 = vpop.f32.mrf.mxu0
    %v468 = vadd.f32 %v372, %v467
    %v469 = vpop.f32.mrf.mxu0
    %v470 = vadd.f32 %v374, %v469
    %471 = vmatprep.mubr.bf16.mxu0 0
    %472 = vmatmul.mubr.bf16.gmra.mxu0 %v418
    %v473 = vpop.f32.mrf.mxu0
    %v474 = vadd.f32 %v378, %v473
    %v475 = vpop.f32.mrf.mxu0
    %v476 = vadd.f32 %v380, %v475
    %v477 = vpop.f32.mrf.mxu0
    %v478 = vadd.f32 %v382, %v477
    %v479 = vpop.f32.mrf.mxu0
    %v480 = vadd.f32 %v384, %v479
    %481 = vmatprep.mubr.bf16.mxu0 0
    %482 = vmatmul.mubr.bf16.gmra.mxu0 %v421
    %v483 = vpop.f32.mrf.mxu0
    %v484 = vadd.f32 %v388, %v483
    %v485 = vpop.f32.mrf.mxu0
    %v486 = vadd.f32 %v390, %v485
    %v487 = vpop.f32.mrf.mxu0
    %v488 = vadd.f32 %v392, %v487
    %v489 = vpop.f32.mrf.mxu0
    %v490 = vadd.f32 %v394, %v489
    %491 = vdwg.mxu0
    %v496 = vunpack.c.l.b16 %v132
    %v497 = vunpack.c.h.b16 %v132
    %v498 = vunpack.c.l.b16 %v133
    %v499 = vunpack.c.h.b16 %v133
    %v500 = vunpack.c.l.b16 %v134
    %v501 = vunpack.c.h.b16 %v134
    %v502 = vunpack.c.l.b16 %v135
    %v503 = vunpack.c.h.b16 %v135
    %v504 = vpack.c.b16 %v498, %v496
    %v505 = vpack.c.b16 %v499, %v497
    %v506 = vpack.c.b16 %v502, %v500
    %v507 = vpack.c.b16 %v503, %v501
    %v511 = vsel %vm316, %v110, 0
    %v514 = vsel %vm316, %v111, 0
    %v517 = vsel %vm316, %v112, 0
    %v520 = vsel %vm326, %v506, 0
    %v523 = vsel %vm326, %v507, 0
    %525 = vmatprep.subr.bf16.mxu0 0
    %526 = vmatpush1.bf16.msra.mxu0 0
    %527 = vmatprep.subr.bf16.mxu0 0
    %528 = vmatpush1.bf16.msra.mxu0 0
    %529 = vmatprep.subr.bf16.mxu0 0
    %530 = vmatpush1.bf16.msra.mxu0 0
    %531 = vmatprep.subr.bf16.mxu0 0
    %532 = vmatpush1.bf16.msra.mxu0 0
    %533 = vmatprep.subr.bf16.mxu0 0
    %534 = vmatpush1.bf16.msra.mxu0 0
    %535 = vmatprep.subr.bf16.mxu0 0
    %536 = vmatpush1.bf16.msra.mxu0 0
    %537 = vmatprep.subr.bf16.mxu0 %v523
    %538 = vmatpush1.bf16.msra.mxu0 %v520
    %539 = vmatprep.subr.bf16.mxu0 %v505
    %540 = vmatpush1.bf16.msra.mxu0 %v504
    %541 = vmatprep.subr.bf16.mxu0 0
    %542 = vmatpush2.bf16.msra.mxu0 0
    %543 = vmatprep.subr.bf16.mxu0 0
    %544 = vmatpush2.bf16.msra.mxu0 0
    %545 = vmatprep.subr.bf16.mxu0 0
    %546 = vmatpush2.bf16.msra.mxu0 0
    %547 = vmatprep.subr.bf16.mxu0 0
    %548 = vmatpush2.bf16.msra.mxu0 0
    %549 = vmatprep.subr.bf16.mxu0 0
    %550 = vmatpush2.bf16.msra.mxu0 0
    %551 = vmatprep.subr.bf16.mxu0 0
    %552 = vmatpush2.bf16.msra.mxu0 0
    %553 = vmatprep.subr.bf16.mxu0 0
    %554 = vmatpush2.bf16.msra.mxu0 0
    %555 = vmatprep.subr.bf16.mxu0 0
    %556 = vmatpush2.bf16.msra.mxu0 0
    %557 = vmatprep.mubr.bf16.mxu0 0
    %558 = vmatmul.mubr.bf16.gmra.mxu0 %v511
    %v559 = vpop.f32.mrf.mxu0
    %v560 = vadd.f32 0.0, %v559
    %v561 = vpop.f32.mrf.mxu0
    %v562 = vadd.f32 0.0, %v561
    %v563 = vpop.f32.mrf.mxu0
    %v564 = vadd.f32 0.0, %v563
    %v565 = vpop.f32.mrf.mxu0
    %v566 = vadd.f32 0.0, %v565
    %567 = vmatprep.mubr.bf16.mxu0 0
    %568 = vmatmul.mubr.bf16.gmra.mxu0 %v514
    %v569 = vpop.f32.mrf.mxu0
    %v570 = vadd.f32 0.0, %v569
    %v571 = vpop.f32.mrf.mxu0
    %v572 = vadd.f32 0.0, %v571
    %v573 = vpop.f32.mrf.mxu0
    %v574 = vadd.f32 0.0, %v573
    %v575 = vpop.f32.mrf.mxu0
    %v576 = vadd.f32 0.0, %v575
    %577 = vmatprep.mubr.bf16.mxu0 0
    %578 = vmatmul.mubr.bf16.gmra.mxu0 %v517
    %v579 = vpop.f32.mrf.mxu0
    %v580 = vadd.f32 0.0, %v579
    %v581 = vpop.f32.mrf.mxu0
    %v582 = vadd.f32 0.0, %v581
    %v583 = vpop.f32.mrf.mxu0
    %v584 = vadd.f32 0.0, %v583
    %v585 = vpop.f32.mrf.mxu0
    %v586 = vadd.f32 0.0, %v585
    %587 = vdwg.mxu0
    %v588 = vadd.f32 %v464, %v560
    %v589 = vadd.f32 %v466, %v562
    %v590 = vadd.f32 %v468, %v564
    %v591 = vadd.f32 %v470, %v566
    %v592 = vadd.f32 %v474, %v570
    %v593 = vadd.f32 %v476, %v572
    %v594 = vadd.f32 %v478, %v574
    %v595 = vadd.f32 %v480, %v576
    %v596 = vadd.f32 %v484, %v580
    %v597 = vadd.f32 %v486, %v582
    %v598 = vadd.f32 %v488, %v584
    %v599 = vadd.f32 %v490, %v586
    %v604 = vunpack.c.l.b16 %v137
    %v605 = vunpack.c.h.b16 %v137
    %v606 = vunpack.c.l.b16 %v138
    %v607 = vunpack.c.h.b16 %v138
    %v608 = vunpack.c.l.b16 %v139
    %v609 = vunpack.c.h.b16 %v139
    %v610 = vunpack.c.l.b16 %v140
    %v611 = vunpack.c.h.b16 %v140
    %v612 = vpack.c.b16 %v606, %v604
    %v613 = vpack.c.b16 %v607, %v605
    %v614 = vpack.c.b16 %v610, %v608
    %v615 = vpack.c.b16 %v611, %v609
    %v619 = vsel %vm316, %v116, 0
    %v622 = vsel %vm316, %v117, 0
    %v625 = vsel %vm316, %v118, 0
    %v628 = vsel %vm326, %v614, 0
    %v631 = vsel %vm326, %v615, 0
    %633 = vmatprep.subr.bf16.mxu0 0
    %634 = vmatpush1.bf16.msra.mxu0 0
    %635 = vmatprep.subr.bf16.mxu0 0
    %636 = vmatpush1.bf16.msra.mxu0 0
    %637 = vmatprep.subr.bf16.mxu0 0
    %638 = vmatpush1.bf16.msra.mxu0 0
    %639 = vmatprep.subr.bf16.mxu0 0
    %640 = vmatpush1.bf16.msra.mxu0 0
    %641 = vmatprep.subr.bf16.mxu0 0
    %642 = vmatpush1.bf16.msra.mxu0 0
    %643 = vmatprep.subr.bf16.mxu0 0
    %644 = vmatpush1.bf16.msra.mxu0 0
    %645 = vmatprep.subr.bf16.mxu0 %v631
    %646 = vmatpush1.bf16.msra.mxu0 %v628
    %647 = vmatprep.subr.bf16.mxu0 %v613
    %648 = vmatpush1.bf16.msra.mxu0 %v612
    %649 = vmatprep.subr.bf16.mxu0 0
    %650 = vmatpush2.bf16.msra.mxu0 0
    %651 = vmatprep.subr.bf16.mxu0 0
    %652 = vmatpush2.bf16.msra.mxu0 0
    %653 = vmatprep.subr.bf16.mxu0 0
    %654 = vmatpush2.bf16.msra.mxu0 0
    %655 = vmatprep.subr.bf16.mxu0 0
    %656 = vmatpush2.bf16.msra.mxu0 0
    %657 = vmatprep.subr.bf16.mxu0 0
    %658 = vmatpush2.bf16.msra.mxu0 0
    %659 = vmatprep.subr.bf16.mxu0 0
    %660 = vmatpush2.bf16.msra.mxu0 0
    %661 = vmatprep.subr.bf16.mxu0 0
    %662 = vmatpush2.bf16.msra.mxu0 0
    %663 = vmatprep.subr.bf16.mxu0 0
    %664 = vmatpush2.bf16.msra.mxu0 0
    %665 = vmatprep.mubr.bf16.mxu0 0
    %666 = vmatmul.mubr.bf16.gmra.mxu0 %v619
    %v667 = vpop.f32.mrf.mxu0
    %v668 = vadd.f32 0.0, %v667
    %v669 = vpop.f32.mrf.mxu0
    %v670 = vadd.f32 0.0, %v669
    %v671 = vpop.f32.mrf.mxu0
    %v672 = vadd.f32 0.0, %v671
    %v673 = vpop.f32.mrf.mxu0
    %v674 = vadd.f32 0.0, %v673
    %675 = vmatprep.mubr.bf16.mxu0 0
    %676 = vmatmul.mubr.bf16.gmra.mxu0 %v622
    %v677 = vpop.f32.mrf.mxu0
    %v678 = vadd.f32 0.0, %v677
    %v679 = vpop.f32.mrf.mxu0
    %v680 = vadd.f32 0.0, %v679
    %v681 = vpop.f32.mrf.mxu0
    %v682 = vadd.f32 0.0, %v681
    %v683 = vpop.f32.mrf.mxu0
    %v684 = vadd.f32 0.0, %v683
    %685 = vmatprep.mubr.bf16.mxu0 0
    %686 = vmatmul.mubr.bf16.gmra.mxu0 %v625
    %v687 = vpop.f32.mrf.mxu0
    %v688 = vadd.f32 0.0, %v687
    %v689 = vpop.f32.mrf.mxu0
    %v690 = vadd.f32 0.0, %v689
    %v691 = vpop.f32.mrf.mxu0
    %v692 = vadd.f32 0.0, %v691
    %v693 = vpop.f32.mrf.mxu0
    %v694 = vadd.f32 0.0, %v693
    %695 = vdwg.mxu0
    %v696 = vadd.f32 %v588, %v668
    %v697 = vadd.f32 %v589, %v670
    %v698 = vadd.f32 %v590, %v672
    %v699 = vadd.f32 %v591, %v674
    %v700 = vadd.f32 %v592, %v678
    %v701 = vadd.f32 %v593, %v680
    %v702 = vadd.f32 %v594, %v682
    %v703 = vadd.f32 %v595, %v684
    %v704 = vadd.f32 %v596, %v688
    %v705 = vadd.f32 %v597, %v690
    %v706 = vadd.f32 %v598, %v692
    %v707 = vadd.f32 %v599, %v694
    %v712 = vunpack.c.l.b16 %v142
    %v713 = vunpack.c.h.b16 %v142
    %v714 = vunpack.c.l.b16 %v143
    %v715 = vunpack.c.h.b16 %v143
    %v716 = vunpack.c.l.b16 %v144
    %v717 = vunpack.c.h.b16 %v144
    %v718 = vunpack.c.l.b16 %v145
    %v719 = vunpack.c.h.b16 %v145
    %v720 = vpack.c.b16 %v714, %v712
    %v721 = vpack.c.b16 %v715, %v713
    %v722 = vpack.c.b16 %v718, %v716
    %v723 = vpack.c.b16 %v719, %v717
    %v727 = vsel %vm316, %v101, 0
    %v730 = vsel %vm316, %v102, 0
    %v733 = vsel %vm316, %v103, 0
    %v736 = vsel %vm326, %v722, 0
    %v739 = vsel %vm326, %v723, 0
    %741 = vmatprep.subr.bf16.mxu0 0
    %742 = vmatpush1.bf16.msra.mxu0 0
    %743 = vmatprep.subr.bf16.mxu0 0
    %744 = vmatpush1.bf16.msra.mxu0 0
    %745 = vmatprep.subr.bf16.mxu0 0
    %746 = vmatpush1.bf16.msra.mxu0 0
    %747 = vmatprep.subr.bf16.mxu0 0
    %748 = vmatpush1.bf16.msra.mxu0 0
    %749 = vmatprep.subr.bf16.mxu0 0
    %750 = vmatpush1.bf16.msra.mxu0 0
    %751 = vmatprep.subr.bf16.mxu0 0
    %752 = vmatpush1.bf16.msra.mxu0 0
    %753 = vmatprep.subr.bf16.mxu0 %v739
    %754 = vmatpush1.bf16.msra.mxu0 %v736
    %755 = vmatprep.subr.bf16.mxu0 %v721
    %756 = vmatpush1.bf16.msra.mxu0 %v720
    %757 = vmatprep.subr.bf16.mxu0 0
    %758 = vmatpush2.bf16.msra.mxu0 0
    %759 = vmatprep.subr.bf16.mxu0 0
    %760 = vmatpush2.bf16.msra.mxu0 0
    %761 = vmatprep.subr.bf16.mxu0 0
    %762 = vmatpush2.bf16.msra.mxu0 0
    %763 = vmatprep.subr.bf16.mxu0 0
    %764 = vmatpush2.bf16.msra.mxu0 0
    %765 = vmatprep.subr.bf16.mxu0 0
    %766 = vmatpush2.bf16.msra.mxu0 0
    %767 = vmatprep.subr.bf16.mxu0 0
    %768 = vmatpush2.bf16.msra.mxu0 0
    %769 = vmatprep.subr.bf16.mxu0 0
    %770 = vmatpush2.bf16.msra.mxu0 0
    %771 = vmatprep.subr.bf16.mxu0 0
    %772 = vmatpush2.bf16.msra.mxu0 0
    %773 = vmatprep.mubr.bf16.mxu0 0
    %774 = vmatmul.mubr.bf16.gmra.mxu0 %v727
    %v775 = vpop.f32.mrf.mxu0
    %v776 = vadd.f32 0.0, %v775
    %v777 = vpop.f32.mrf.mxu0
    %v778 = vadd.f32 0.0, %v777
    %v779 = vpop.f32.mrf.mxu0
    %v780 = vadd.f32 0.0, %v779
    %v781 = vpop.f32.mrf.mxu0
    %v782 = vadd.f32 0.0, %v781
    %783 = vmatprep.mubr.bf16.mxu0 0
    %784 = vmatmul.mubr.bf16.gmra.mxu0 %v730
    %v785 = vpop.f32.mrf.mxu0
    %v786 = vadd.f32 0.0, %v785
    %v787 = vpop.f32.mrf.mxu0
    %v788 = vadd.f32 0.0, %v787
    %v789 = vpop.f32.mrf.mxu0
    %v790 = vadd.f32 0.0, %v789
    %v791 = vpop.f32.mrf.mxu0
    %v792 = vadd.f32 0.0, %v791
    %793 = vmatprep.mubr.bf16.mxu0 0
    %794 = vmatmul.mubr.bf16.gmra.mxu0 %v733
    %v795 = vpop.f32.mrf.mxu0
    %v796 = vadd.f32 0.0, %v795
    %v797 = vpop.f32.mrf.mxu0
    %v798 = vadd.f32 0.0, %v797
    %v799 = vpop.f32.mrf.mxu0
    %v800 = vadd.f32 0.0, %v799
    %v801 = vpop.f32.mrf.mxu0
    %v802 = vadd.f32 0.0, %v801
    %803 = vdwg.mxu0
    %v804 = vadd.f32 %v696, %v776
    %v805 = vadd.f32 %v697, %v778
    %v806 = vadd.f32 %v698, %v780
    %v807 = vadd.f32 %v699, %v782
    %v808 = vadd.f32 %v700, %v786
    %v809 = vadd.f32 %v701, %v788
    %v810 = vadd.f32 %v702, %v790
    %v811 = vadd.f32 %v703, %v792
    %v812 = vadd.f32 %v704, %v796
    %v813 = vadd.f32 %v705, %v798
    %v814 = vadd.f32 %v706, %v800
    %v815 = vadd.f32 %v707, %v802
    %816 = vmatprep.subr.bf16.mxu0 0
    %817 = vmatpush1.bf16.msra.mxu0 0
    %818 = vmatprep.subr.bf16.mxu0 0
    %819 = vmatpush1.bf16.msra.mxu0 0
    %820 = vmatprep.subr.bf16.mxu0 0
    %821 = vmatpush1.bf16.msra.mxu0 0
    %822 = vmatprep.subr.bf16.mxu0 0
    %823 = vmatpush1.bf16.msra.mxu0 0
    %824 = vmatprep.subr.bf16.mxu0 0
    %825 = vmatpush1.bf16.msra.mxu0 0
    %826 = vmatprep.subr.bf16.mxu0 0
    %827 = vmatpush1.bf16.msra.mxu0 0
    %828 = vmatprep.subr.bf16.mxu0 %v331
    %829 = vmatpush1.bf16.msra.mxu0 %v328
    %830 = vmatprep.subr.bf16.mxu0 %v311
    %831 = vmatpush1.bf16.msra.mxu0 %v310
    %832 = vmatprep.subr.bf16.mxu0 0
    %833 = vmatpush2.bf16.msra.mxu0 0
    %834 = vmatprep.subr.bf16.mxu0 0
    %835 = vmatpush2.bf16.msra.mxu0 0
    %836 = vmatprep.subr.bf16.mxu0 0
    %837 = vmatpush2.bf16.msra.mxu0 0
    %838 = vmatprep.subr.bf16.mxu0 0
    %839 = vmatpush2.bf16.msra.mxu0 0
    %840 = vmatprep.subr.bf16.mxu0 0
    %841 = vmatpush2.bf16.msra.mxu0 0
    %842 = vmatprep.subr.bf16.mxu0 0
    %843 = vmatpush2.bf16.msra.mxu0 0
    %844 = vmatprep.subr.bf16.mxu0 0
    %845 = vmatpush2.bf16.msra.mxu0 0
    %846 = vmatprep.subr.bf16.mxu0 0
    %847 = vmatpush2.bf16.msra.mxu0 0
    %848 = vmatprep.mubr.bf16.mxu0 0
    %849 = vmatmul.mubr.bf16.gmra.mxu0 %v511
    %v850 = vpop.f32.mrf.mxu0
    %v851 = vadd.f32 0.0, %v850
    %v852 = vpop.f32.mrf.mxu0
    %v853 = vadd.f32 0.0, %v852
    %v854 = vpop.f32.mrf.mxu0
    %v855 = vadd.f32 0.0, %v854
    %v856 = vpop.f32.mrf.mxu0
    %v857 = vadd.f32 0.0, %v856
    %858 = vmatprep.mubr.bf16.mxu0 0
    %859 = vmatmul.mubr.bf16.gmra.mxu0 %v514
    %v860 = vpop.f32.mrf.mxu0
    %v861 = vadd.f32 0.0, %v860
    %v862 = vpop.f32.mrf.mxu0
    %v863 = vadd.f32 0.0, %v862
    %v864 = vpop.f32.mrf.mxu0
    %v865 = vadd.f32 0.0, %v864
    %v866 = vpop.f32.mrf.mxu0
    %v867 = vadd.f32 0.0, %v866
    %868 = vmatprep.mubr.bf16.mxu0 0
    %869 = vmatmul.mubr.bf16.gmra.mxu0 %v517
    %v870 = vpop.f32.mrf.mxu0
    %v871 = vadd.f32 0.0, %v870
    %v872 = vpop.f32.mrf.mxu0
    %v873 = vadd.f32 0.0, %v872
    %v874 = vpop.f32.mrf.mxu0
    %v875 = vadd.f32 0.0, %v874
    %v876 = vpop.f32.mrf.mxu0
    %v877 = vadd.f32 0.0, %v876
    %878 = vdwg.mxu0
    %879 = vmatprep.subr.bf16.mxu0 0
    %880 = vmatpush1.bf16.msra.mxu0 0
    %881 = vmatprep.subr.bf16.mxu0 0
    %882 = vmatpush1.bf16.msra.mxu0 0
    %883 = vmatprep.subr.bf16.mxu0 0
    %884 = vmatpush1.bf16.msra.mxu0 0
    %885 = vmatprep.subr.bf16.mxu0 0
    %886 = vmatpush1.bf16.msra.mxu0 0
    %887 = vmatprep.subr.bf16.mxu0 0
    %888 = vmatpush1.bf16.msra.mxu0 0
    %889 = vmatprep.subr.bf16.mxu0 0
    %890 = vmatpush1.bf16.msra.mxu0 0
    %891 = vmatprep.subr.bf16.mxu0 %v427
    %892 = vmatpush1.bf16.msra.mxu0 %v424
    %893 = vmatprep.subr.bf16.mxu0 %v409
    %894 = vmatpush1.bf16.msra.mxu0 %v408
    %895 = vmatprep.subr.bf16.mxu0 0
    %896 = vmatpush2.bf16.msra.mxu0 0
    %897 = vmatprep.subr.bf16.mxu0 0
    %898 = vmatpush2.bf16.msra.mxu0 0
    %899 = vmatprep.subr.bf16.mxu0 0
    %900 = vmatpush2.bf16.msra.mxu0 0
    %901 = vmatprep.subr.bf16.mxu0 0
    %902 = vmatpush2.bf16.msra.mxu0 0
    %903 = vmatprep.subr.bf16.mxu0 0
    %904 = vmatpush2.bf16.msra.mxu0 0
    %905 = vmatprep.subr.bf16.mxu0 0
    %906 = vmatpush2.bf16.msra.mxu0 0
    %907 = vmatprep.subr.bf16.mxu0 0
    %908 = vmatpush2.bf16.msra.mxu0 0
    %909 = vmatprep.subr.bf16.mxu0 0
    %910 = vmatpush2.bf16.msra.mxu0 0
    %911 = vmatprep.mubr.bf16.mxu0 0
    %912 = vmatmul.mubr.bf16.gmra.mxu0 %v318
    %v913 = vpop.f32.mrf.mxu0
    %v914 = vadd.f32 %v851, %v913
    %v915 = vpop.f32.mrf.mxu0
    %v916 = vadd.f32 %v853, %v915
    %v917 = vpop.f32.mrf.mxu0
    %v918 = vadd.f32 %v855, %v917
    %v919 = vpop.f32.mrf.mxu0
    %v920 = vadd.f32 %v857, %v919
    %921 = vmatprep.mubr.bf16.mxu0 0
    %922 = vmatmul.mubr.bf16.gmra.mxu0 %v321
    %v923 = vpop.f32.mrf.mxu0
    %v924 = vadd.f32 %v861, %v923
    %v925 = vpop.f32.mrf.mxu0
    %v926 = vadd.f32 %v863, %v925
    %v927 = vpop.f32.mrf.mxu0
    %v928 = vadd.f32 %v865, %v927
    %v929 = vpop.f32.mrf.mxu0
    %v930 = vadd.f32 %v867, %v929
    %931 = vmatprep.mubr.bf16.mxu0 0
    %932 = vmatmul.mubr.bf16.gmra.mxu0 %v324
    %v933 = vpop.f32.mrf.mxu0
    %v934 = vadd.f32 %v871, %v933
    %v935 = vpop.f32.mrf.mxu0
    %v936 = vadd.f32 %v873, %v935
    %v937 = vpop.f32.mrf.mxu0
    %v938 = vadd.f32 %v875, %v937
    %v939 = vpop.f32.mrf.mxu0
    %v940 = vadd.f32 %v877, %v939
    %941 = vdwg.mxu0
    %942 = vmatprep.subr.bf16.mxu0 0
    %943 = vmatpush1.bf16.msra.mxu0 0
    %944 = vmatprep.subr.bf16.mxu0 0
    %945 = vmatpush1.bf16.msra.mxu0 0
    %946 = vmatprep.subr.bf16.mxu0 0
    %947 = vmatpush1.bf16.msra.mxu0 0
    %948 = vmatprep.subr.bf16.mxu0 0
    %949 = vmatpush1.bf16.msra.mxu0 0
    %950 = vmatprep.subr.bf16.mxu0 0
    %951 = vmatpush1.bf16.msra.mxu0 0
    %952 = vmatprep.subr.bf16.mxu0 0
    %953 = vmatpush1.bf16.msra.mxu0 0
    %954 = vmatprep.subr.bf16.mxu0 %v523
    %955 = vmatpush1.bf16.msra.mxu0 %v520
    %956 = vmatprep.subr.bf16.mxu0 %v505
    %957 = vmatpush1.bf16.msra.mxu0 %v504
    %958 = vmatprep.subr.bf16.mxu0 0
    %959 = vmatpush2.bf16.msra.mxu0 0
    %960 = vmatprep.subr.bf16.mxu0 0
    %961 = vmatpush2.bf16.msra.mxu0 0
    %962 = vmatprep.subr.bf16.mxu0 0
    %963 = vmatpush2.bf16.msra.mxu0 0
    %964 = vmatprep.subr.bf16.mxu0 0
    %965 = vmatpush2.bf16.msra.mxu0 0
    %966 = vmatprep.subr.bf16.mxu0 0
    %967 = vmatpush2.bf16.msra.mxu0 0
    %968 = vmatprep.subr.bf16.mxu0 0
    %969 = vmatpush2.bf16.msra.mxu0 0
    %970 = vmatprep.subr.bf16.mxu0 0
    %971 = vmatpush2.bf16.msra.mxu0 0
    %972 = vmatprep.subr.bf16.mxu0 0
    %973 = vmatpush2.bf16.msra.mxu0 0
    %974 = vmatprep.mubr.bf16.mxu0 0
    %975 = vmatmul.mubr.bf16.gmra.mxu0 %v619
    %v976 = vpop.f32.mrf.mxu0
    %v977 = vadd.f32 0.0, %v976
    %v978 = vpop.f32.mrf.mxu0
    %v979 = vadd.f32 0.0, %v978
    %v980 = vpop.f32.mrf.mxu0
    %v981 = vadd.f32 0.0, %v980
    %v982 = vpop.f32.mrf.mxu0
    %v983 = vadd.f32 0.0, %v982
    %984 = vmatprep.mubr.bf16.mxu0 0
    %985 = vmatmul.mubr.bf16.gmra.mxu0 %v622
    %v986 = vpop.f32.mrf.mxu0
    %v987 = vadd.f32 0.0, %v986
    %v988 = vpop.f32.mrf.mxu0
    %v989 = vadd.f32 0.0, %v988
    %v990 = vpop.f32.mrf.mxu0
    %v991 = vadd.f32 0.0, %v990
    %v992 = vpop.f32.mrf.mxu0
    %v993 = vadd.f32 0.0, %v992
    %994 = vmatprep.mubr.bf16.mxu0 0
    %995 = vmatmul.mubr.bf16.gmra.mxu0 %v625
    %v996 = vpop.f32.mrf.mxu0
    %v997 = vadd.f32 0.0, %v996
    %v998 = vpop.f32.mrf.mxu0
    %v999 = vadd.f32 0.0, %v998
    %v1000 = vpop.f32.mrf.mxu0
    %v1001 = vadd.f32 0.0, %v1000
    %v1002 = vpop.f32.mrf.mxu0
    %v1003 = vadd.f32 0.0, %v1002
    %1004 = vdwg.mxu0
    %v1005 = vadd.f32 %v914, %v977
    %v1006 = vadd.f32 %v916, %v979
    %v1007 = vadd.f32 %v918, %v981
    %v1008 = vadd.f32 %v920, %v983
    %v1009 = vadd.f32 %v924, %v987
    %v1010 = vadd.f32 %v926, %v989
    %v1011 = vadd.f32 %v928, %v991
    %v1012 = vadd.f32 %v930, %v993
    %v1013 = vadd.f32 %v934, %v997
    %v1014 = vadd.f32 %v936, %v999
    %v1015 = vadd.f32 %v938, %v1001
    %v1016 = vadd.f32 %v940, %v1003
    %1017 = vmatprep.subr.bf16.mxu0 0
    %1018 = vmatpush1.bf16.msra.mxu0 0
    %1019 = vmatprep.subr.bf16.mxu0 0
    %1020 = vmatpush1.bf16.msra.mxu0 0
    %1021 = vmatprep.subr.bf16.mxu0 0
    %1022 = vmatpush1.bf16.msra.mxu0 0
    %1023 = vmatprep.subr.bf16.mxu0 0
    %1024 = vmatpush1.bf16.msra.mxu0 0
    %1025 = vmatprep.subr.bf16.mxu0 0
    %1026 = vmatpush1.bf16.msra.mxu0 0
    %1027 = vmatprep.subr.bf16.mxu0 0
    %1028 = vmatpush1.bf16.msra.mxu0 0
    %1029 = vmatprep.subr.bf16.mxu0 %v631
    %1030 = vmatpush1.bf16.msra.mxu0 %v628
    %1031 = vmatprep.subr.bf16.mxu0 %v613
    %1032 = vmatpush1.bf16.msra.mxu0 %v612
    %1033 = vmatprep.subr.bf16.mxu0 0
    %1034 = vmatpush2.bf16.msra.mxu0 0
    %1035 = vmatprep.subr.bf16.mxu0 0
    %1036 = vmatpush2.bf16.msra.mxu0 0
    %1037 = vmatprep.subr.bf16.mxu0 0
    %1038 = vmatpush2.bf16.msra.mxu0 0
    %1039 = vmatprep.subr.bf16.mxu0 0
    %1040 = vmatpush2.bf16.msra.mxu0 0
    %1041 = vmatprep.subr.bf16.mxu0 0
    %1042 = vmatpush2.bf16.msra.mxu0 0
    %1043 = vmatprep.subr.bf16.mxu0 0
    %1044 = vmatpush2.bf16.msra.mxu0 0
    %1045 = vmatprep.subr.bf16.mxu0 0
    %1046 = vmatpush2.bf16.msra.mxu0 0
    %1047 = vmatprep.subr.bf16.mxu0 0
    %1048 = vmatpush2.bf16.msra.mxu0 0
    %1049 = vmatprep.mubr.bf16.mxu0 0
    %1050 = vmatmul.mubr.bf16.gmra.mxu0 %v727
    %v1051 = vpop.f32.mrf.mxu0
    %v1052 = vadd.f32 0.0, %v1051
    %v1053 = vpop.f32.mrf.mxu0
    %v1054 = vadd.f32 0.0, %v1053
    %v1055 = vpop.f32.mrf.mxu0
    %v1056 = vadd.f32 0.0, %v1055
    %v1057 = vpop.f32.mrf.mxu0
    %v1058 = vadd.f32 0.0, %v1057
    %1059 = vmatprep.mubr.bf16.mxu0 0
    %1060 = vmatmul.mubr.bf16.gmra.mxu0 %v730
    %v1061 = vpop.f32.mrf.mxu0
    %v1062 = vadd.f32 0.0, %v1061
    %v1063 = vpop.f32.mrf.mxu0
    %v1064 = vadd.f32 0.0, %v1063
    %v1065 = vpop.f32.mrf.mxu0
    %v1066 = vadd.f32 0.0, %v1065
    %v1067 = vpop.f32.mrf.mxu0
    %v1068 = vadd.f32 0.0, %v1067
    %1069 = vmatprep.mubr.bf16.mxu0 0
    %1070 = vmatmul.mubr.bf16.gmra.mxu0 %v733
    %v1071 = vpop.f32.mrf.mxu0
    %v1072 = vadd.f32 0.0, %v1071
    %v1073 = vpop.f32.mrf.mxu0
    %v1074 = vadd.f32 0.0, %v1073
    %v1075 = vpop.f32.mrf.mxu0
    %v1076 = vadd.f32 0.0, %v1075
    %v1077 = vpop.f32.mrf.mxu0
    %v1078 = vadd.f32 0.0, %v1077
    %1079 = vdwg.mxu0
    %v1080 = vadd.f32 %v1005, %v1052
    %v1081 = vadd.f32 %v1006, %v1054
    %v1082 = vadd.f32 %v1007, %v1056
    %v1083 = vadd.f32 %v1008, %v1058
    %v1084 = vadd.f32 %v1009, %v1062
    %v1085 = vadd.f32 %v1010, %v1064
    %v1086 = vadd.f32 %v1011, %v1066
    %v1087 = vadd.f32 %v1012, %v1068
    %v1088 = vadd.f32 %v1013, %v1072
    %v1089 = vadd.f32 %v1014, %v1074
    %v1090 = vadd.f32 %v1015, %v1076
    %v1091 = vadd.f32 %v1016, %v1078
    %v1093 = vsel %vm316, %v107, 0
    %v1096 = vsel %vm316, %v108, 0
    %v1099 = vsel %vm316, %v109, 0
    %1101 = vmatprep.subr.bf16.mxu0 0
    %1102 = vmatpush1.bf16.msra.mxu0 0
    %1103 = vmatprep.subr.bf16.mxu0 0
    %1104 = vmatpush1.bf16.msra.mxu0 0
    %1105 = vmatprep.subr.bf16.mxu0 0
    %1106 = vmatpush1.bf16.msra.mxu0 0
    %1107 = vmatprep.subr.bf16.mxu0 0
    %1108 = vmatpush1.bf16.msra.mxu0 0
    %1109 = vmatprep.subr.bf16.mxu0 0
    %1110 = vmatpush1.bf16.msra.mxu0 0
    %1111 = vmatprep.subr.bf16.mxu0 0
    %1112 = vmatpush1.bf16.msra.mxu0 0
    %1113 = vmatprep.subr.bf16.mxu0 %v739
    %1114 = vmatpush1.bf16.msra.mxu0 %v736
    %1115 = vmatprep.subr.bf16.mxu0 %v721
    %1116 = vmatpush1.bf16.msra.mxu0 %v720
    %1117 = vmatprep.subr.bf16.mxu0 0
    %1118 = vmatpush2.bf16.msra.mxu0 0
    %1119 = vmatprep.subr.bf16.mxu0 0
    %1120 = vmatpush2.bf16.msra.mxu0 0
    %1121 = vmatprep.subr.bf16.mxu0 0
    %1122 = vmatpush2.bf16.msra.mxu0 0
    %1123 = vmatprep.subr.bf16.mxu0 0
    %1124 = vmatpush2.bf16.msra.mxu0 0
    %1125 = vmatprep.subr.bf16.mxu0 0
    %1126 = vmatpush2.bf16.msra.mxu0 0
    %1127 = vmatprep.subr.bf16.mxu0 0
    %1128 = vmatpush2.bf16.msra.mxu0 0
    %1129 = vmatprep.subr.bf16.mxu0 0
    %1130 = vmatpush2.bf16.msra.mxu0 0
    %1131 = vmatprep.subr.bf16.mxu0 0
    %1132 = vmatpush2.bf16.msra.mxu0 0
    %1133 = vmatprep.mubr.bf16.mxu0 0
    %1134 = vmatmul.mubr.bf16.gmra.mxu0 %v1093
    %v1135 = vpop.f32.mrf.mxu0
    %v1136 = vadd.f32 0.0, %v1135
    %v1137 = vpop.f32.mrf.mxu0
    %v1138 = vadd.f32 0.0, %v1137
    %v1139 = vpop.f32.mrf.mxu0
    %v1140 = vadd.f32 0.0, %v1139
    %v1141 = vpop.f32.mrf.mxu0
    %v1142 = vadd.f32 0.0, %v1141
    %1143 = vmatprep.mubr.bf16.mxu0 0
    %1144 = vmatmul.mubr.bf16.gmra.mxu0 %v1096
    %v1145 = vpop.f32.mrf.mxu0
    %v1146 = vadd.f32 0.0, %v1145
    %v1147 = vpop.f32.mrf.mxu0
    %v1148 = vadd.f32 0.0, %v1147
    %v1149 = vpop.f32.mrf.mxu0
    %v1150 = vadd.f32 0.0, %v1149
    %v1151 = vpop.f32.mrf.mxu0
    %v1152 = vadd.f32 0.0, %v1151
    %1153 = vmatprep.mubr.bf16.mxu0 0
    %1154 = vmatmul.mubr.bf16.gmra.mxu0 %v1099
    %v1155 = vpop.f32.mrf.mxu0
    %v1156 = vadd.f32 0.0, %v1155
    %v1157 = vpop.f32.mrf.mxu0
    %v1158 = vadd.f32 0.0, %v1157
    %v1159 = vpop.f32.mrf.mxu0
    %v1160 = vadd.f32 0.0, %v1159
    %v1161 = vpop.f32.mrf.mxu0
    %v1162 = vadd.f32 0.0, %v1161
    %1163 = vdwg.mxu0
    %v1164 = vadd.f32 %v1080, %v1136
    %v1165 = vadd.f32 %v1081, %v1138
    %v1166 = vadd.f32 %v1082, %v1140
    %v1167 = vadd.f32 %v1083, %v1142
    %v1168 = vadd.f32 %v1084, %v1146
    %v1169 = vadd.f32 %v1085, %v1148
    %v1170 = vadd.f32 %v1086, %v1150
    %v1171 = vadd.f32 %v1087, %v1152
    %v1172 = vadd.f32 %v1088, %v1156
    %v1173 = vadd.f32 %v1089, %v1158
    %v1174 = vadd.f32 %v1090, %v1160
    %v1175 = vadd.f32 %v1091, %v1162
    %v1176 = vmax.f32 %v804, %v1164
    %v1177 = vmax.f32 %v805, %v1165
    %v1178 = vmax.f32 %v806, %v1166
    %v1179 = vmax.f32 %v807, %v1167
    %v1180 = vmax.f32 %v808, %v1168
    %v1181 = vmax.f32 %v809, %v1169
    %v1182 = vmax.f32 %v810, %v1170
    %v1183 = vmax.f32 %v811, %v1171
    %v1184 = vmax.f32 %v812, %v1172
    %v1185 = vmax.f32 %v813, %v1173
    %v1186 = vmax.f32 %v814, %v1174
    %v1187 = vmax.f32 %v815, %v1175
    %v1188 = vmax.f32 %v1176, %v1177
    %v1189 = vmax.f32 %v1178, %v1179
    %v1190 = vmax.f32 %v1180, %v1181
    %v1191 = vmax.f32 %v1182, %v1183
    %v1192 = vmax.f32 %v1184, %v1185
    %v1193 = vmax.f32 %v1186, %v1187
    %v1195 = vlaneseq
    %v1196 = vshrl.u32 %v1195, 7
    %v1197 = vsub.s32 0, %v1196
    %v1198 = vrot.slane %v297, %v1197
    %v1200 = vadd.f32 %v1188, %v1198
    %v1201 = vadd.f32 %v1189, %v1198
    %v1202 = vadd.f32 %v1190, %v1198
    %v1203 = vadd.f32 %v1191, %v1198
    %v1204 = vadd.f32 %v1192, %v1198
    %v1205 = vadd.f32 %v1193, %v1198
    %v1206 = vmax.f32 %v1200, 0.0
    %v1207 = vmax.f32 %v1201, 0.0
    %v1208 = vmax.f32 %v1202, 0.0
    %v1209 = vmax.f32 %v1203, 0.0
    %v1210 = vmax.f32 %v1204, 0.0
    %v1211 = vmax.f32 %v1205, 0.0
    %1212 = vmatprep.subr.bf16.mxu0 0
    %1213 = vmatpush1.bf16.msra.mxu0 0
    %1214 = vmatprep.subr.bf16.mxu0 0
    %1215 = vmatpush1.bf16.msra.mxu0 0
    %1216 = vmatprep.subr.bf16.mxu0 0
    %1217 = vmatpush1.bf16.msra.mxu0 0
    %1218 = vmatprep.subr.bf16.mxu0 0
    %1219 = vmatpush1.bf16.msra.mxu0 0
    %1220 = vmatprep.subr.bf16.mxu0 0
    %1221 = vmatpush1.bf16.msra.mxu0 0
    %1222 = vmatprep.subr.bf16.mxu0 0
    %1223 = vmatpush1.bf16.msra.mxu0 0
    %1224 = vmatprep.subr.bf16.mxu0 %v331
    %1225 = vmatpush1.bf16.msra.mxu0 %v328
    %1226 = vmatprep.subr.bf16.mxu0 %v311
    %1227 = vmatpush1.bf16.msra.mxu0 %v310
    %1228 = vmatprep.subr.bf16.mxu0 0
    %1229 = vmatpush2.bf16.msra.mxu0 0
    %1230 = vmatprep.subr.bf16.mxu0 0
    %1231 = vmatpush2.bf16.msra.mxu0 0
    %1232 = vmatprep.subr.bf16.mxu0 0
    %1233 = vmatpush2.bf16.msra.mxu0 0
    %1234 = vmatprep.subr.bf16.mxu0 0
    %1235 = vmatpush2.bf16.msra.mxu0 0
    %1236 = vmatprep.subr.bf16.mxu0 0
    %1237 = vmatpush2.bf16.msra.mxu0 0
    %1238 = vmatprep.subr.bf16.mxu0 0
    %1239 = vmatpush2.bf16.msra.mxu0 0
    %1240 = vmatprep.subr.bf16.mxu0 0
    %1241 = vmatpush2.bf16.msra.mxu0 0
    %1242 = vmatprep.subr.bf16.mxu0 0
    %1243 = vmatpush2.bf16.msra.mxu0 0
    %1244 = vmatprep.mubr.bf16.mxu0 0
    %1245 = vmatmul.mubr.bf16.gmra.mxu0 %v619
    %v1246 = vpop.f32.mrf.mxu0
    %v1247 = vadd.f32 0.0, %v1246
    %v1248 = vpop.f32.mrf.mxu0
    %v1249 = vadd.f32 0.0, %v1248
    %v1250 = vpop.f32.mrf.mxu0
    %v1251 = vadd.f32 0.0, %v1250
    %v1252 = vpop.f32.mrf.mxu0
    %v1253 = vadd.f32 0.0, %v1252
    %1254 = vmatprep.mubr.bf16.mxu0 0
    %1255 = vmatmul.mubr.bf16.gmra.mxu0 %v622
    %v1256 = vpop.f32.mrf.mxu0
    %v1257 = vadd.f32 0.0, %v1256
    %v1258 = vpop.f32.mrf.mxu0
    %v1259 = vadd.f32 0.0, %v1258
    %v1260 = vpop.f32.mrf.mxu0
    %v1261 = vadd.f32 0.0, %v1260
    %v1262 = vpop.f32.mrf.mxu0
    %v1263 = vadd.f32 0.0, %v1262
    %1264 = vmatprep.mubr.bf16.mxu0 0
    %1265 = vmatmul.mubr.bf16.gmra.mxu0 %v625
    %v1266 = vpop.f32.mrf.mxu0
    %v1267 = vadd.f32 0.0, %v1266
    %v1268 = vpop.f32.mrf.mxu0
    %v1269 = vadd.f32 0.0, %v1268
    %v1270 = vpop.f32.mrf.mxu0
    %v1271 = vadd.f32 0.0, %v1270
    %v1272 = vpop.f32.mrf.mxu0
    %v1273 = vadd.f32 0.0, %v1272
    %1274 = vdwg.mxu0
    %1275 = vmatprep.subr.bf16.mxu0 0
    %1276 = vmatpush1.bf16.msra.mxu0 0
    %1277 = vmatprep.subr.bf16.mxu0 0
    %1278 = vmatpush1.bf16.msra.mxu0 0
    %1279 = vmatprep.subr.bf16.mxu0 0
    %1280 = vmatpush1.bf16.msra.mxu0 0
    %1281 = vmatprep.subr.bf16.mxu0 0
    %1282 = vmatpush1.bf16.msra.mxu0 0
    %1283 = vmatprep.subr.bf16.mxu0 0
    %1284 = vmatpush1.bf16.msra.mxu0 0
    %1285 = vmatprep.subr.bf16.mxu0 0
    %1286 = vmatpush1.bf16.msra.mxu0 0
    %1287 = vmatprep.subr.bf16.mxu0 %v427
    %1288 = vmatpush1.bf16.msra.mxu0 %v424
    %1289 = vmatprep.subr.bf16.mxu0 %v409
    %1290 = vmatpush1.bf16.msra.mxu0 %v408
    %1291 = vmatprep.subr.bf16.mxu0 0
    %1292 = vmatpush2.bf16.msra.mxu0 0
    %1293 = vmatprep.subr.bf16.mxu0 0
    %1294 = vmatpush2.bf16.msra.mxu0 0
    %1295 = vmatprep.subr.bf16.mxu0 0
    %1296 = vmatpush2.bf16.msra.mxu0 0
    %1297 = vmatprep.subr.bf16.mxu0 0
    %1298 = vmatpush2.bf16.msra.mxu0 0
    %1299 = vmatprep.subr.bf16.mxu0 0
    %1300 = vmatpush2.bf16.msra.mxu0 0
    %1301 = vmatprep.subr.bf16.mxu0 0
    %1302 = vmatpush2.bf16.msra.mxu0 0
    %1303 = vmatprep.subr.bf16.mxu0 0
    %1304 = vmatpush2.bf16.msra.mxu0 0
    %1305 = vmatprep.subr.bf16.mxu0 0
    %1306 = vmatpush2.bf16.msra.mxu0 0
    %1307 = vmatprep.mubr.bf16.mxu0 0
    %1308 = vmatmul.mubr.bf16.gmra.mxu0 %v511
    %v1309 = vpop.f32.mrf.mxu0
    %v1310 = vadd.f32 %v1247, %v1309
    %v1311 = vpop.f32.mrf.mxu0
    %v1312 = vadd.f32 %v1249, %v1311
    %v1313 = vpop.f32.mrf.mxu0
    %v1314 = vadd.f32 %v1251, %v1313
    %v1315 = vpop.f32.mrf.mxu0
    %v1316 = vadd.f32 %v1253, %v1315
    %1317 = vmatprep.mubr.bf16.mxu0 0
    %1318 = vmatmul.mubr.bf16.gmra.mxu0 %v514
    %v1319 = vpop.f32.mrf.mxu0
    %v1320 = vadd.f32 %v1257, %v1319
    %v1321 = vpop.f32.mrf.mxu0
    %v1322 = vadd.f32 %v1259, %v1321
    %v1323 = vpop.f32.mrf.mxu0
    %v1324 = vadd.f32 %v1261, %v1323
    %v1325 = vpop.f32.mrf.mxu0
    %v1326 = vadd.f32 %v1263, %v1325
    %1327 = vmatprep.mubr.bf16.mxu0 0
    %1328 = vmatmul.mubr.bf16.gmra.mxu0 %v517
    %v1329 = vpop.f32.mrf.mxu0
    %v1330 = vadd.f32 %v1267, %v1329
    %v1331 = vpop.f32.mrf.mxu0
    %v1332 = vadd.f32 %v1269, %v1331
    %v1333 = vpop.f32.mrf.mxu0
    %v1334 = vadd.f32 %v1271, %v1333
    %v1335 = vpop.f32.mrf.mxu0
    %v1336 = vadd.f32 %v1273, %v1335
    %1337 = vdwg.mxu0
    %1338 = vmatprep.subr.bf16.mxu0 0
    %1339 = vmatpush1.bf16.msra.mxu0 0
    %1340 = vmatprep.subr.bf16.mxu0 0
    %1341 = vmatpush1.bf16.msra.mxu0 0
    %1342 = vmatprep.subr.bf16.mxu0 0
    %1343 = vmatpush1.bf16.msra.mxu0 0
    %1344 = vmatprep.subr.bf16.mxu0 0
    %1345 = vmatpush1.bf16.msra.mxu0 0
    %1346 = vmatprep.subr.bf16.mxu0 0
    %1347 = vmatpush1.bf16.msra.mxu0 0
    %1348 = vmatprep.subr.bf16.mxu0 0
    %1349 = vmatpush1.bf16.msra.mxu0 0
    %1350 = vmatprep.subr.bf16.mxu0 %v523
    %1351 = vmatpush1.bf16.msra.mxu0 %v520
    %1352 = vmatprep.subr.bf16.mxu0 %v505
    %1353 = vmatpush1.bf16.msra.mxu0 %v504
    %1354 = vmatprep.subr.bf16.mxu0 0
    %1355 = vmatpush2.bf16.msra.mxu0 0
    %1356 = vmatprep.subr.bf16.mxu0 0
    %1357 = vmatpush2.bf16.msra.mxu0 0
    %1358 = vmatprep.subr.bf16.mxu0 0
    %1359 = vmatpush2.bf16.msra.mxu0 0
    %1360 = vmatprep.subr.bf16.mxu0 0
    %1361 = vmatpush2.bf16.msra.mxu0 0
    %1362 = vmatprep.subr.bf16.mxu0 0
    %1363 = vmatpush2.bf16.msra.mxu0 0
    %1364 = vmatprep.subr.bf16.mxu0 0
    %1365 = vmatpush2.bf16.msra.mxu0 0
    %1366 = vmatprep.subr.bf16.mxu0 0
    %1367 = vmatpush2.bf16.msra.mxu0 0
    %1368 = vmatprep.subr.bf16.mxu0 0
    %1369 = vmatpush2.bf16.msra.mxu0 0
    %1370 = vmatprep.mubr.bf16.mxu0 0
    %1371 = vmatmul.mubr.bf16.gmra.mxu0 %v727
    %v1372 = vpop.f32.mrf.mxu0
    %v1373 = vadd.f32 0.0, %v1372
    %v1374 = vpop.f32.mrf.mxu0
    %v1375 = vadd.f32 0.0, %v1374
    %v1376 = vpop.f32.mrf.mxu0
    %v1377 = vadd.f32 0.0, %v1376
    %v1378 = vpop.f32.mrf.mxu0
    %v1379 = vadd.f32 0.0, %v1378
    %1380 = vmatprep.mubr.bf16.mxu0 0
    %1381 = vmatmul.mubr.bf16.gmra.mxu0 %v730
    %v1382 = vpop.f32.mrf.mxu0
    %v1383 = vadd.f32 0.0, %v1382
    %v1384 = vpop.f32.mrf.mxu0
    %v1385 = vadd.f32 0.0, %v1384
    %v1386 = vpop.f32.mrf.mxu0
    %v1387 = vadd.f32 0.0, %v1386
    %v1388 = vpop.f32.mrf.mxu0
    %v1389 = vadd.f32 0.0, %v1388
    %1390 = vmatprep.mubr.bf16.mxu0 0
    %1391 = vmatmul.mubr.bf16.gmra.mxu0 %v733
    %v1392 = vpop.f32.mrf.mxu0
    %v1393 = vadd.f32 0.0, %v1392
    %v1394 = vpop.f32.mrf.mxu0
    %v1395 = vadd.f32 0.0, %v1394
    %v1396 = vpop.f32.mrf.mxu0
    %v1397 = vadd.f32 0.0, %v1396
    %v1398 = vpop.f32.mrf.mxu0
    %v1399 = vadd.f32 0.0, %v1398
    %1400 = vdwg.mxu0
    %v1401 = vadd.f32 %v1310, %v1373
    %v1402 = vadd.f32 %v1312, %v1375
    %v1403 = vadd.f32 %v1314, %v1377
    %v1404 = vadd.f32 %v1316, %v1379
    %v1405 = vadd.f32 %v1320, %v1383
    %v1406 = vadd.f32 %v1322, %v1385
    %v1407 = vadd.f32 %v1324, %v1387
    %v1408 = vadd.f32 %v1326, %v1389
    %v1409 = vadd.f32 %v1330, %v1393
    %v1410 = vadd.f32 %v1332, %v1395
    %v1411 = vadd.f32 %v1334, %v1397
    %v1412 = vadd.f32 %v1336, %v1399
    %1413 = vmatprep.subr.bf16.mxu0 0
    %1414 = vmatpush1.bf16.msra.mxu0 0
    %1415 = vmatprep.subr.bf16.mxu0 0
    %1416 = vmatpush1.bf16.msra.mxu0 0
    %1417 = vmatprep.subr.bf16.mxu0 0
    %1418 = vmatpush1.bf16.msra.mxu0 0
    %1419 = vmatprep.subr.bf16.mxu0 0
    %1420 = vmatpush1.bf16.msra.mxu0 0
    %1421 = vmatprep.subr.bf16.mxu0 0
    %1422 = vmatpush1.bf16.msra.mxu0 0
    %1423 = vmatprep.subr.bf16.mxu0 0
    %1424 = vmatpush1.bf16.msra.mxu0 0
    %1425 = vmatprep.subr.bf16.mxu0 %v631
    %1426 = vmatpush1.bf16.msra.mxu0 %v628
    %1427 = vmatprep.subr.bf16.mxu0 %v613
    %1428 = vmatpush1.bf16.msra.mxu0 %v612
    %1429 = vmatprep.subr.bf16.mxu0 0
    %1430 = vmatpush2.bf16.msra.mxu0 0
    %1431 = vmatprep.subr.bf16.mxu0 0
    %1432 = vmatpush2.bf16.msra.mxu0 0
    %1433 = vmatprep.subr.bf16.mxu0 0
    %1434 = vmatpush2.bf16.msra.mxu0 0
    %1435 = vmatprep.subr.bf16.mxu0 0
    %1436 = vmatpush2.bf16.msra.mxu0 0
    %1437 = vmatprep.subr.bf16.mxu0 0
    %1438 = vmatpush2.bf16.msra.mxu0 0
    %1439 = vmatprep.subr.bf16.mxu0 0
    %1440 = vmatpush2.bf16.msra.mxu0 0
    %1441 = vmatprep.subr.bf16.mxu0 0
    %1442 = vmatpush2.bf16.msra.mxu0 0
    %1443 = vmatprep.subr.bf16.mxu0 0
    %1444 = vmatpush2.bf16.msra.mxu0 0
    %1445 = vmatprep.mubr.bf16.mxu0 0
    %1446 = vmatmul.mubr.bf16.gmra.mxu0 %v1093
    %v1447 = vpop.f32.mrf.mxu0
    %v1448 = vadd.f32 0.0, %v1447
    %v1449 = vpop.f32.mrf.mxu0
    %v1450 = vadd.f32 0.0, %v1449
    %v1451 = vpop.f32.mrf.mxu0
    %v1452 = vadd.f32 0.0, %v1451
    %v1453 = vpop.f32.mrf.mxu0
    %v1454 = vadd.f32 0.0, %v1453
    %1455 = vmatprep.mubr.bf16.mxu0 0
    %1456 = vmatmul.mubr.bf16.gmra.mxu0 %v1096
    %v1457 = vpop.f32.mrf.mxu0
    %v1458 = vadd.f32 0.0, %v1457
    %v1459 = vpop.f32.mrf.mxu0
    %v1460 = vadd.f32 0.0, %v1459
    %v1461 = vpop.f32.mrf.mxu0
    %v1462 = vadd.f32 0.0, %v1461
    %v1463 = vpop.f32.mrf.mxu0
    %v1464 = vadd.f32 0.0, %v1463
    %1465 = vmatprep.mubr.bf16.mxu0 0
    %1466 = vmatmul.mubr.bf16.gmra.mxu0 %v1099
    %v1467 = vpop.f32.mrf.mxu0
    %v1468 = vadd.f32 0.0, %v1467
    %v1469 = vpop.f32.mrf.mxu0
    %v1470 = vadd.f32 0.0, %v1469
    %v1471 = vpop.f32.mrf.mxu0
    %v1472 = vadd.f32 0.0, %v1471
    %v1473 = vpop.f32.mrf.mxu0
    %v1474 = vadd.f32 0.0, %v1473
    %1475 = vdwg.mxu0
    %v1476 = vadd.f32 %v1401, %v1448
    %v1477 = vadd.f32 %v1402, %v1450
    %v1478 = vadd.f32 %v1403, %v1452
    %v1479 = vadd.f32 %v1404, %v1454
    %v1480 = vadd.f32 %v1405, %v1458
    %v1481 = vadd.f32 %v1406, %v1460
    %v1482 = vadd.f32 %v1407, %v1462
    %v1483 = vadd.f32 %v1408, %v1464
    %v1484 = vadd.f32 %v1409, %v1468
    %v1485 = vadd.f32 %v1410, %v1470
    %v1486 = vadd.f32 %v1411, %v1472
    %v1487 = vadd.f32 %v1412, %v1474
    %v1489 = vsel %vm316, %v113, 0
    %v1492 = vsel %vm316, %v114, 0
    %v1495 = vsel %vm316, %v115, 0
    %1497 = vmatprep.subr.bf16.mxu0 0
    %1498 = vmatpush1.bf16.msra.mxu0 0
    %1499 = vmatprep.subr.bf16.mxu0 0
    %1500 = vmatpush1.bf16.msra.mxu0 0
    %1501 = vmatprep.subr.bf16.mxu0 0
    %1502 = vmatpush1.bf16.msra.mxu0 0
    %1503 = vmatprep.subr.bf16.mxu0 0
    %1504 = vmatpush1.bf16.msra.mxu0 0
    %1505 = vmatprep.subr.bf16.mxu0 0
    %1506 = vmatpush1.bf16.msra.mxu0 0
    %1507 = vmatprep.subr.bf16.mxu0 0
    %1508 = vmatpush1.bf16.msra.mxu0 0
    %1509 = vmatprep.subr.bf16.mxu0 %v739
    %1510 = vmatpush1.bf16.msra.mxu0 %v736
    %1511 = vmatprep.subr.bf16.mxu0 %v721
    %1512 = vmatpush1.bf16.msra.mxu0 %v720
    %1513 = vmatprep.subr.bf16.mxu0 0
    %1514 = vmatpush2.bf16.msra.mxu0 0
    %1515 = vmatprep.subr.bf16.mxu0 0
    %1516 = vmatpush2.bf16.msra.mxu0 0
    %1517 = vmatprep.subr.bf16.mxu0 0
    %1518 = vmatpush2.bf16.msra.mxu0 0
    %1519 = vmatprep.subr.bf16.mxu0 0
    %1520 = vmatpush2.bf16.msra.mxu0 0
    %1521 = vmatprep.subr.bf16.mxu0 0
    %1522 = vmatpush2.bf16.msra.mxu0 0
    %1523 = vmatprep.subr.bf16.mxu0 0
    %1524 = vmatpush2.bf16.msra.mxu0 0
    %1525 = vmatprep.subr.bf16.mxu0 0
    %1526 = vmatpush2.bf16.msra.mxu0 0
    %1527 = vmatprep.subr.bf16.mxu0 0
    %1528 = vmatpush2.bf16.msra.mxu0 0
    %1529 = vmatprep.mubr.bf16.mxu0 0
    %1530 = vmatmul.mubr.bf16.gmra.mxu0 %v1489
    %v1531 = vpop.f32.mrf.mxu0
    %v1532 = vadd.f32 0.0, %v1531
    %v1533 = vpop.f32.mrf.mxu0
    %v1534 = vadd.f32 0.0, %v1533
    %v1535 = vpop.f32.mrf.mxu0
    %v1536 = vadd.f32 0.0, %v1535
    %v1537 = vpop.f32.mrf.mxu0
    %v1538 = vadd.f32 0.0, %v1537
    %1539 = vmatprep.mubr.bf16.mxu0 0
    %1540 = vmatmul.mubr.bf16.gmra.mxu0 %v1492
    %v1541 = vpop.f32.mrf.mxu0
    %v1542 = vadd.f32 0.0, %v1541
    %v1543 = vpop.f32.mrf.mxu0
    %v1544 = vadd.f32 0.0, %v1543
    %v1545 = vpop.f32.mrf.mxu0
    %v1546 = vadd.f32 0.0, %v1545
    %v1547 = vpop.f32.mrf.mxu0
    %v1548 = vadd.f32 0.0, %v1547
    %1549 = vmatprep.mubr.bf16.mxu0 0
    %1550 = vmatmul.mubr.bf16.gmra.mxu0 %v1495
    %v1551 = vpop.f32.mrf.mxu0
    %v1552 = vadd.f32 0.0, %v1551
    %v1553 = vpop.f32.mrf.mxu0
    %v1554 = vadd.f32 0.0, %v1553
    %v1555 = vpop.f32.mrf.mxu0
    %v1556 = vadd.f32 0.0, %v1555
    %v1557 = vpop.f32.mrf.mxu0
    %v1558 = vadd.f32 0.0, %v1557
    %1559 = vdwg.mxu0
    %v1560 = vadd.f32 %v1476, %v1532
    %v1561 = vadd.f32 %v1477, %v1534
    %v1562 = vadd.f32 %v1478, %v1536
    %v1563 = vadd.f32 %v1479, %v1538
    %v1564 = vadd.f32 %v1480, %v1542
    %v1565 = vadd.f32 %v1481, %v1544
    %v1566 = vadd.f32 %v1482, %v1546
    %v1567 = vadd.f32 %v1483, %v1548
    %v1568 = vadd.f32 %v1484, %v1552
    %v1569 = vadd.f32 %v1485, %v1554
    %v1570 = vadd.f32 %v1486, %v1556
    %v1571 = vadd.f32 %v1487, %v1558
    %1572 = vmatprep.subr.bf16.mxu0 0
    %1573 = vmatpush1.bf16.msra.mxu0 0
    %1574 = vmatprep.subr.bf16.mxu0 0
    %1575 = vmatpush1.bf16.msra.mxu0 0
    %1576 = vmatprep.subr.bf16.mxu0 0
    %1577 = vmatpush1.bf16.msra.mxu0 0
    %1578 = vmatprep.subr.bf16.mxu0 0
    %1579 = vmatpush1.bf16.msra.mxu0 0
    %1580 = vmatprep.subr.bf16.mxu0 0
    %1581 = vmatpush1.bf16.msra.mxu0 0
    %1582 = vmatprep.subr.bf16.mxu0 0
    %1583 = vmatpush1.bf16.msra.mxu0 0
    %1584 = vmatprep.subr.bf16.mxu0 %v331
    %1585 = vmatpush1.bf16.msra.mxu0 %v328
    %1586 = vmatprep.subr.bf16.mxu0 %v311
    %1587 = vmatpush1.bf16.msra.mxu0 %v310
    %1588 = vmatprep.subr.bf16.mxu0 0
    %1589 = vmatpush2.bf16.msra.mxu0 0
    %1590 = vmatprep.subr.bf16.mxu0 0
    %1591 = vmatpush2.bf16.msra.mxu0 0
    %1592 = vmatprep.subr.bf16.mxu0 0
    %1593 = vmatpush2.bf16.msra.mxu0 0
    %1594 = vmatprep.subr.bf16.mxu0 0
    %1595 = vmatpush2.bf16.msra.mxu0 0
    %1596 = vmatprep.subr.bf16.mxu0 0
    %1597 = vmatpush2.bf16.msra.mxu0 0
    %1598 = vmatprep.subr.bf16.mxu0 0
    %1599 = vmatpush2.bf16.msra.mxu0 0
    %1600 = vmatprep.subr.bf16.mxu0 0
    %1601 = vmatpush2.bf16.msra.mxu0 0
    %1602 = vmatprep.subr.bf16.mxu0 0
    %1603 = vmatpush2.bf16.msra.mxu0 0
    %1604 = vmatprep.mubr.bf16.mxu0 0
    %1605 = vmatmul.mubr.bf16.gmra.mxu0 %v727
    %v1606 = vpop.f32.mrf.mxu0
    %v1607 = vadd.f32 0.0, %v1606
    %v1608 = vpop.f32.mrf.mxu0
    %v1609 = vadd.f32 0.0, %v1608
    %v1610 = vpop.f32.mrf.mxu0
    %v1611 = vadd.f32 0.0, %v1610
    %v1612 = vpop.f32.mrf.mxu0
    %v1613 = vadd.f32 0.0, %v1612
    %1614 = vmatprep.mubr.bf16.mxu0 0
    %1615 = vmatmul.mubr.bf16.gmra.mxu0 %v730
    %v1616 = vpop.f32.mrf.mxu0
    %v1617 = vadd.f32 0.0, %v1616
    %v1618 = vpop.f32.mrf.mxu0
    %v1619 = vadd.f32 0.0, %v1618
    %v1620 = vpop.f32.mrf.mxu0
    %v1621 = vadd.f32 0.0, %v1620
    %v1622 = vpop.f32.mrf.mxu0
    %v1623 = vadd.f32 0.0, %v1622
    %1624 = vmatprep.mubr.bf16.mxu0 0
    %1625 = vmatmul.mubr.bf16.gmra.mxu0 %v733
    %v1626 = vpop.f32.mrf.mxu0
    %v1627 = vadd.f32 0.0, %v1626
    %v1628 = vpop.f32.mrf.mxu0
    %v1629 = vadd.f32 0.0, %v1628
    %v1630 = vpop.f32.mrf.mxu0
    %v1631 = vadd.f32 0.0, %v1630
    %v1632 = vpop.f32.mrf.mxu0
    %v1633 = vadd.f32 0.0, %v1632
    %1634 = vdwg.mxu0
    %1635 = vmatprep.subr.bf16.mxu0 0
    %1636 = vmatpush1.bf16.msra.mxu0 0
    %1637 = vmatprep.subr.bf16.mxu0 0
    %1638 = vmatpush1.bf16.msra.mxu0 0
    %1639 = vmatprep.subr.bf16.mxu0 0
    %1640 = vmatpush1.bf16.msra.mxu0 0
    %1641 = vmatprep.subr.bf16.mxu0 0
    %1642 = vmatpush1.bf16.msra.mxu0 0
    %1643 = vmatprep.subr.bf16.mxu0 0
    %1644 = vmatpush1.bf16.msra.mxu0 0
    %1645 = vmatprep.subr.bf16.mxu0 0
    %1646 = vmatpush1.bf16.msra.mxu0 0
    %1647 = vmatprep.subr.bf16.mxu0 %v427
    %1648 = vmatpush1.bf16.msra.mxu0 %v424
    %1649 = vmatprep.subr.bf16.mxu0 %v409
    %1650 = vmatpush1.bf16.msra.mxu0 %v408
    %1651 = vmatprep.subr.bf16.mxu0 0
    %1652 = vmatpush2.bf16.msra.mxu0 0
    %1653 = vmatprep.subr.bf16.mxu0 0
    %1654 = vmatpush2.bf16.msra.mxu0 0
    %1655 = vmatprep.subr.bf16.mxu0 0
    %1656 = vmatpush2.bf16.msra.mxu0 0
    %1657 = vmatprep.subr.bf16.mxu0 0
    %1658 = vmatpush2.bf16.msra.mxu0 0
    %1659 = vmatprep.subr.bf16.mxu0 0
    %1660 = vmatpush2.bf16.msra.mxu0 0
    %1661 = vmatprep.subr.bf16.mxu0 0
    %1662 = vmatpush2.bf16.msra.mxu0 0
    %1663 = vmatprep.subr.bf16.mxu0 0
    %1664 = vmatpush2.bf16.msra.mxu0 0
    %1665 = vmatprep.subr.bf16.mxu0 0
    %1666 = vmatpush2.bf16.msra.mxu0 0
    %1667 = vmatprep.mubr.bf16.mxu0 0
    %1668 = vmatmul.mubr.bf16.gmra.mxu0 %v619
    %v1669 = vpop.f32.mrf.mxu0
    %v1670 = vadd.f32 %v1607, %v1669
    %v1671 = vpop.f32.mrf.mxu0
    %v1672 = vadd.f32 %v1609, %v1671
    %v1673 = vpop.f32.mrf.mxu0
    %v1674 = vadd.f32 %v1611, %v1673
    %v1675 = vpop.f32.mrf.mxu0
    %v1676 = vadd.f32 %v1613, %v1675
    %1677 = vmatprep.mubr.bf16.mxu0 0
    %1678 = vmatmul.mubr.bf16.gmra.mxu0 %v622
    %v1679 = vpop.f32.mrf.mxu0
    %v1680 = vadd.f32 %v1617, %v1679
    %v1681 = vpop.f32.mrf.mxu0
    %v1682 = vadd.f32 %v1619, %v1681
    %v1683 = vpop.f32.mrf.mxu0
    %v1684 = vadd.f32 %v1621, %v1683
    %v1685 = vpop.f32.mrf.mxu0
    %v1686 = vadd.f32 %v1623, %v1685
    %1687 = vmatprep.mubr.bf16.mxu0 0
    %1688 = vmatmul.mubr.bf16.gmra.mxu0 %v625
    %v1689 = vpop.f32.mrf.mxu0
    %v1690 = vadd.f32 %v1627, %v1689
    %v1691 = vpop.f32.mrf.mxu0
    %v1692 = vadd.f32 %v1629, %v1691
    %v1693 = vpop.f32.mrf.mxu0
    %v1694 = vadd.f32 %v1631, %v1693
    %v1695 = vpop.f32.mrf.mxu0
    %v1696 = vadd.f32 %v1633, %v1695
    %1697 = vdwg.mxu0
    %1698 = vmatprep.subr.bf16.mxu0 0
    %1699 = vmatpush1.bf16.msra.mxu0 0
    %1700 = vmatprep.subr.bf16.mxu0 0
    %1701 = vmatpush1.bf16.msra.mxu0 0
    %1702 = vmatprep.subr.bf16.mxu0 0
    %1703 = vmatpush1.bf16.msra.mxu0 0
    %1704 = vmatprep.subr.bf16.mxu0 0
    %1705 = vmatpush1.bf16.msra.mxu0 0
    %1706 = vmatprep.subr.bf16.mxu0 0
    %1707 = vmatpush1.bf16.msra.mxu0 0
    %1708 = vmatprep.subr.bf16.mxu0 0
    %1709 = vmatpush1.bf16.msra.mxu0 0
    %1710 = vmatprep.subr.bf16.mxu0 %v523
    %1711 = vmatpush1.bf16.msra.mxu0 %v520
    %1712 = vmatprep.subr.bf16.mxu0 %v505
    %1713 = vmatpush1.bf16.msra.mxu0 %v504
    %1714 = vmatprep.subr.bf16.mxu0 0
    %1715 = vmatpush2.bf16.msra.mxu0 0
    %1716 = vmatprep.subr.bf16.mxu0 0
    %1717 = vmatpush2.bf16.msra.mxu0 0
    %1718 = vmatprep.subr.bf16.mxu0 0
    %1719 = vmatpush2.bf16.msra.mxu0 0
    %1720 = vmatprep.subr.bf16.mxu0 0
    %1721 = vmatpush2.bf16.msra.mxu0 0
    %1722 = vmatprep.subr.bf16.mxu0 0
    %1723 = vmatpush2.bf16.msra.mxu0 0
    %1724 = vmatprep.subr.bf16.mxu0 0
    %1725 = vmatpush2.bf16.msra.mxu0 0
    %1726 = vmatprep.subr.bf16.mxu0 0
    %1727 = vmatpush2.bf16.msra.mxu0 0
    %1728 = vmatprep.subr.bf16.mxu0 0
    %1729 = vmatpush2.bf16.msra.mxu0 0
    %1730 = vmatprep.mubr.bf16.mxu0 0
    %1731 = vmatmul.mubr.bf16.gmra.mxu0 %v1093
    %v1732 = vpop.f32.mrf.mxu0
    %v1733 = vadd.f32 0.0, %v1732
    %v1734 = vpop.f32.mrf.mxu0
    %v1735 = vadd.f32 0.0, %v1734
    %v1736 = vpop.f32.mrf.mxu0
    %v1737 = vadd.f32 0.0, %v1736
    %v1738 = vpop.f32.mrf.mxu0
    %v1739 = vadd.f32 0.0, %v1738
    %1740 = vmatprep.mubr.bf16.mxu0 0
    %1741 = vmatmul.mubr.bf16.gmra.mxu0 %v1096
    %v1742 = vpop.f32.mrf.mxu0
    %v1743 = vadd.f32 0.0, %v1742
    %v1744 = vpop.f32.mrf.mxu0
    %v1745 = vadd.f32 0.0, %v1744
    %v1746 = vpop.f32.mrf.mxu0
    %v1747 = vadd.f32 0.0, %v1746
    %v1748 = vpop.f32.mrf.mxu0
    %v1749 = vadd.f32 0.0, %v1748
    %1750 = vmatprep.mubr.bf16.mxu0 0
    %1751 = vmatmul.mubr.bf16.gmra.mxu0 %v1099
    %v1752 = vpop.f32.mrf.mxu0
    %v1753 = vadd.f32 0.0, %v1752
    %v1754 = vpop.f32.mrf.mxu0
    %v1755 = vadd.f32 0.0, %v1754
    %v1756 = vpop.f32.mrf.mxu0
    %v1757 = vadd.f32 0.0, %v1756
    %v1758 = vpop.f32.mrf.mxu0
    %v1759 = vadd.f32 0.0, %v1758
    %1760 = vdwg.mxu0
    %v1761 = vadd.f32 %v1670, %v1733
    %v1762 = vadd.f32 %v1672, %v1735
    %v1763 = vadd.f32 %v1674, %v1737
    %v1764 = vadd.f32 %v1676, %v1739
    %v1765 = vadd.f32 %v1680, %v1743
    %v1766 = vadd.f32 %v1682, %v1745
    %v1767 = vadd.f32 %v1684, %v1747
    %v1768 = vadd.f32 %v1686, %v1749
    %v1769 = vadd.f32 %v1690, %v1753
    %v1770 = vadd.f32 %v1692, %v1755
    %v1771 = vadd.f32 %v1694, %v1757
    %v1772 = vadd.f32 %v1696, %v1759
    %1773 = vmatprep.subr.bf16.mxu0 0
    %1774 = vmatpush1.bf16.msra.mxu0 0
    %1775 = vmatprep.subr.bf16.mxu0 0
    %1776 = vmatpush1.bf16.msra.mxu0 0
    %1777 = vmatprep.subr.bf16.mxu0 0
    %1778 = vmatpush1.bf16.msra.mxu0 0
    %1779 = vmatprep.subr.bf16.mxu0 0
    %1780 = vmatpush1.bf16.msra.mxu0 0
    %1781 = vmatprep.subr.bf16.mxu0 0
    %1782 = vmatpush1.bf16.msra.mxu0 0
    %1783 = vmatprep.subr.bf16.mxu0 0
    %1784 = vmatpush1.bf16.msra.mxu0 0
    %1785 = vmatprep.subr.bf16.mxu0 %v631
    %1786 = vmatpush1.bf16.msra.mxu0 %v628
    %1787 = vmatprep.subr.bf16.mxu0 %v613
    %1788 = vmatpush1.bf16.msra.mxu0 %v612
    %1789 = vmatprep.subr.bf16.mxu0 0
    %1790 = vmatpush2.bf16.msra.mxu0 0
    %1791 = vmatprep.subr.bf16.mxu0 0
    %1792 = vmatpush2.bf16.msra.mxu0 0
    %1793 = vmatprep.subr.bf16.mxu0 0
    %1794 = vmatpush2.bf16.msra.mxu0 0
    %1795 = vmatprep.subr.bf16.mxu0 0
    %1796 = vmatpush2.bf16.msra.mxu0 0
    %1797 = vmatprep.subr.bf16.mxu0 0
    %1798 = vmatpush2.bf16.msra.mxu0 0
    %1799 = vmatprep.subr.bf16.mxu0 0
    %1800 = vmatpush2.bf16.msra.mxu0 0
    %1801 = vmatprep.subr.bf16.mxu0 0
    %1802 = vmatpush2.bf16.msra.mxu0 0
    %1803 = vmatprep.subr.bf16.mxu0 0
    %1804 = vmatpush2.bf16.msra.mxu0 0
    %1805 = vmatprep.mubr.bf16.mxu0 0
    %1806 = vmatmul.mubr.bf16.gmra.mxu0 %v1489
    %v1807 = vpop.f32.mrf.mxu0
    %v1808 = vadd.f32 0.0, %v1807
    %v1809 = vpop.f32.mrf.mxu0
    %v1810 = vadd.f32 0.0, %v1809
    %v1811 = vpop.f32.mrf.mxu0
    %v1812 = vadd.f32 0.0, %v1811
    %v1813 = vpop.f32.mrf.mxu0
    %v1814 = vadd.f32 0.0, %v1813
    %1815 = vmatprep.mubr.bf16.mxu0 0
    %1816 = vmatmul.mubr.bf16.gmra.mxu0 %v1492
    %v1817 = vpop.f32.mrf.mxu0
    %v1818 = vadd.f32 0.0, %v1817
    %v1819 = vpop.f32.mrf.mxu0
    %v1820 = vadd.f32 0.0, %v1819
    %v1821 = vpop.f32.mrf.mxu0
    %v1822 = vadd.f32 0.0, %v1821
    %v1823 = vpop.f32.mrf.mxu0
    %v1824 = vadd.f32 0.0, %v1823
    %1825 = vmatprep.mubr.bf16.mxu0 0
    %1826 = vmatmul.mubr.bf16.gmra.mxu0 %v1495
    %v1827 = vpop.f32.mrf.mxu0
    %v1828 = vadd.f32 0.0, %v1827
    %v1829 = vpop.f32.mrf.mxu0
    %v1830 = vadd.f32 0.0, %v1829
    %v1831 = vpop.f32.mrf.mxu0
    %v1832 = vadd.f32 0.0, %v1831
    %v1833 = vpop.f32.mrf.mxu0
    %v1834 = vadd.f32 0.0, %v1833
    %1835 = vdwg.mxu0
    %v1836 = vadd.f32 %v1761, %v1808
    %v1837 = vadd.f32 %v1762, %v1810
    %v1838 = vadd.f32 %v1763, %v1812
    %v1839 = vadd.f32 %v1764, %v1814
    %v1840 = vadd.f32 %v1765, %v1818
    %v1841 = vadd.f32 %v1766, %v1820
    %v1842 = vadd.f32 %v1767, %v1822
    %v1843 = vadd.f32 %v1768, %v1824
    %v1844 = vadd.f32 %v1769, %v1828
    %v1845 = vadd.f32 %v1770, %v1830
    %v1846 = vadd.f32 %v1771, %v1832
    %v1847 = vadd.f32 %v1772, %v1834
    %v1849 = vsel %vm316, %v119, 0
    %v1852 = vsel %vm316, %v120, 0
    %v1855 = vsel %vm316, %v121, 0
    %1857 = vmatprep.subr.bf16.mxu0 0
    %1858 = vmatpush1.bf16.msra.mxu0 0
    %1859 = vmatprep.subr.bf16.mxu0 0
    %1860 = vmatpush1.bf16.msra.mxu0 0
    %1861 = vmatprep.subr.bf16.mxu0 0
    %1862 = vmatpush1.bf16.msra.mxu0 0
    %1863 = vmatprep.subr.bf16.mxu0 0
    %1864 = vmatpush1.bf16.msra.mxu0 0
    %1865 = vmatprep.subr.bf16.mxu0 0
    %1866 = vmatpush1.bf16.msra.mxu0 0
    %1867 = vmatprep.subr.bf16.mxu0 0
    %1868 = vmatpush1.bf16.msra.mxu0 0
    %1869 = vmatprep.subr.bf16.mxu0 %v739
    %1870 = vmatpush1.bf16.msra.mxu0 %v736
    %1871 = vmatprep.subr.bf16.mxu0 %v721
    %1872 = vmatpush1.bf16.msra.mxu0 %v720
    %1873 = vmatprep.subr.bf16.mxu0 0
    %1874 = vmatpush2.bf16.msra.mxu0 0
    %1875 = vmatprep.subr.bf16.mxu0 0
    %1876 = vmatpush2.bf16.msra.mxu0 0
    %1877 = vmatprep.subr.bf16.mxu0 0
    %1878 = vmatpush2.bf16.msra.mxu0 0
    %1879 = vmatprep.subr.bf16.mxu0 0
    %1880 = vmatpush2.bf16.msra.mxu0 0
    %1881 = vmatprep.subr.bf16.mxu0 0
    %1882 = vmatpush2.bf16.msra.mxu0 0
    %1883 = vmatprep.subr.bf16.mxu0 0
    %1884 = vmatpush2.bf16.msra.mxu0 0
    %1885 = vmatprep.subr.bf16.mxu0 0
    %1886 = vmatpush2.bf16.msra.mxu0 0
    %1887 = vmatprep.subr.bf16.mxu0 0
    %1888 = vmatpush2.bf16.msra.mxu0 0
    %1889 = vmatprep.mubr.bf16.mxu0 0
    %1890 = vmatmul.mubr.bf16.gmra.mxu0 %v1849
    %v1891 = vpop.f32.mrf.mxu0
    %v1892 = vadd.f32 0.0, %v1891
    %v1893 = vpop.f32.mrf.mxu0
    %v1894 = vadd.f32 0.0, %v1893
    %v1895 = vpop.f32.mrf.mxu0
    %v1896 = vadd.f32 0.0, %v1895
    %v1897 = vpop.f32.mrf.mxu0
    %v1898 = vadd.f32 0.0, %v1897
    %1899 = vmatprep.mubr.bf16.mxu0 0
    %1900 = vmatmul.mubr.bf16.gmra.mxu0 %v1852
    %v1901 = vpop.f32.mrf.mxu0
    %v1902 = vadd.f32 0.0, %v1901
    %v1903 = vpop.f32.mrf.mxu0
    %v1904 = vadd.f32 0.0, %v1903
    %v1905 = vpop.f32.mrf.mxu0
    %v1906 = vadd.f32 0.0, %v1905
    %v1907 = vpop.f32.mrf.mxu0
    %v1908 = vadd.f32 0.0, %v1907
    %1909 = vmatprep.mubr.bf16.mxu0 0
    %1910 = vmatmul.mubr.bf16.gmra.mxu0 %v1855
    %v1911 = vpop.f32.mrf.mxu0
    %v1912 = vadd.f32 0.0, %v1911
    %v1913 = vpop.f32.mrf.mxu0
    %v1914 = vadd.f32 0.0, %v1913
    %v1915 = vpop.f32.mrf.mxu0
    %v1916 = vadd.f32 0.0, %v1915
    %v1917 = vpop.f32.mrf.mxu0
    %v1918 = vadd.f32 0.0, %v1917
    %1919 = vdwg.mxu0
    %v1920 = vadd.f32 %v1836, %v1892
    %v1921 = vadd.f32 %v1837, %v1894
    %v1922 = vadd.f32 %v1838, %v1896
    %v1923 = vadd.f32 %v1839, %v1898
    %v1924 = vadd.f32 %v1840, %v1902
    %v1925 = vadd.f32 %v1841, %v1904
    %v1926 = vadd.f32 %v1842, %v1906
    %v1927 = vadd.f32 %v1843, %v1908
    %v1928 = vadd.f32 %v1844, %v1912
    %v1929 = vadd.f32 %v1845, %v1914
    %v1930 = vadd.f32 %v1846, %v1916
    %v1931 = vadd.f32 %v1847, %v1918
    %v1932 = vmax.f32 %v1560, %v1920
    %v1933 = vmax.f32 %v1561, %v1921
    %v1934 = vmax.f32 %v1562, %v1922
    %v1935 = vmax.f32 %v1563, %v1923
    %v1936 = vmax.f32 %v1564, %v1924
    %v1937 = vmax.f32 %v1565, %v1925
    %v1938 = vmax.f32 %v1566, %v1926
    %v1939 = vmax.f32 %v1567, %v1927
    %v1940 = vmax.f32 %v1568, %v1928
    %v1941 = vmax.f32 %v1569, %v1929
    %v1942 = vmax.f32 %v1570, %v1930
    %v1943 = vmax.f32 %v1571, %v1931
    %v1944 = vmax.f32 %v1932, %v1933
    %v1945 = vmax.f32 %v1934, %v1935
    %v1946 = vmax.f32 %v1936, %v1937
    %v1947 = vmax.f32 %v1938, %v1939
    %v1948 = vmax.f32 %v1940, %v1941
    %v1949 = vmax.f32 %v1942, %v1943
    %v1950 = vadd.f32 %v1944, %v1198
    %v1951 = vadd.f32 %v1945, %v1198
    %v1952 = vadd.f32 %v1946, %v1198
    %v1953 = vadd.f32 %v1947, %v1198
    %v1954 = vadd.f32 %v1948, %v1198
    %v1955 = vadd.f32 %v1949, %v1198
    %v1956 = vmax.f32 %v1950, 0.0
    %v1957 = vmax.f32 %v1951, 0.0
    %v1958 = vmax.f32 %v1952, 0.0
    %v1959 = vmax.f32 %v1953, 0.0
    %v1960 = vmax.f32 %v1954, 0.0
    %v1961 = vmax.f32 %v1955, 0.0
    %v1962 = vpack.c.bf16 %v1207, %v1206
    %v1963 = vpack.c.bf16 %v1209, %v1208
    %v1964 = vpack.c.bf16 %v1957, %v1956
    %v1965 = vpack.c.bf16 %v1959, %v1958
    %v1982 = vunpack.c.l.b16 %v163
    %v1983 = vunpack.c.h.b16 %v163
    %v1984 = vunpack.c.l.b16 %v164
    %v1985 = vunpack.c.h.b16 %v164
    %v1986 = vunpack.c.l.b16 %v165
    %v1987 = vunpack.c.h.b16 %v165
    %v1988 = vunpack.c.l.b16 %v166
    %v1989 = vunpack.c.h.b16 %v166
    %v1990 = vunpack.c.l.b16 %v167
    %v1991 = vunpack.c.h.b16 %v167
    %v1992 = vunpack.c.l.b16 %v168
    %v1993 = vunpack.c.h.b16 %v168
    %v1994 = vunpack.c.l.b16 %v169
    %v1995 = vunpack.c.h.b16 %v169
    %v1996 = vunpack.c.l.b16 %v170
    %v1997 = vunpack.c.h.b16 %v170
    %v1998 = vunpack.c.l.b16 %v171
    %v1999 = vunpack.c.h.b16 %v171
    %v2000 = vunpack.c.l.b16 %v172
    %v2001 = vunpack.c.h.b16 %v172
    %v2002 = vunpack.c.l.b16 %v173
    %v2003 = vunpack.c.h.b16 %v173
    %v2004 = vunpack.c.l.b16 %v174
    %v2005 = vunpack.c.h.b16 %v174
    %v2006 = vunpack.c.l.b16 %v175
    %v2007 = vunpack.c.h.b16 %v175
    %v2008 = vunpack.c.l.b16 %v176
    %v2009 = vunpack.c.h.b16 %v176
    %v2010 = vunpack.c.l.b16 %v177
    %v2011 = vunpack.c.h.b16 %v177
    %v2012 = vunpack.c.l.b16 %v178
    %v2013 = vunpack.c.h.b16 %v178
    %v2014 = vpack.c.b16 %v1984, %v1982
    %v2015 = vpack.c.b16 %v1985, %v1983
    %v2016 = vpack.c.b16 %v1988, %v1986
    %v2017 = vpack.c.b16 %v1989, %v1987
    %v2018 = vpack.c.b16 %v1992, %v1990
    %v2019 = vpack.c.b16 %v1993, %v1991
    %v2020 = vpack.c.b16 %v1996, %v1994
    %v2021 = vpack.c.b16 %v1997, %v1995
    %v2022 = vpack.c.b16 %v2000, %v1998
    %v2023 = vpack.c.b16 %v2001, %v1999
    %v2024 = vpack.c.b16 %v2004, %v2002
    %v2025 = vpack.c.b16 %v2005, %v2003
    %v2026 = vpack.c.b16 %v2008, %v2006
    %v2027 = vpack.c.b16 %v2009, %v2007
    %v2028 = vpack.c.b16 %v2012, %v2010
    %v2029 = vpack.c.b16 %v2013, %v2011
    %2046 = vmatprep.subr.bf16.mxu0 %v2029
    %2047 = vmatpush1.bf16.msra.mxu0 %v2028
    %2048 = vmatprep.subr.bf16.mxu0 %v2027
    %2049 = vmatpush1.bf16.msra.mxu0 %v2026
    %2050 = vmatprep.subr.bf16.mxu0 %v2025
    %2051 = vmatpush1.bf16.msra.mxu0 %v2024
    %2052 = vmatprep.subr.bf16.mxu0 %v2023
    %2053 = vmatpush1.bf16.msra.mxu0 %v2022
    %2054 = vmatprep.subr.bf16.mxu0 %v2021
    %2055 = vmatpush1.bf16.msra.mxu0 %v2020
    %2056 = vmatprep.subr.bf16.mxu0 %v2019
    %2057 = vmatpush1.bf16.msra.mxu0 %v2018
    %2058 = vmatprep.subr.bf16.mxu0 %v2017
    %2059 = vmatpush1.bf16.msra.mxu0 %v2016
    %2060 = vmatprep.subr.bf16.mxu0 %v2015
    %2061 = vmatpush1.bf16.msra.mxu0 %v2014
    %2062 = vmatprep.subr.bf16.mxu0 0
    %2063 = vmatpush2.bf16.msra.mxu0 0
    %2064 = vmatprep.subr.bf16.mxu0 0
    %2065 = vmatpush2.bf16.msra.mxu0 0
    %2066 = vmatprep.subr.bf16.mxu0 0
    %2067 = vmatpush2.bf16.msra.mxu0 0
    %2068 = vmatprep.subr.bf16.mxu0 0
    %2069 = vmatpush2.bf16.msra.mxu0 0
    %2070 = vmatprep.subr.bf16.mxu0 0
    %2071 = vmatpush2.bf16.msra.mxu0 0
    %2072 = vmatprep.subr.bf16.mxu0 0
    %2073 = vmatpush2.bf16.msra.mxu0 0
    %2074 = vmatprep.subr.bf16.mxu0 0
    %2075 = vmatpush2.bf16.msra.mxu0 0
    %2076 = vmatprep.subr.bf16.mxu0 0
    %2077 = vmatpush2.bf16.msra.mxu0 0
    %2078 = vmatprep.mubr.bf16.mxu0 0
    %2079 = vmatmul.mubr.bf16.gmra.mxu0 %v1964
    %v2080 = vpop.f32.mrf.mxu0
    %v2081 = vadd.f32 0.0, %v2080
    %v2082 = vpop.f32.mrf.mxu0
    %v2083 = vadd.f32 0.0, %v2082
    %v2084 = vpop.f32.mrf.mxu0
    %v2085 = vadd.f32 0.0, %v2084
    %v2086 = vpop.f32.mrf.mxu0
    %v2087 = vadd.f32 0.0, %v2086
    %2088 = vmatprep.mubr.bf16.mxu0 0
    %2089 = vmatmul.mubr.bf16.gmra.mxu0 %v1965
    %v2090 = vpop.f32.mrf.mxu0
    %v2091 = vadd.f32 0.0, %v2090
    %v2092 = vpop.f32.mrf.mxu0
    %v2093 = vadd.f32 0.0, %v2092
    %v2094 = vpop.f32.mrf.mxu0
    %v2095 = vadd.f32 0.0, %v2094
    %v2096 = vpop.f32.mrf.mxu0
    %v2097 = vadd.f32 0.0, %v2096
    %2098 = vdwg.mxu0
    %v2115 = vunpack.c.l.b16 %v146
    %v2116 = vunpack.c.h.b16 %v146
    %v2117 = vunpack.c.l.b16 %v147
    %v2118 = vunpack.c.h.b16 %v147
    %v2119 = vunpack.c.l.b16 %v148
    %v2120 = vunpack.c.h.b16 %v148
    %v2121 = vunpack.c.l.b16 %v149
    %v2122 = vunpack.c.h.b16 %v149
    %v2123 = vunpack.c.l.b16 %v150
    %v2124 = vunpack.c.h.b16 %v150
    %v2125 = vunpack.c.l.b16 %v151
    %v2126 = vunpack.c.h.b16 %v151
    %v2127 = vunpack.c.l.b16 %v152
    %v2128 = vunpack.c.h.b16 %v152
    %v2129 = vunpack.c.l.b16 %v153
    %v2130 = vunpack.c.h.b16 %v153
    %v2131 = vunpack.c.l.b16 %v154
    %v2132 = vunpack.c.h.b16 %v154
    %v2133 = vunpack.c.l.b16 %v155
    %v2134 = vunpack.c.h.b16 %v155
    %v2135 = vunpack.c.l.b16 %v156
    %v2136 = vunpack.c.h.b16 %v156
    %v2137 = vunpack.c.l.b16 %v157
    %v2138 = vunpack.c.h.b16 %v157
    %v2139 = vunpack.c.l.b16 %v158
    %v2140 = vunpack.c.h.b16 %v158
    %v2141 = vunpack.c.l.b16 %v159
    %v2142 = vunpack.c.h.b16 %v159
    %v2143 = vunpack.c.l.b16 %v160
    %v2144 = vunpack.c.h.b16 %v160
    %v2145 = vunpack.c.l.b16 %v161
    %v2146 = vunpack.c.h.b16 %v161
    %v2147 = vpack.c.b16 %v2117, %v2115
    %v2148 = vpack.c.b16 %v2118, %v2116
    %v2149 = vpack.c.b16 %v2121, %v2119
    %v2150 = vpack.c.b16 %v2122, %v2120
    %v2151 = vpack.c.b16 %v2125, %v2123
    %v2152 = vpack.c.b16 %v2126, %v2124
    %v2153 = vpack.c.b16 %v2129, %v2127
    %v2154 = vpack.c.b16 %v2130, %v2128
    %v2155 = vpack.c.b16 %v2133, %v2131
    %v2156 = vpack.c.b16 %v2134, %v2132
    %v2157 = vpack.c.b16 %v2137, %v2135
    %v2158 = vpack.c.b16 %v2138, %v2136
    %v2159 = vpack.c.b16 %v2141, %v2139
    %v2160 = vpack.c.b16 %v2142, %v2140
    %v2161 = vpack.c.b16 %v2145, %v2143
    %v2162 = vpack.c.b16 %v2146, %v2144
    %2179 = vmatprep.subr.bf16.mxu0 %v2162
    %2180 = vmatpush1.bf16.msra.mxu0 %v2161
    %2181 = vmatprep.subr.bf16.mxu0 %v2160
    %2182 = vmatpush1.bf16.msra.mxu0 %v2159
    %2183 = vmatprep.subr.bf16.mxu0 %v2158
    %2184 = vmatpush1.bf16.msra.mxu0 %v2157
    %2185 = vmatprep.subr.bf16.mxu0 %v2156
    %2186 = vmatpush1.bf16.msra.mxu0 %v2155
    %2187 = vmatprep.subr.bf16.mxu0 %v2154
    %2188 = vmatpush1.bf16.msra.mxu0 %v2153
    %2189 = vmatprep.subr.bf16.mxu0 %v2152
    %2190 = vmatpush1.bf16.msra.mxu0 %v2151
    %2191 = vmatprep.subr.bf16.mxu0 %v2150
    %2192 = vmatpush1.bf16.msra.mxu0 %v2149
    %2193 = vmatprep.subr.bf16.mxu0 %v2148
    %2194 = vmatpush1.bf16.msra.mxu0 %v2147
    %2195 = vmatprep.subr.bf16.mxu0 0
    %2196 = vmatpush2.bf16.msra.mxu0 0
    %2197 = vmatprep.subr.bf16.mxu0 0
    %2198 = vmatpush2.bf16.msra.mxu0 0
    %2199 = vmatprep.subr.bf16.mxu0 0
    %2200 = vmatpush2.bf16.msra.mxu0 0
    %2201 = vmatprep.subr.bf16.mxu0 0
    %2202 = vmatpush2.bf16.msra.mxu0 0
    %2203 = vmatprep.subr.bf16.mxu0 0
    %2204 = vmatpush2.bf16.msra.mxu0 0
    %2205 = vmatprep.subr.bf16.mxu0 0
    %2206 = vmatpush2.bf16.msra.mxu0 0
    %2207 = vmatprep.subr.bf16.mxu0 0
    %2208 = vmatpush2.bf16.msra.mxu0 0
    %2209 = vmatprep.subr.bf16.mxu0 0
    %2210 = vmatpush2.bf16.msra.mxu0 0
    %2211 = vmatprep.mubr.bf16.mxu0 0
    %2212 = vmatmul.mubr.bf16.gmra.mxu0 %v1962
    %v2213 = vpop.f32.mrf.mxu0
    %v2214 = vadd.f32 %v2081, %v2213
    %v2215 = vpop.f32.mrf.mxu0
    %v2216 = vadd.f32 %v2083, %v2215
    %v2217 = vpop.f32.mrf.mxu0
    %v2218 = vadd.f32 %v2085, %v2217
    %v2219 = vpop.f32.mrf.mxu0
    %v2220 = vadd.f32 %v2087, %v2219
    %2221 = vmatprep.mubr.bf16.mxu0 0
    %2222 = vmatmul.mubr.bf16.gmra.mxu0 %v1963
    %v2223 = vpop.f32.mrf.mxu0
    %v2224 = vadd.f32 %v2091, %v2223
    %v2225 = vpop.f32.mrf.mxu0
    %v2226 = vadd.f32 %v2093, %v2225
    %v2227 = vpop.f32.mrf.mxu0
    %v2228 = vadd.f32 %v2095, %v2227
    %v2229 = vpop.f32.mrf.mxu0
    %v2230 = vadd.f32 %v2097, %v2229
    %2231 = vdwg.mxu0
    %v2232 = vpack.c.bf16 %v1208, %v1207
    %v2233 = vpack.c.bf16 %v1210, %v1209
    %v2250 = vunpack.c.l.b16 %v180
    %v2251 = vunpack.c.h.b16 %v180
    %v2252 = vunpack.c.l.b16 %v181
    %v2253 = vunpack.c.h.b16 %v181
    %v2254 = vunpack.c.l.b16 %v182
    %v2255 = vunpack.c.h.b16 %v182
    %v2256 = vunpack.c.l.b16 %v183
    %v2257 = vunpack.c.h.b16 %v183
    %v2258 = vunpack.c.l.b16 %v184
    %v2259 = vunpack.c.h.b16 %v184
    %v2260 = vunpack.c.l.b16 %v185
    %v2261 = vunpack.c.h.b16 %v185
    %v2262 = vunpack.c.l.b16 %v186
    %v2263 = vunpack.c.h.b16 %v186
    %v2264 = vunpack.c.l.b16 %v187
    %v2265 = vunpack.c.h.b16 %v187
    %v2266 = vunpack.c.l.b16 %v188
    %v2267 = vunpack.c.h.b16 %v188
    %v2268 = vunpack.c.l.b16 %v189
    %v2269 = vunpack.c.h.b16 %v189
    %v2270 = vunpack.c.l.b16 %v190
    %v2271 = vunpack.c.h.b16 %v190
    %v2272 = vunpack.c.l.b16 %v191
    %v2273 = vunpack.c.h.b16 %v191
    %v2274 = vunpack.c.l.b16 %v192
    %v2275 = vunpack.c.h.b16 %v192
    %v2276 = vunpack.c.l.b16 %v193
    %v2277 = vunpack.c.h.b16 %v193
    %v2278 = vunpack.c.l.b16 %v194
    %v2279 = vunpack.c.h.b16 %v194
    %v2280 = vunpack.c.l.b16 %v195
    %v2281 = vunpack.c.h.b16 %v195
    %v2282 = vpack.c.b16 %v2252, %v2250
    %v2283 = vpack.c.b16 %v2253, %v2251
    %v2284 = vpack.c.b16 %v2256, %v2254
    %v2285 = vpack.c.b16 %v2257, %v2255
    %v2286 = vpack.c.b16 %v2260, %v2258
    %v2287 = vpack.c.b16 %v2261, %v2259
    %v2288 = vpack.c.b16 %v2264, %v2262
    %v2289 = vpack.c.b16 %v2265, %v2263
    %v2290 = vpack.c.b16 %v2268, %v2266
    %v2291 = vpack.c.b16 %v2269, %v2267
    %v2292 = vpack.c.b16 %v2272, %v2270
    %v2293 = vpack.c.b16 %v2273, %v2271
    %v2294 = vpack.c.b16 %v2276, %v2274
    %v2295 = vpack.c.b16 %v2277, %v2275
    %v2296 = vpack.c.b16 %v2280, %v2278
    %v2297 = vpack.c.b16 %v2281, %v2279
    %2314 = vmatprep.subr.bf16.mxu0 %v2297
    %2315 = vmatpush1.bf16.msra.mxu0 %v2296
    %2316 = vmatprep.subr.bf16.mxu0 %v2295
    %2317 = vmatpush1.bf16.msra.mxu0 %v2294
    %2318 = vmatprep.subr.bf16.mxu0 %v2293
    %2319 = vmatpush1.bf16.msra.mxu0 %v2292
    %2320 = vmatprep.subr.bf16.mxu0 %v2291
    %2321 = vmatpush1.bf16.msra.mxu0 %v2290
    %2322 = vmatprep.subr.bf16.mxu0 %v2289
    %2323 = vmatpush1.bf16.msra.mxu0 %v2288
    %2324 = vmatprep.subr.bf16.mxu0 %v2287
    %2325 = vmatpush1.bf16.msra.mxu0 %v2286
    %2326 = vmatprep.subr.bf16.mxu0 %v2285
    %2327 = vmatpush1.bf16.msra.mxu0 %v2284
    %2328 = vmatprep.subr.bf16.mxu0 %v2283
    %2329 = vmatpush1.bf16.msra.mxu0 %v2282
    %2330 = vmatprep.subr.bf16.mxu0 0
    %2331 = vmatpush2.bf16.msra.mxu0 0
    %2332 = vmatprep.subr.bf16.mxu0 0
    %2333 = vmatpush2.bf16.msra.mxu0 0
    %2334 = vmatprep.subr.bf16.mxu0 0
    %2335 = vmatpush2.bf16.msra.mxu0 0
    %2336 = vmatprep.subr.bf16.mxu0 0
    %2337 = vmatpush2.bf16.msra.mxu0 0
    %2338 = vmatprep.subr.bf16.mxu0 0
    %2339 = vmatpush2.bf16.msra.mxu0 0
    %2340 = vmatprep.subr.bf16.mxu0 0
    %2341 = vmatpush2.bf16.msra.mxu0 0
    %2342 = vmatprep.subr.bf16.mxu0 0
    %2343 = vmatpush2.bf16.msra.mxu0 0
    %2344 = vmatprep.subr.bf16.mxu0 0
    %2345 = vmatpush2.bf16.msra.mxu0 0
    %2346 = vmatprep.mubr.bf16.mxu0 0
    %2347 = vmatmul.mubr.bf16.gmra.mxu0 %v2232
    %v2348 = vpop.f32.mrf.mxu0
    %v2349 = vadd.f32 0.0, %v2348
    %v2350 = vpop.f32.mrf.mxu0
    %v2351 = vadd.f32 0.0, %v2350
    %v2352 = vpop.f32.mrf.mxu0
    %v2353 = vadd.f32 0.0, %v2352
    %v2354 = vpop.f32.mrf.mxu0
    %v2355 = vadd.f32 0.0, %v2354
    %2356 = vmatprep.mubr.bf16.mxu0 0
    %2357 = vmatmul.mubr.bf16.gmra.mxu0 %v2233
    %v2358 = vpop.f32.mrf.mxu0
    %v2359 = vadd.f32 0.0, %v2358
    %v2360 = vpop.f32.mrf.mxu0
    %v2361 = vadd.f32 0.0, %v2360
    %v2362 = vpop.f32.mrf.mxu0
    %v2363 = vadd.f32 0.0, %v2362
    %v2364 = vpop.f32.mrf.mxu0
    %v2365 = vadd.f32 0.0, %v2364
    %2366 = vdwg.mxu0
    %v2367 = vadd.f32 %v2214, %v2349
    %v2368 = vadd.f32 %v2216, %v2351
    %v2369 = vadd.f32 %v2218, %v2353
    %v2370 = vadd.f32 %v2220, %v2355
    %v2371 = vadd.f32 %v2224, %v2359
    %v2372 = vadd.f32 %v2226, %v2361
    %v2373 = vadd.f32 %v2228, %v2363
    %v2374 = vadd.f32 %v2230, %v2365
    %v2375 = vpack.c.bf16 %v1958, %v1957
    %v2376 = vpack.c.bf16 %v1960, %v1959
    %v2393 = vunpack.c.l.b16 %v197
    %v2394 = vunpack.c.h.b16 %v197
    %v2395 = vunpack.c.l.b16 %v198
    %v2396 = vunpack.c.h.b16 %v198
    %v2397 = vunpack.c.l.b16 %v199
    %v2398 = vunpack.c.h.b16 %v199
    %v2399 = vunpack.c.l.b16 %v200
    %v2400 = vunpack.c.h.b16 %v200
    %v2401 = vunpack.c.l.b16 %v201
    %v2402 = vunpack.c.h.b16 %v201
    %v2403 = vunpack.c.l.b16 %v202
    %v2404 = vunpack.c.h.b16 %v202
    %v2405 = vunpack.c.l.b16 %v203
    %v2406 = vunpack.c.h.b16 %v203
    %v2407 = vunpack.c.l.b16 %v204
    %v2408 = vunpack.c.h.b16 %v204
    %v2409 = vunpack.c.l.b16 %v205
    %v2410 = vunpack.c.h.b16 %v205
    %v2411 = vunpack.c.l.b16 %v206
    %v2412 = vunpack.c.h.b16 %v206
    %v2413 = vunpack.c.l.b16 %v207
    %v2414 = vunpack.c.h.b16 %v207
    %v2415 = vunpack.c.l.b16 %v208
    %v2416 = vunpack.c.h.b16 %v208
    %v2417 = vunpack.c.l.b16 %v209
    %v2418 = vunpack.c.h.b16 %v209
    %v2419 = vunpack.c.l.b16 %v210
    %v2420 = vunpack.c.h.b16 %v210
    %v2421 = vunpack.c.l.b16 %v211
    %v2422 = vunpack.c.h.b16 %v211
    %v2423 = vunpack.c.l.b16 %v212
    %v2424 = vunpack.c.h.b16 %v212
    %v2425 = vpack.c.b16 %v2395, %v2393
    %v2426 = vpack.c.b16 %v2396, %v2394
    %v2427 = vpack.c.b16 %v2399, %v2397
    %v2428 = vpack.c.b16 %v2400, %v2398
    %v2429 = vpack.c.b16 %v2403, %v2401
    %v2430 = vpack.c.b16 %v2404, %v2402
    %v2431 = vpack.c.b16 %v2407, %v2405
    %v2432 = vpack.c.b16 %v2408, %v2406
    %v2433 = vpack.c.b16 %v2411, %v2409
    %v2434 = vpack.c.b16 %v2412, %v2410
    %v2435 = vpack.c.b16 %v2415, %v2413
    %v2436 = vpack.c.b16 %v2416, %v2414
    %v2437 = vpack.c.b16 %v2419, %v2417
    %v2438 = vpack.c.b16 %v2420, %v2418
    %v2439 = vpack.c.b16 %v2423, %v2421
    %v2440 = vpack.c.b16 %v2424, %v2422
    %2457 = vmatprep.subr.bf16.mxu0 %v2440
    %2458 = vmatpush1.bf16.msra.mxu0 %v2439
    %2459 = vmatprep.subr.bf16.mxu0 %v2438
    %2460 = vmatpush1.bf16.msra.mxu0 %v2437
    %2461 = vmatprep.subr.bf16.mxu0 %v2436
    %2462 = vmatpush1.bf16.msra.mxu0 %v2435
    %2463 = vmatprep.subr.bf16.mxu0 %v2434
    %2464 = vmatpush1.bf16.msra.mxu0 %v2433
    %2465 = vmatprep.subr.bf16.mxu0 %v2432
    %2466 = vmatpush1.bf16.msra.mxu0 %v2431
    %2467 = vmatprep.subr.bf16.mxu0 %v2430
    %2468 = vmatpush1.bf16.msra.mxu0 %v2429
    %2469 = vmatprep.subr.bf16.mxu0 %v2428
    %2470 = vmatpush1.bf16.msra.mxu0 %v2427
    %2471 = vmatprep.subr.bf16.mxu0 %v2426
    %2472 = vmatpush1.bf16.msra.mxu0 %v2425
    %2473 = vmatprep.subr.bf16.mxu0 0
    %2474 = vmatpush2.bf16.msra.mxu0 0
    %2475 = vmatprep.subr.bf16.mxu0 0
    %2476 = vmatpush2.bf16.msra.mxu0 0
    %2477 = vmatprep.subr.bf16.mxu0 0
    %2478 = vmatpush2.bf16.msra.mxu0 0
    %2479 = vmatprep.subr.bf16.mxu0 0
    %2480 = vmatpush2.bf16.msra.mxu0 0
    %2481 = vmatprep.subr.bf16.mxu0 0
    %2482 = vmatpush2.bf16.msra.mxu0 0
    %2483 = vmatprep.subr.bf16.mxu0 0
    %2484 = vmatpush2.bf16.msra.mxu0 0
    %2485 = vmatprep.subr.bf16.mxu0 0
    %2486 = vmatpush2.bf16.msra.mxu0 0
    %2487 = vmatprep.subr.bf16.mxu0 0
    %2488 = vmatpush2.bf16.msra.mxu0 0
    %2489 = vmatprep.mubr.bf16.mxu0 0
    %2490 = vmatmul.mubr.bf16.gmra.mxu0 %v2375
    %v2491 = vpop.f32.mrf.mxu0
    %v2492 = vadd.f32 0.0, %v2491
    %v2493 = vpop.f32.mrf.mxu0
    %v2494 = vadd.f32 0.0, %v2493
    %v2495 = vpop.f32.mrf.mxu0
    %v2496 = vadd.f32 0.0, %v2495
    %v2497 = vpop.f32.mrf.mxu0
    %v2498 = vadd.f32 0.0, %v2497
    %2499 = vmatprep.mubr.bf16.mxu0 0
    %2500 = vmatmul.mubr.bf16.gmra.mxu0 %v2376
    %v2501 = vpop.f32.mrf.mxu0
    %v2502 = vadd.f32 0.0, %v2501
    %v2503 = vpop.f32.mrf.mxu0
    %v2504 = vadd.f32 0.0, %v2503
    %v2505 = vpop.f32.mrf.mxu0
    %v2506 = vadd.f32 0.0, %v2505
    %v2507 = vpop.f32.mrf.mxu0
    %v2508 = vadd.f32 0.0, %v2507
    %2509 = vdwg.mxu0
    %v2510 = vadd.f32 %v2367, %v2492
    %v2511 = vadd.f32 %v2368, %v2494
    %v2512 = vadd.f32 %v2369, %v2496
    %v2513 = vadd.f32 %v2370, %v2498
    %v2514 = vadd.f32 %v2371, %v2502
    %v2515 = vadd.f32 %v2372, %v2504
    %v2516 = vadd.f32 %v2373, %v2506
    %v2517 = vadd.f32 %v2374, %v2508
    %v2518 = vpack.c.bf16 %v1211, %v1210
    %v2535 = vunpack.c.l.b16 %v214
    %v2536 = vunpack.c.h.b16 %v214
    %v2537 = vunpack.c.l.b16 %v215
    %v2538 = vunpack.c.h.b16 %v215
    %v2539 = vunpack.c.l.b16 %v216
    %v2540 = vunpack.c.h.b16 %v216
    %v2541 = vunpack.c.l.b16 %v217
    %v2542 = vunpack.c.h.b16 %v217
    %v2543 = vunpack.c.l.b16 %v218
    %v2544 = vunpack.c.h.b16 %v218
    %v2545 = vunpack.c.l.b16 %v219
    %v2546 = vunpack.c.h.b16 %v219
    %v2547 = vunpack.c.l.b16 %v220
    %v2548 = vunpack.c.h.b16 %v220
    %v2549 = vunpack.c.l.b16 %v221
    %v2550 = vunpack.c.h.b16 %v221
    %v2551 = vunpack.c.l.b16 %v222
    %v2552 = vunpack.c.h.b16 %v222
    %v2553 = vunpack.c.l.b16 %v223
    %v2554 = vunpack.c.h.b16 %v223
    %v2555 = vunpack.c.l.b16 %v224
    %v2556 = vunpack.c.h.b16 %v224
    %v2557 = vunpack.c.l.b16 %v225
    %v2558 = vunpack.c.h.b16 %v225
    %v2559 = vunpack.c.l.b16 %v226
    %v2560 = vunpack.c.h.b16 %v226
    %v2561 = vunpack.c.l.b16 %v227
    %v2562 = vunpack.c.h.b16 %v227
    %v2563 = vunpack.c.l.b16 %v228
    %v2564 = vunpack.c.h.b16 %v228
    %v2565 = vunpack.c.l.b16 %v229
    %v2566 = vunpack.c.h.b16 %v229
    %v2567 = vpack.c.b16 %v2537, %v2535
    %v2568 = vpack.c.b16 %v2538, %v2536
    %v2569 = vpack.c.b16 %v2541, %v2539
    %v2570 = vpack.c.b16 %v2542, %v2540
    %v2571 = vpack.c.b16 %v2545, %v2543
    %v2572 = vpack.c.b16 %v2546, %v2544
    %v2573 = vpack.c.b16 %v2549, %v2547
    %v2574 = vpack.c.b16 %v2550, %v2548
    %v2575 = vpack.c.b16 %v2553, %v2551
    %v2576 = vpack.c.b16 %v2554, %v2552
    %v2577 = vpack.c.b16 %v2557, %v2555
    %v2578 = vpack.c.b16 %v2558, %v2556
    %v2579 = vpack.c.b16 %v2561, %v2559
    %v2580 = vpack.c.b16 %v2562, %v2560
    %v2581 = vpack.c.b16 %v2565, %v2563
    %v2582 = vpack.c.b16 %v2566, %v2564
    %2599 = vmatprep.subr.bf16.mxu0 %v2582
    %2600 = vmatpush1.bf16.msra.mxu0 %v2581
    %2601 = vmatprep.subr.bf16.mxu0 %v2580
    %2602 = vmatpush1.bf16.msra.mxu0 %v2579
    %2603 = vmatprep.subr.bf16.mxu0 %v2578
    %2604 = vmatpush1.bf16.msra.mxu0 %v2577
    %2605 = vmatprep.subr.bf16.mxu0 %v2576
    %2606 = vmatpush1.bf16.msra.mxu0 %v2575
    %2607 = vmatprep.subr.bf16.mxu0 %v2574
    %2608 = vmatpush1.bf16.msra.mxu0 %v2573
    %2609 = vmatprep.subr.bf16.mxu0 %v2572
    %2610 = vmatpush1.bf16.msra.mxu0 %v2571
    %2611 = vmatprep.subr.bf16.mxu0 %v2570
    %2612 = vmatpush1.bf16.msra.mxu0 %v2569
    %2613 = vmatprep.subr.bf16.mxu0 %v2568
    %2614 = vmatpush1.bf16.msra.mxu0 %v2567
    %2615 = vmatprep.subr.bf16.mxu0 0
    %2616 = vmatpush2.bf16.msra.mxu0 0
    %2617 = vmatprep.subr.bf16.mxu0 0
    %2618 = vmatpush2.bf16.msra.mxu0 0
    %2619 = vmatprep.subr.bf16.mxu0 0
    %2620 = vmatpush2.bf16.msra.mxu0 0
    %2621 = vmatprep.subr.bf16.mxu0 0
    %2622 = vmatpush2.bf16.msra.mxu0 0
    %2623 = vmatprep.subr.bf16.mxu0 0
    %2624 = vmatpush2.bf16.msra.mxu0 0
    %2625 = vmatprep.subr.bf16.mxu0 0
    %2626 = vmatpush2.bf16.msra.mxu0 0
    %2627 = vmatprep.subr.bf16.mxu0 0
    %2628 = vmatpush2.bf16.msra.mxu0 0
    %2629 = vmatprep.subr.bf16.mxu0 0
    %2630 = vmatpush2.bf16.msra.mxu0 0
    %2631 = vmatprep.mubr.bf16.mxu0 0
    %2632 = vmatmul.mubr.bf16.gmra.mxu0 %v1963
    %v2633 = vpop.f32.mrf.mxu0
    %v2634 = vadd.f32 0.0, %v2633
    %v2635 = vpop.f32.mrf.mxu0
    %v2636 = vadd.f32 0.0, %v2635
    %v2637 = vpop.f32.mrf.mxu0
    %v2638 = vadd.f32 0.0, %v2637
    %v2639 = vpop.f32.mrf.mxu0
    %v2640 = vadd.f32 0.0, %v2639
    %2641 = vmatprep.mubr.bf16.mxu0 0
    %2642 = vmatmul.mubr.bf16.gmra.mxu0 %v2518
    %v2643 = vpop.f32.mrf.mxu0
    %v2644 = vadd.f32 0.0, %v2643
    %v2645 = vpop.f32.mrf.mxu0
    %v2646 = vadd.f32 0.0, %v2645
    %v2647 = vpop.f32.mrf.mxu0
    %v2648 = vadd.f32 0.0, %v2647
    %v2649 = vpop.f32.mrf.mxu0
    %v2650 = vadd.f32 0.0, %v2649
    %2651 = vdwg.mxu0
    %v2652 = vadd.f32 %v2510, %v2634
    %v2653 = vadd.f32 %v2511, %v2636
    %v2654 = vadd.f32 %v2512, %v2638
    %v2655 = vadd.f32 %v2513, %v2640
    %v2656 = vadd.f32 %v2514, %v2644
    %v2657 = vadd.f32 %v2515, %v2646
    %v2658 = vadd.f32 %v2516, %v2648
    %v2659 = vadd.f32 %v2517, %v2650
    %2660 = vmatprep.subr.bf16.mxu0 %v2029
    %2661 = vmatpush1.bf16.msra.mxu0 %v2028
    %2662 = vmatprep.subr.bf16.mxu0 %v2027
    %2663 = vmatpush1.bf16.msra.mxu0 %v2026
    %2664 = vmatprep.subr.bf16.mxu0 %v2025
    %2665 = vmatpush1.bf16.msra.mxu0 %v2024
    %2666 = vmatprep.subr.bf16.mxu0 %v2023
    %2667 = vmatpush1.bf16.msra.mxu0 %v2022
    %2668 = vmatprep.subr.bf16.mxu0 %v2021
    %2669 = vmatpush1.bf16.msra.mxu0 %v2020
    %2670 = vmatprep.subr.bf16.mxu0 %v2019
    %2671 = vmatpush1.bf16.msra.mxu0 %v2018
    %2672 = vmatprep.subr.bf16.mxu0 %v2017
    %2673 = vmatpush1.bf16.msra.mxu0 %v2016
    %2674 = vmatprep.subr.bf16.mxu0 %v2015
    %2675 = vmatpush1.bf16.msra.mxu0 %v2014
    %2676 = vmatprep.subr.bf16.mxu0 0
    %2677 = vmatpush2.bf16.msra.mxu0 0
    %2678 = vmatprep.subr.bf16.mxu0 0
    %2679 = vmatpush2.bf16.msra.mxu0 0
    %2680 = vmatprep.subr.bf16.mxu0 0
    %2681 = vmatpush2.bf16.msra.mxu0 0
    %2682 = vmatprep.subr.bf16.mxu0 0
    %2683 = vmatpush2.bf16.msra.mxu0 0
    %2684 = vmatprep.subr.bf16.mxu0 0
    %2685 = vmatpush2.bf16.msra.mxu0 0
    %2686 = vmatprep.subr.bf16.mxu0 0
    %2687 = vmatpush2.bf16.msra.mxu0 0
    %2688 = vmatprep.subr.bf16.mxu0 0
    %2689 = vmatpush2.bf16.msra.mxu0 0
    %2690 = vmatprep.subr.bf16.mxu0 0
    %2691 = vmatpush2.bf16.msra.mxu0 0
    %2692 = vmatprep.mubr.bf16.mxu0 0
    %2693 = vmatmul.mubr.bf16.gmra.mxu0 %v2232
    %v2694 = vpop.f32.mrf.mxu0
    %v2695 = vadd.f32 0.0, %v2694
    %v2696 = vpop.f32.mrf.mxu0
    %v2697 = vadd.f32 0.0, %v2696
    %v2698 = vpop.f32.mrf.mxu0
    %v2699 = vadd.f32 0.0, %v2698
    %v2700 = vpop.f32.mrf.mxu0
    %v2701 = vadd.f32 0.0, %v2700
    %2702 = vmatprep.mubr.bf16.mxu0 0
    %2703 = vmatmul.mubr.bf16.gmra.mxu0 %v2233
    %v2704 = vpop.f32.mrf.mxu0
    %v2705 = vadd.f32 0.0, %v2704
    %v2706 = vpop.f32.mrf.mxu0
    %v2707 = vadd.f32 0.0, %v2706
    %v2708 = vpop.f32.mrf.mxu0
    %v2709 = vadd.f32 0.0, %v2708
    %v2710 = vpop.f32.mrf.mxu0
    %v2711 = vadd.f32 0.0, %v2710
    %2712 = vdwg.mxu0
    %2713 = vmatprep.subr.bf16.mxu0 %v2162
    %2714 = vmatpush1.bf16.msra.mxu0 %v2161
    %2715 = vmatprep.subr.bf16.mxu0 %v2160
    %2716 = vmatpush1.bf16.msra.mxu0 %v2159
    %2717 = vmatprep.subr.bf16.mxu0 %v2158
    %2718 = vmatpush1.bf16.msra.mxu0 %v2157
    %2719 = vmatprep.subr.bf16.mxu0 %v2156
    %2720 = vmatpush1.bf16.msra.mxu0 %v2155
    %2721 = vmatprep.subr.bf16.mxu0 %v2154
    %2722 = vmatpush1.bf16.msra.mxu0 %v2153
    %2723 = vmatprep.subr.bf16.mxu0 %v2152
    %2724 = vmatpush1.bf16.msra.mxu0 %v2151
    %2725 = vmatprep.subr.bf16.mxu0 %v2150
    %2726 = vmatpush1.bf16.msra.mxu0 %v2149
    %2727 = vmatprep.subr.bf16.mxu0 %v2148
    %2728 = vmatpush1.bf16.msra.mxu0 %v2147
    %2729 = vmatprep.subr.bf16.mxu0 0
    %2730 = vmatpush2.bf16.msra.mxu0 0
    %2731 = vmatprep.subr.bf16.mxu0 0
    %2732 = vmatpush2.bf16.msra.mxu0 0
    %2733 = vmatprep.subr.bf16.mxu0 0
    %2734 = vmatpush2.bf16.msra.mxu0 0
    %2735 = vmatprep.subr.bf16.mxu0 0
    %2736 = vmatpush2.bf16.msra.mxu0 0
    %2737 = vmatprep.subr.bf16.mxu0 0
    %2738 = vmatpush2.bf16.msra.mxu0 0
    %2739 = vmatprep.subr.bf16.mxu0 0
    %2740 = vmatpush2.bf16.msra.mxu0 0
    %2741 = vmatprep.subr.bf16.mxu0 0
    %2742 = vmatpush2.bf16.msra.mxu0 0
    %2743 = vmatprep.subr.bf16.mxu0 0
    %2744 = vmatpush2.bf16.msra.mxu0 0
    %2745 = vmatprep.mubr.bf16.mxu0 0
    %2746 = vmatmul.mubr.bf16.gmra.mxu0 %v1964
    %v2747 = vpop.f32.mrf.mxu0
    %v2748 = vadd.f32 %v2695, %v2747
    %v2749 = vpop.f32.mrf.mxu0
    %v2750 = vadd.f32 %v2697, %v2749
    %v2751 = vpop.f32.mrf.mxu0
    %v2752 = vadd.f32 %v2699, %v2751
    %v2753 = vpop.f32.mrf.mxu0
    %v2754 = vadd.f32 %v2701, %v2753
    %2755 = vmatprep.mubr.bf16.mxu0 0
    %2756 = vmatmul.mubr.bf16.gmra.mxu0 %v1965
    %v2757 = vpop.f32.mrf.mxu0
    %v2758 = vadd.f32 %v2705, %v2757
    %v2759 = vpop.f32.mrf.mxu0
    %v2760 = vadd.f32 %v2707, %v2759
    %v2761 = vpop.f32.mrf.mxu0
    %v2762 = vadd.f32 %v2709, %v2761
    %v2763 = vpop.f32.mrf.mxu0
    %v2764 = vadd.f32 %v2711, %v2763
    %2765 = vdwg.mxu0
    %2766 = vmatprep.subr.bf16.mxu0 %v2297
    %2767 = vmatpush1.bf16.msra.mxu0 %v2296
    %2768 = vmatprep.subr.bf16.mxu0 %v2295
    %2769 = vmatpush1.bf16.msra.mxu0 %v2294
    %2770 = vmatprep.subr.bf16.mxu0 %v2293
    %2771 = vmatpush1.bf16.msra.mxu0 %v2292
    %2772 = vmatprep.subr.bf16.mxu0 %v2291
    %2773 = vmatpush1.bf16.msra.mxu0 %v2290
    %2774 = vmatprep.subr.bf16.mxu0 %v2289
    %2775 = vmatpush1.bf16.msra.mxu0 %v2288
    %2776 = vmatprep.subr.bf16.mxu0 %v2287
    %2777 = vmatpush1.bf16.msra.mxu0 %v2286
    %2778 = vmatprep.subr.bf16.mxu0 %v2285
    %2779 = vmatpush1.bf16.msra.mxu0 %v2284
    %2780 = vmatprep.subr.bf16.mxu0 %v2283
    %2781 = vmatpush1.bf16.msra.mxu0 %v2282
    %2782 = vmatprep.subr.bf16.mxu0 0
    %2783 = vmatpush2.bf16.msra.mxu0 0
    %2784 = vmatprep.subr.bf16.mxu0 0
    %2785 = vmatpush2.bf16.msra.mxu0 0
    %2786 = vmatprep.subr.bf16.mxu0 0
    %2787 = vmatpush2.bf16.msra.mxu0 0
    %2788 = vmatprep.subr.bf16.mxu0 0
    %2789 = vmatpush2.bf16.msra.mxu0 0
    %2790 = vmatprep.subr.bf16.mxu0 0
    %2791 = vmatpush2.bf16.msra.mxu0 0
    %2792 = vmatprep.subr.bf16.mxu0 0
    %2793 = vmatpush2.bf16.msra.mxu0 0
    %2794 = vmatprep.subr.bf16.mxu0 0
    %2795 = vmatpush2.bf16.msra.mxu0 0
    %2796 = vmatprep.subr.bf16.mxu0 0
    %2797 = vmatpush2.bf16.msra.mxu0 0
    %2798 = vmatprep.mubr.bf16.mxu0 0
    %2799 = vmatmul.mubr.bf16.gmra.mxu0 %v2375
    %v2800 = vpop.f32.mrf.mxu0
    %v2801 = vadd.f32 0.0, %v2800
    %v2802 = vpop.f32.mrf.mxu0
    %v2803 = vadd.f32 0.0, %v2802
    %v2804 = vpop.f32.mrf.mxu0
    %v2805 = vadd.f32 0.0, %v2804
    %v2806 = vpop.f32.mrf.mxu0
    %v2807 = vadd.f32 0.0, %v2806
    %2808 = vmatprep.mubr.bf16.mxu0 0
    %2809 = vmatmul.mubr.bf16.gmra.mxu0 %v2376
    %v2810 = vpop.f32.mrf.mxu0
    %v2811 = vadd.f32 0.0, %v2810
    %v2812 = vpop.f32.mrf.mxu0
    %v2813 = vadd.f32 0.0, %v2812
    %v2814 = vpop.f32.mrf.mxu0
    %v2815 = vadd.f32 0.0, %v2814
    %v2816 = vpop.f32.mrf.mxu0
    %v2817 = vadd.f32 0.0, %v2816
    %2818 = vdwg.mxu0
    %v2819 = vadd.f32 %v2748, %v2801
    %v2820 = vadd.f32 %v2750, %v2803
    %v2821 = vadd.f32 %v2752, %v2805
    %v2822 = vadd.f32 %v2754, %v2807
    %v2823 = vadd.f32 %v2758, %v2811
    %v2824 = vadd.f32 %v2760, %v2813
    %v2825 = vadd.f32 %v2762, %v2815
    %v2826 = vadd.f32 %v2764, %v2817
    %2827 = vmatprep.subr.bf16.mxu0 %v2440
    %2828 = vmatpush1.bf16.msra.mxu0 %v2439
    %2829 = vmatprep.subr.bf16.mxu0 %v2438
    %2830 = vmatpush1.bf16.msra.mxu0 %v2437
    %2831 = vmatprep.subr.bf16.mxu0 %v2436
    %2832 = vmatpush1.bf16.msra.mxu0 %v2435
    %2833 = vmatprep.subr.bf16.mxu0 %v2434
    %2834 = vmatpush1.bf16.msra.mxu0 %v2433
    %2835 = vmatprep.subr.bf16.mxu0 %v2432
    %2836 = vmatpush1.bf16.msra.mxu0 %v2431
    %2837 = vmatprep.subr.bf16.mxu0 %v2430
    %2838 = vmatpush1.bf16.msra.mxu0 %v2429
    %2839 = vmatprep.subr.bf16.mxu0 %v2428
    %2840 = vmatpush1.bf16.msra.mxu0 %v2427
    %2841 = vmatprep.subr.bf16.mxu0 %v2426
    %2842 = vmatpush1.bf16.msra.mxu0 %v2425
    %2843 = vmatprep.subr.bf16.mxu0 0
    %2844 = vmatpush2.bf16.msra.mxu0 0
    %2845 = vmatprep.subr.bf16.mxu0 0
    %2846 = vmatpush2.bf16.msra.mxu0 0
    %2847 = vmatprep.subr.bf16.mxu0 0
    %2848 = vmatpush2.bf16.msra.mxu0 0
    %2849 = vmatprep.subr.bf16.mxu0 0
    %2850 = vmatpush2.bf16.msra.mxu0 0
    %2851 = vmatprep.subr.bf16.mxu0 0
    %2852 = vmatpush2.bf16.msra.mxu0 0
    %2853 = vmatprep.subr.bf16.mxu0 0
    %2854 = vmatpush2.bf16.msra.mxu0 0
    %2855 = vmatprep.subr.bf16.mxu0 0
    %2856 = vmatpush2.bf16.msra.mxu0 0
    %2857 = vmatprep.subr.bf16.mxu0 0
    %2858 = vmatpush2.bf16.msra.mxu0 0
    %2859 = vmatprep.mubr.bf16.mxu0 0
    %2860 = vmatmul.mubr.bf16.gmra.mxu0 %v1963
    %v2861 = vpop.f32.mrf.mxu0
    %v2862 = vadd.f32 0.0, %v2861
    %v2863 = vpop.f32.mrf.mxu0
    %v2864 = vadd.f32 0.0, %v2863
    %v2865 = vpop.f32.mrf.mxu0
    %v2866 = vadd.f32 0.0, %v2865
    %v2867 = vpop.f32.mrf.mxu0
    %v2868 = vadd.f32 0.0, %v2867
    %2869 = vmatprep.mubr.bf16.mxu0 0
    %2870 = vmatmul.mubr.bf16.gmra.mxu0 %v2518
    %v2871 = vpop.f32.mrf.mxu0
    %v2872 = vadd.f32 0.0, %v2871
    %v2873 = vpop.f32.mrf.mxu0
    %v2874 = vadd.f32 0.0, %v2873
    %v2875 = vpop.f32.mrf.mxu0
    %v2876 = vadd.f32 0.0, %v2875
    %v2877 = vpop.f32.mrf.mxu0
    %v2878 = vadd.f32 0.0, %v2877
    %2879 = vdwg.mxu0
    %v2880 = vadd.f32 %v2819, %v2862
    %v2881 = vadd.f32 %v2820, %v2864
    %v2882 = vadd.f32 %v2821, %v2866
    %v2883 = vadd.f32 %v2822, %v2868
    %v2884 = vadd.f32 %v2823, %v2872
    %v2885 = vadd.f32 %v2824, %v2874
    %v2886 = vadd.f32 %v2825, %v2876
    %v2887 = vadd.f32 %v2826, %v2878
    %v2888 = vpack.c.bf16 %v1961, %v1960
    %2889 = vmatprep.subr.bf16.mxu0 %v2582
    %2890 = vmatpush1.bf16.msra.mxu0 %v2581
    %2891 = vmatprep.subr.bf16.mxu0 %v2580
    %2892 = vmatpush1.bf16.msra.mxu0 %v2579
    %2893 = vmatprep.subr.bf16.mxu0 %v2578
    %2894 = vmatpush1.bf16.msra.mxu0 %v2577
    %2895 = vmatprep.subr.bf16.mxu0 %v2576
    %2896 = vmatpush1.bf16.msra.mxu0 %v2575
    %2897 = vmatprep.subr.bf16.mxu0 %v2574
    %2898 = vmatpush1.bf16.msra.mxu0 %v2573
    %2899 = vmatprep.subr.bf16.mxu0 %v2572
    %2900 = vmatpush1.bf16.msra.mxu0 %v2571
    %2901 = vmatprep.subr.bf16.mxu0 %v2570
    %2902 = vmatpush1.bf16.msra.mxu0 %v2569
    %2903 = vmatprep.subr.bf16.mxu0 %v2568
    %2904 = vmatpush1.bf16.msra.mxu0 %v2567
    %2905 = vmatprep.subr.bf16.mxu0 0
    %2906 = vmatpush2.bf16.msra.mxu0 0
    %2907 = vmatprep.subr.bf16.mxu0 0
    %2908 = vmatpush2.bf16.msra.mxu0 0
    %2909 = vmatprep.subr.bf16.mxu0 0
    %2910 = vmatpush2.bf16.msra.mxu0 0
    %2911 = vmatprep.subr.bf16.mxu0 0
    %2912 = vmatpush2.bf16.msra.mxu0 0
    %2913 = vmatprep.subr.bf16.mxu0 0
    %2914 = vmatpush2.bf16.msra.mxu0 0
    %2915 = vmatprep.subr.bf16.mxu0 0
    %2916 = vmatpush2.bf16.msra.mxu0 0
    %2917 = vmatprep.subr.bf16.mxu0 0
    %2918 = vmatpush2.bf16.msra.mxu0 0
    %2919 = vmatprep.subr.bf16.mxu0 0
    %2920 = vmatpush2.bf16.msra.mxu0 0
    %2921 = vmatprep.mubr.bf16.mxu0 0
    %2922 = vmatmul.mubr.bf16.gmra.mxu0 %v1965
    %v2923 = vpop.f32.mrf.mxu0
    %v2924 = vadd.f32 0.0, %v2923
    %v2925 = vpop.f32.mrf.mxu0
    %v2926 = vadd.f32 0.0, %v2925
    %v2927 = vpop.f32.mrf.mxu0
    %v2928 = vadd.f32 0.0, %v2927
    %v2929 = vpop.f32.mrf.mxu0
    %v2930 = vadd.f32 0.0, %v2929
    %2931 = vmatprep.mubr.bf16.mxu0 0
    %2932 = vmatmul.mubr.bf16.gmra.mxu0 %v2888
    %v2933 = vpop.f32.mrf.mxu0
    %v2934 = vadd.f32 0.0, %v2933
    %v2935 = vpop.f32.mrf.mxu0
    %v2936 = vadd.f32 0.0, %v2935
    %v2937 = vpop.f32.mrf.mxu0
    %v2938 = vadd.f32 0.0, %v2937
    %v2939 = vpop.f32.mrf.mxu0
    %v2940 = vadd.f32 0.0, %v2939
    %2941 = vdwg.mxu0
    %v2942 = vadd.f32 %v2880, %v2924
    %v2943 = vadd.f32 %v2881, %v2926
    %v2944 = vadd.f32 %v2882, %v2928
    %v2945 = vadd.f32 %v2883, %v2930
    %v2946 = vadd.f32 %v2884, %v2934
    %v2947 = vadd.f32 %v2885, %v2936
    %v2948 = vadd.f32 %v2886, %v2938
    %v2949 = vadd.f32 %v2887, %v2940
    %v2950 = vld [vmem:[%s7] sm:$0x1]
    %v2951 = vmax.f32 %v2652, %v2942
    %v2952 = vmax.f32 %v2653, %v2943
    %v2953 = vmax.f32 %v2654, %v2944
    %v2954 = vmax.f32 %v2655, %v2945
    %v2955 = vmax.f32 %v2656, %v2946
    %v2956 = vmax.f32 %v2657, %v2947
    %v2957 = vmax.f32 %v2658, %v2948
    %v2958 = vmax.f32 %v2659, %v2949
    %v2959 = vmax.f32 %v2951, %v2952
    %v2960 = vmax.f32 %v2953, %v2954
    %v2961 = vmax.f32 %v2955, %v2956
    %v2962 = vmax.f32 %v2957, %v2958
    %v2964 = vlaneseq
    %v2965 = vshrl.u32 %v2964, 7
    %v2966 = vsub.s32 0, %v2965
    %v2967 = vrot.slane %v2950, %v2966
    %v2969 = vadd.f32 %v2959, %v2967
    %v2970 = vadd.f32 %v2960, %v2967
    %v2971 = vadd.f32 %v2961, %v2967
    %v2972 = vadd.f32 %v2962, %v2967
    %v2973 = vmax.f32 %v2969, 0.0
    %v2974 = vmax.f32 %v2970, 0.0
    %v2975 = vmax.f32 %v2971, 0.0
    %v2976 = vmax.f32 %v2972, 0.0
    %v2977 = vpack.c.bf16 %v2973, %v2973
    %v2978 = vpack.c.bf16 %v2974, %v2974
    %v2995 = vunpack.c.l.b16 %v247
    %v2996 = vunpack.c.l.b16 %v248
    %v2997 = vunpack.c.l.b16 %v249
    %v2998 = vunpack.c.l.b16 %v250
    %v2999 = vunpack.c.l.b16 %v251
    %v3000 = vunpack.c.l.b16 %v252
    %v3001 = vunpack.c.l.b16 %v253
    %v3002 = vunpack.c.l.b16 %v254
    %v3003 = vunpack.c.l.b16 %v255
    %v3004 = vunpack.c.l.b16 %v256
    %v3005 = vunpack.c.l.b16 %v257
    %v3006 = vunpack.c.l.b16 %v258
    %v3007 = vunpack.c.l.b16 %v259
    %v3008 = vunpack.c.l.b16 %v260
    %v3009 = vunpack.c.l.b16 %v261
    %v3010 = vunpack.c.l.b16 %v262
    %v3011 = vpack.c.b16 %v2996, %v2995
    %v3012 = vpack.c.b16 %v2998, %v2997
    %v3013 = vpack.c.b16 %v3000, %v2999
    %v3014 = vpack.c.b16 %v3002, %v3001
    %v3015 = vpack.c.b16 %v3004, %v3003
    %v3016 = vpack.c.b16 %v3006, %v3005
    %v3017 = vpack.c.b16 %v3008, %v3007
    %v3018 = vpack.c.b16 %v3010, %v3009
    %3027 = vmatprep.subr.bf16.mxu0 0
    %3028 = vmatpush1.bf16.msra.mxu0 %v3018
    %3029 = vmatprep.subr.bf16.mxu0 0
    %3030 = vmatpush1.bf16.msra.mxu0 %v3017
    %3031 = vmatprep.subr.bf16.mxu0 0
    %3032 = vmatpush1.bf16.msra.mxu0 %v3016
    %3033 = vmatprep.subr.bf16.mxu0 0
    %3034 = vmatpush1.bf16.msra.mxu0 %v3015
    %3035 = vmatprep.subr.bf16.mxu0 0
    %3036 = vmatpush1.bf16.msra.mxu0 %v3014
    %3037 = vmatprep.subr.bf16.mxu0 0
    %3038 = vmatpush1.bf16.msra.mxu0 %v3013
    %3039 = vmatprep.subr.bf16.mxu0 0
    %3040 = vmatpush1.bf16.msra.mxu0 %v3012
    %3041 = vmatprep.subr.bf16.mxu0 0
    %3042 = vmatpush1.bf16.msra.mxu0 %v3011
    %3043 = vmatprep.subr.bf16.mxu0 0
    %3044 = vmatpush2.bf16.msra.mxu0 0
    %3045 = vmatprep.subr.bf16.mxu0 0
    %3046 = vmatpush2.bf16.msra.mxu0 0
    %3047 = vmatprep.subr.bf16.mxu0 0
    %3048 = vmatpush2.bf16.msra.mxu0 0
    %3049 = vmatprep.subr.bf16.mxu0 0
    %3050 = vmatpush2.bf16.msra.mxu0 0
    %3051 = vmatprep.subr.bf16.mxu0 0
    %3052 = vmatpush2.bf16.msra.mxu0 0
    %3053 = vmatprep.subr.bf16.mxu0 0
    %3054 = vmatpush2.bf16.msra.mxu0 0
    %3055 = vmatprep.subr.bf16.mxu0 0
    %3056 = vmatpush2.bf16.msra.mxu0 0
    %3057 = vmatprep.subr.bf16.mxu0 0
    %3058 = vmatpush2.bf16.msra.mxu0 0
    %3059 = vmatprep.mubr.bf16.mxu0 0
    %3060 = vmatmul.mubr.bf16.gmra.mxu0 %v2978
    %v3061 = vpop.f32.mrf.mxu0
    %v3062 = vadd.f32 0.0, %v3061
    %v3063 = vpop.f32.mrf.mxu0
    %v3064 = vpop.f32.mrf.mxu0
    %v3065 = vpop.f32.mrf.mxu0
    %3066 = vdwg.mxu0
    %v3083 = vunpack.c.l.b16 %v230
    %v3084 = vunpack.c.l.b16 %v231
    %v3085 = vunpack.c.l.b16 %v232
    %v3086 = vunpack.c.l.b16 %v233
    %v3087 = vunpack.c.l.b16 %v234
    %v3088 = vunpack.c.l.b16 %v235
    %v3089 = vunpack.c.l.b16 %v236
    %v3090 = vunpack.c.l.b16 %v237
    %v3091 = vunpack.c.l.b16 %v238
    %v3092 = vunpack.c.l.b16 %v239
    %v3093 = vunpack.c.l.b16 %v240
    %v3094 = vunpack.c.l.b16 %v241
    %v3095 = vunpack.c.l.b16 %v242
    %v3096 = vunpack.c.l.b16 %v243
    %v3097 = vunpack.c.l.b16 %v244
    %v3098 = vunpack.c.l.b16 %v245
    %v3099 = vpack.c.b16 %v3084, %v3083
    %v3100 = vpack.c.b16 %v3086, %v3085
    %v3101 = vpack.c.b16 %v3088, %v3087
    %v3102 = vpack.c.b16 %v3090, %v3089
    %v3103 = vpack.c.b16 %v3092, %v3091
    %v3104 = vpack.c.b16 %v3094, %v3093
    %v3105 = vpack.c.b16 %v3096, %v3095
    %v3106 = vpack.c.b16 %v3098, %v3097
    %3115 = vmatprep.subr.bf16.mxu0 0
    %3116 = vmatpush1.bf16.msra.mxu0 %v3106
    %3117 = vmatprep.subr.bf16.mxu0 0
    %3118 = vmatpush1.bf16.msra.mxu0 %v3105
    %3119 = vmatprep.subr.bf16.mxu0 0
    %3120 = vmatpush1.bf16.msra.mxu0 %v3104
    %3121 = vmatprep.subr.bf16.mxu0 0
    %3122 = vmatpush1.bf16.msra.mxu0 %v3103
    %3123 = vmatprep.subr.bf16.mxu0 0
    %3124 = vmatpush1.bf16.msra.mxu0 %v3102
    %3125 = vmatprep.subr.bf16.mxu0 0
    %3126 = vmatpush1.bf16.msra.mxu0 %v3101
    %3127 = vmatprep.subr.bf16.mxu0 0
    %3128 = vmatpush1.bf16.msra.mxu0 %v3100
    %3129 = vmatprep.subr.bf16.mxu0 0
    %3130 = vmatpush1.bf16.msra.mxu0 %v3099
    %3131 = vmatprep.subr.bf16.mxu0 0
    %3132 = vmatpush2.bf16.msra.mxu0 0
    %3133 = vmatprep.subr.bf16.mxu0 0
    %3134 = vmatpush2.bf16.msra.mxu0 0
    %3135 = vmatprep.subr.bf16.mxu0 0
    %3136 = vmatpush2.bf16.msra.mxu0 0
    %3137 = vmatprep.subr.bf16.mxu0 0
    %3138 = vmatpush2.bf16.msra.mxu0 0
    %3139 = vmatprep.subr.bf16.mxu0 0
    %3140 = vmatpush2.bf16.msra.mxu0 0
    %3141 = vmatprep.subr.bf16.mxu0 0
    %3142 = vmatpush2.bf16.msra.mxu0 0
    %3143 = vmatprep.subr.bf16.mxu0 0
    %3144 = vmatpush2.bf16.msra.mxu0 0
    %3145 = vmatprep.subr.bf16.mxu0 0
    %3146 = vmatpush2.bf16.msra.mxu0 0
    %3147 = vmatprep.mubr.bf16.mxu0 0
    %3148 = vmatmul.mubr.bf16.gmra.mxu0 %v2977
    %v3149 = vpop.f32.mrf.mxu0
    %v3150 = vadd.f32 %v3062, %v3149
    %v3151 = vpop.f32.mrf.mxu0
    %v3152 = vpop.f32.mrf.mxu0
    %v3153 = vpop.f32.mrf.mxu0
    %3154 = vdwg.mxu0
    %v3155 = vpack.c.bf16 %v2975, %v2975
    %v3172 = vunpack.c.l.b16 %v264
    %v3173 = vunpack.c.l.b16 %v265
    %v3174 = vunpack.c.l.b16 %v266
    %v3175 = vunpack.c.l.b16 %v267
    %v3176 = vunpack.c.l.b16 %v268
    %v3177 = vunpack.c.l.b16 %v269
    %v3178 = vunpack.c.l.b16 %v270
    %v3179 = vunpack.c.l.b16 %v271
    %v3180 = vunpack.c.l.b16 %v272
    %v3181 = vunpack.c.l.b16 %v273
    %v3182 = vunpack.c.l.b16 %v274
    %v3183 = vunpack.c.l.b16 %v275
    %v3184 = vunpack.c.l.b16 %v276
    %v3185 = vunpack.c.l.b16 %v277
    %v3186 = vunpack.c.l.b16 %v278
    %v3187 = vunpack.c.l.b16 %v279
    %v3188 = vpack.c.b16 %v3173, %v3172
    %v3189 = vpack.c.b16 %v3175, %v3174
    %v3190 = vpack.c.b16 %v3177, %v3176
    %v3191 = vpack.c.b16 %v3179, %v3178
    %v3192 = vpack.c.b16 %v3181, %v3180
    %v3193 = vpack.c.b16 %v3183, %v3182
    %v3194 = vpack.c.b16 %v3185, %v3184
    %v3195 = vpack.c.b16 %v3187, %v3186
    %3204 = vmatprep.subr.bf16.mxu0 0
    %3205 = vmatpush1.bf16.msra.mxu0 %v3195
    %3206 = vmatprep.subr.bf16.mxu0 0
    %3207 = vmatpush1.bf16.msra.mxu0 %v3194
    %3208 = vmatprep.subr.bf16.mxu0 0
    %3209 = vmatpush1.bf16.msra.mxu0 %v3193
    %3210 = vmatprep.subr.bf16.mxu0 0
    %3211 = vmatpush1.bf16.msra.mxu0 %v3192
    %3212 = vmatprep.subr.bf16.mxu0 0
    %3213 = vmatpush1.bf16.msra.mxu0 %v3191
    %3214 = vmatprep.subr.bf16.mxu0 0
    %3215 = vmatpush1.bf16.msra.mxu0 %v3190
    %3216 = vmatprep.subr.bf16.mxu0 0
    %3217 = vmatpush1.bf16.msra.mxu0 %v3189
    %3218 = vmatprep.subr.bf16.mxu0 0
    %3219 = vmatpush1.bf16.msra.mxu0 %v3188
    %3220 = vmatprep.subr.bf16.mxu0 0
    %3221 = vmatpush2.bf16.msra.mxu0 0
    %3222 = vmatprep.subr.bf16.mxu0 0
    %3223 = vmatpush2.bf16.msra.mxu0 0
    %3224 = vmatprep.subr.bf16.mxu0 0
    %3225 = vmatpush2.bf16.msra.mxu0 0
    %3226 = vmatprep.subr.bf16.mxu0 0
    %3227 = vmatpush2.bf16.msra.mxu0 0
    %3228 = vmatprep.subr.bf16.mxu0 0
    %3229 = vmatpush2.bf16.msra.mxu0 0
    %3230 = vmatprep.subr.bf16.mxu0 0
    %3231 = vmatpush2.bf16.msra.mxu0 0
    %3232 = vmatprep.subr.bf16.mxu0 0
    %3233 = vmatpush2.bf16.msra.mxu0 0
    %3234 = vmatprep.subr.bf16.mxu0 0
    %3235 = vmatpush2.bf16.msra.mxu0 0
    %3236 = vmatprep.mubr.bf16.mxu0 0
    %3237 = vmatmul.mubr.bf16.gmra.mxu0 %v3155
    %v3238 = vpop.f32.mrf.mxu0
    %v3239 = vadd.f32 0.0, %v3238
    %v3240 = vpop.f32.mrf.mxu0
    %v3241 = vpop.f32.mrf.mxu0
    %v3242 = vpop.f32.mrf.mxu0
    %3243 = vdwg.mxu0
    %v3244 = vadd.f32 %v3150, %v3239
    %v3245 = vpack.c.bf16 %v2976, %v2976
    %v3262 = vunpack.c.l.b16 %v281
    %v3263 = vunpack.c.l.b16 %v282
    %v3264 = vunpack.c.l.b16 %v283
    %v3265 = vunpack.c.l.b16 %v284
    %v3266 = vunpack.c.l.b16 %v285
    %v3267 = vunpack.c.l.b16 %v286
    %v3268 = vunpack.c.l.b16 %v287
    %v3269 = vunpack.c.l.b16 %v288
    %v3270 = vunpack.c.l.b16 %v289
    %v3271 = vunpack.c.l.b16 %v290
    %v3272 = vunpack.c.l.b16 %v291
    %v3273 = vunpack.c.l.b16 %v292
    %v3274 = vunpack.c.l.b16 %v293
    %v3275 = vunpack.c.l.b16 %v294
    %v3276 = vunpack.c.l.b16 %v295
    %v3277 = vunpack.c.l.b16 %v296
    %v3278 = vpack.c.b16 %v3263, %v3262
    %v3279 = vpack.c.b16 %v3265, %v3264
    %v3280 = vpack.c.b16 %v3267, %v3266
    %v3281 = vpack.c.b16 %v3269, %v3268
    %v3282 = vpack.c.b16 %v3271, %v3270
    %v3283 = vpack.c.b16 %v3273, %v3272
    %v3284 = vpack.c.b16 %v3275, %v3274
    %v3285 = vpack.c.b16 %v3277, %v3276
    %3294 = vmatprep.subr.bf16.mxu0 0
    %3295 = vmatpush1.bf16.msra.mxu0 %v3285
    %3296 = vmatprep.subr.bf16.mxu0 0
    %3297 = vmatpush1.bf16.msra.mxu0 %v3284
    %3298 = vmatprep.subr.bf16.mxu0 0
    %3299 = vmatpush1.bf16.msra.mxu0 %v3283
    %3300 = vmatprep.subr.bf16.mxu0 0
    %3301 = vmatpush1.bf16.msra.mxu0 %v3282
    %3302 = vmatprep.subr.bf16.mxu0 0
    %3303 = vmatpush1.bf16.msra.mxu0 %v3281
    %3304 = vmatprep.subr.bf16.mxu0 0
    %3305 = vmatpush1.bf16.msra.mxu0 %v3280
    %3306 = vmatprep.subr.bf16.mxu0 0
    %3307 = vmatpush1.bf16.msra.mxu0 %v3279
    %3308 = vmatprep.subr.bf16.mxu0 0
    %3309 = vmatpush1.bf16.msra.mxu0 %v3278
    %3310 = vmatprep.subr.bf16.mxu0 0
    %3311 = vmatpush2.bf16.msra.mxu0 0
    %3312 = vmatprep.subr.bf16.mxu0 0
    %3313 = vmatpush2.bf16.msra.mxu0 0
    %3314 = vmatprep.subr.bf16.mxu0 0
    %3315 = vmatpush2.bf16.msra.mxu0 0
    %3316 = vmatprep.subr.bf16.mxu0 0
    %3317 = vmatpush2.bf16.msra.mxu0 0
    %3318 = vmatprep.subr.bf16.mxu0 0
    %3319 = vmatpush2.bf16.msra.mxu0 0
    %3320 = vmatprep.subr.bf16.mxu0 0
    %3321 = vmatpush2.bf16.msra.mxu0 0
    %3322 = vmatprep.subr.bf16.mxu0 0
    %3323 = vmatpush2.bf16.msra.mxu0 0
    %3324 = vmatprep.subr.bf16.mxu0 0
    %3325 = vmatpush2.bf16.msra.mxu0 0
    %3326 = vmatprep.mubr.bf16.mxu0 0
    %3327 = vmatmul.mubr.bf16.gmra.mxu0 %v3245
    %v3328 = vpop.f32.mrf.mxu0
    %v3329 = vadd.f32 0.0, %v3328
    %v3330 = vpop.f32.mrf.mxu0
    %v3331 = vpop.f32.mrf.mxu0
    %v3332 = vpop.f32.mrf.mxu0
    %3333 = vdwg.mxu0
    %v3334 = vadd.f32 %v3244, %v3329
    %v3335 = vld [vmem:[%s9] sm:$0x1]
    %v3337 = vlaneseq
    %v3338 = vshrl.u32 %v3337, 7
    %v3339 = vsub.s32 0, %v3338
    %v3340 = vrot.slane %v3335, %v3339
    %v3342 = vadd.f32 %v3334, %v3340
    %v3343 = vmax.f32 %v3342, 0.0
    %v3344 = vpack.c.bf16 %v3343, %v3343
    %v3345 = vld [vmem:[#allocation4] sm:$0xf]
    %v3346 = vld [vmem:[#allocation4 + $0x4] sm:$0xf]
    %v3347 = vld [vmem:[#allocation4 + $0x8] sm:$0xf]
    %v3348 = vld [vmem:[#allocation4 + $0xc] sm:$0xf]
    %v3349 = vld [vmem:[#allocation4 + $0x10] sm:$0xf]
    %v3350 = vld [vmem:[#allocation4 + $0x14] sm:$0xf]
    %v3351 = vld [vmem:[#allocation4 + $0x18] sm:$0xf]
    %v3352 = vld [vmem:[#allocation4 + $0x1c] sm:$0xf]
    %v3353 = vld [vmem:[%s11] sm:$0x1]
    %v3355 = vlaneseq
    %v3356 = vshrl.u32 %v3355, 7
    %v3357 = vsub.s32 0, %v3356
    %v3358 = vrot.slane %v3353, %v3357
    %v3368 = vunpack.c.l.b16 %v3345
    %v3369 = vunpack.c.l.b16 %v3346
    %v3370 = vunpack.c.l.b16 %v3347
    %v3371 = vunpack.c.l.b16 %v3348
    %v3372 = vunpack.c.l.b16 %v3349
    %v3373 = vunpack.c.l.b16 %v3350
    %v3374 = vunpack.c.l.b16 %v3351
    %v3375 = vunpack.c.l.b16 %v3352
    %v3376 = vpack.c.b16 %v3369, %v3368
    %v3377 = vpack.c.b16 %v3371, %v3370
    %v3378 = vpack.c.b16 %v3373, %v3372
    %v3379 = vpack.c.b16 %v3375, %v3374
    %vm3384 = vcmask 523264
    %v3386 = vsel %vm3384, %v3344, 0
    %3388 = vmatprep.subr.bf16.mxu0 0
    %3389 = vmatpush1.bf16.msra.mxu0 0
    %3390 = vmatprep.subr.bf16.mxu0 0
    %3391 = vmatpush1.bf16.msra.mxu0 0
    %3392 = vmatprep.subr.bf16.mxu0 0
    %3393 = vmatpush1.bf16.msra.mxu0 0
    %3394 = vmatprep.subr.bf16.mxu0 0
    %3395 = vmatpush1.bf16.msra.mxu0 0
    %3396 = vmatprep.subr.bf16.mxu0 0
    %3397 = vmatpush1.bf16.msra.mxu0 %v3379
    %3398 = vmatprep.subr.bf16.mxu0 0
    %3399 = vmatpush1.bf16.msra.mxu0 %v3378
    %3400 = vmatprep.subr.bf16.mxu0 0
    %3401 = vmatpush1.bf16.msra.mxu0 %v3377
    %3402 = vmatprep.subr.bf16.mxu0 0
    %3403 = vmatpush1.bf16.msra.mxu0 %v3376
    %3404 = vmatprep.subr.bf16.mxu0 0
    %3405 = vmatpush2.bf16.msra.mxu0 0
    %3406 = vmatprep.subr.bf16.mxu0 0
    %3407 = vmatpush2.bf16.msra.mxu0 0
    %3408 = vmatprep.subr.bf16.mxu0 0
    %3409 = vmatpush2.bf16.msra.mxu0 0
    %3410 = vmatprep.subr.bf16.mxu0 0
    %3411 = vmatpush2.bf16.msra.mxu0 0
    %3412 = vmatprep.subr.bf16.mxu0 0
    %3413 = vmatpush2.bf16.msra.mxu0 0
    %3414 = vmatprep.subr.bf16.mxu0 0
    %3415 = vmatpush2.bf16.msra.mxu0 0
    %3416 = vmatprep.subr.bf16.mxu0 0
    %3417 = vmatpush2.bf16.msra.mxu0 0
    %3418 = vmatprep.subr.bf16.mxu0 0
    %3419 = vmatpush2.bf16.msra.mxu0 0
    %3420 = vmatprep.mubr.bf16.mxu0 0
    %3421 = vmatmul.mubr.bf16.gmra.mxu0 %v3386
    %v3422 = vpop.f32.mrf.mxu0
    %v3423 = vadd.f32 %v3358, %v3422
    %v3424 = vpop.f32.mrf.mxu0
    %v3425 = vpop.f32.mrf.mxu0
    %v3426 = vpop.f32.mrf.mxu0
    %3427 = vdwg.mxu0
    %v3428 = vmax.f32 %v3423, 0.0
    %v3429 = vlaneseq
    %v3430 = vand.u32 %v3429, 127
    %vm3431 = vcmp.lt.s32.totalorder %v3430, 10
    %v3432 = vsel %vm3431, %v3428, -1e+30
    %3433 = vmax.xlane.f32.xlu0 %v3432
    %v3434 = vpop.xlane.xlu0 %3433
    %v3435 = vsub.f32 %v3432, %v3434
    %v3436 = vmul.f32 %v3435, 1.442695
    %v3437 = vpow.pop %v3436
    %3438 = vadd.xlane.f32.xlu0 %v3437
    %v3439 = vpop.xlane.xlu0 %3438
    %v3440 = vrcp.pop %v3439
    %v3441 = vmul.f32 %v3437, %v3440
    %3442 = vst [vmem:[%s12] sm:$0xff] %v3441
    // Predicated region
    $region58: #{convnet_forward.1} parent=1 // pred_check
      _
    $region59: #{convnet_forward.1} parent=1 // pred_check_branch
      %3444 = sbr.rel (0) target = $region61
    $region60: #{convnet_forward.1} parent=1 // pred_region
      _
    $region61: #{convnet_forward.1} parent=1 // pred_fallthru
      _
    // Predicated region
    $region62: #{convnet_forward.1} parent=1 // pred_check
      _
    $region63: #{convnet_forward.1} parent=1 // pred_check_branch
      %3446 = sbr.rel (0) target = $region65
    $region64: #{convnet_forward.1} parent=1 // pred_region
      _
    $region65: #{convnet_forward.1} parent=1 // pred_fallthru
      _
    %3447 = vsyncpa [#allocation3], 1
    %3448 = vsyncpa [#allocation5], 1

</llo_original>
